<compile_context>
chip_gen: v7x
topology: tpu7x:2x2x1
jax: 0.10.0
libtpu: 0.0.40
codegen_flags: <defaults>
</compile_context>

<pallas_src>
import jax
import jax.numpy as jnp
import numpy as np
from jax import lax
from jax.experimental import pallas as pl
from jax.experimental.pallas import tpu as pltpu

# ----- static configuration (baked into the kernel) -----
N_BATCH = 2
D_MODEL = 32
N_HEADS = 4
D_HEAD = D_MODEL // N_HEADS
N_LEVELS = 2
N_POINTS = 4
D_FFN = 64
NUM_LAYERS = 2
TEMPORAL_SHAPES = (8, 4)                       # T_l per level
LEVEL_START = (0, 8)                           # cumulative start index per level
LEN = sum(TEMPORAL_SHAPES)                     # flattened sequence length = 12
LN_EPS = 1e-5

LPH = N_LEVELS * N_POINTS * N_HEADS            # 32 sampling columns, ordered (level, head, point)
HL = N_HEADS * LEN                             # 48 block-diagonal key axis  j = head*LEN + row
NLANES = N_HEADS * N_POINTS * sum(TEMPORAL_SHAPES)   # 192 dense interpolation lanes


def _col_meta():
    """Per sampling column (ordered level, head, point): level, head, first dense lane."""
    lvls, heads, bases = [], [], []
    base = 0
    for l in range(N_LEVELS):
        for h in range(N_HEADS):
            for p in range(N_POINTS):
                lvls.append(l)
                heads.append(h)
                bases.append(base)
                base += TEMPORAL_SHAPES[l]
    assert base == NLANES
    return lvls, heads, bases


_COL_LVL, _COL_HEAD, _COL_BASE = _col_meta()

# ----- constant slab row layout (all section starts 8-aligned, all slices start at lane 0) -----
_KL_R0 = 0                                     # k_lane            (1,  NLANES)
_E_R0 = 8                                      # E  column->lane   (LPH, NLANES)
_G_R0 = _E_R0 + LPH                            # G  lane->key      (NLANES, HL)
_GG_R0 = _G_R0 + NLANES                        # GG softmax group  (LPH, LPH)
_BD_R0 = _GG_R0 + LPH                          # head block-diag   (HL, D_MODEL)
_SR_R0 = _BD_R0 + HL                           # S_rep per batch   (b_blk*HL, R)


def _mb_r0(b_blk):                             # batch-of-row masks (R, b_blk)
    return _SR_R0 + b_blk * HL


def _const_rows(b_blk):
    return _mb_r0(b_blk) + b_blk * LEN


def build_consts(b_blk):
    R = b_blk * LEN
    consts = np.zeros((_const_rows(b_blk), NLANES), np.float32)
    for c in range(LPH):
        T = TEMPORAL_SHAPES[_COL_LVL[c]]
        for k in range(T):
            lane = _COL_BASE[c] + k
            consts[_KL_R0, lane] = float(k)
            consts[_E_R0 + c, lane] = 1.0
            consts[_G_R0 + lane,
                   _COL_HEAD[c] * LEN + LEVEL_START[_COL_LVL[c]] + k] = 1.0
    for c in range(LPH):
        for c2 in range(LPH):
            if _COL_HEAD[c] == _COL_HEAD[c2]:
                consts[_GG_R0 + c, c2] = 1.0
    for r in range(HL):
        for ch in range(D_MODEL):
            if r // LEN == ch // D_HEAD:
                consts[_BD_R0 + r, ch] = 1.0
    for b in range(b_blk):
        for h in range(N_HEADS):
            for r in range(LEN):
                consts[_SR_R0 + b * HL + h * LEN + r, b * LEN + r] = 1.0
    for b in range(b_blk):
        for r in range(LEN):
            consts[_mb_r0(b_blk) + b * LEN + r, b] = 1.0
    return jnp.asarray(consts)


# ----- bias / LayerNorm vector slab rows (one parameter vector per sublane row, lane 0 start) ----
(_VR_BV, _VR_BOA, _VR_BOUT, _VR_G1, _VR_BE1,
 _VR_B1, _VR_B2, _VR_G2, _VR_BE2) = range(9)
VEC_ROWS = 16


def pack_layer_params(layer_params):
    """PyTorch-layout per-layer params -> layer-stacked, lane-aligned kernel slabs."""
    # permute torch (head, level, point) columns -> kernel (level, head, point) columns
    perm = jnp.asarray(
        [h * (N_LEVELS * N_POINTS) + l * N_POINTS + p
         for l in range(N_LEVELS) for h in range(N_HEADS) for p in range(N_POINTS)],
        dtype=jnp.int32)

    def pad_row(v, width=128):
        v = v.reshape(1, -1)
        return jnp.pad(v, ((0, 0), (0, width - v.shape[1])))

    w_val, w_oa, w_out, w_ff1, w_ff2, vec = [], [], [], [], [], []
    for p in layer_params:
        w_val.append(p["Wv"])
        w_oa.append(jnp.concatenate([p["Woff"][:, perm], p["Wattn"][:, perm]], axis=1))
        w_out.append(p["Wout"])
        w_ff1.append(p["W1"])
        w_ff2.append(p["W2"])
        rows = [pad_row(p["bv"]),
                pad_row(jnp.concatenate([p["boff"][:, perm], p["battn"][:, perm]], axis=1)),
                pad_row(p["bout"]), pad_row(p["g1"]), pad_row(p["be1"]),
                pad_row(p["b1"]), pad_row(p["b2"]), pad_row(p["g2"]), pad_row(p["be2"])]
        rows.append(jnp.zeros((VEC_ROWS - len(rows), 128), jnp.float32))
        vec.append(jnp.concatenate(rows, axis=0))
    return (jnp.stack(w_val), jnp.stack(w_oa), jnp.stack(w_out),
            jnp.stack(w_ff1), jnp.stack(w_ff2), jnp.stack(vec))


def _layernorm(x, gamma, beta):
    mu = jnp.mean(x, axis=-1, keepdims=True)
    var = jnp.mean((x - mu) ** 2, axis=-1, keepdims=True)
    return (x - mu) * lax.rsqrt(var + LN_EPS) * gamma + beta


def make_encoder_kernel(b_blk):
    R = b_blk * LEN
    mb_r0 = _mb_r0(b_blk)

    def kernel(slab_ref, wval_ref, woa_ref, wout_ref, wff1_ref, wff2_ref,
               vec_ref, c_ref, out_ref):
        f32 = jnp.float32
        x = slab_ref[0, 0]                                        # (R, C) running activation
        k_lane = c_ref[_KL_R0:_KL_R0 + 1, 0:NLANES]               # (1, NLANES)

        for l in range(NUM_LAYERS):                               # statically unrolled
            w_val = wval_ref[l]
            w_oa = woa_ref[l]
            w_out = wout_ref[l]
            w_ff1 = wff1_ref[l]
            w_ff2 = wff2_ref[l]
            bv = vec_ref[l, _VR_BV:_VR_BV + 1, 0:D_MODEL]
            b_oa = vec_ref[l, _VR_BOA:_VR_BOA + 1, 0:2 * LPH]
            bout = vec_ref[l, _VR_BOUT:_VR_BOUT + 1, 0:D_MODEL]
            g1 = vec_ref[l, _VR_G1:_VR_G1 + 1, 0:D_MODEL]
            be1 = vec_ref[l, _VR_BE1:_VR_BE1 + 1, 0:D_MODEL]
            b1 = vec_ref[l, _VR_B1:_VR_B1 + 1, 0:D_FFN]
            b2 = vec_ref[l, _VR_B2:_VR_B2 + 1, 0:D_MODEL]
            g2 = vec_ref[l, _VR_G2:_VR_G2 + 1, 0:D_MODEL]
            be2 = vec_ref[l, _VR_BE2:_VR_BE2 + 1, 0:D_MODEL]

            # ---------------- MSDeformAttn ----------------
            q = x + slab_ref[0, 1]                                # src + pos
            # value projection + padding masked_fill(0)
            value = (jnp.dot(x, w_val, preferred_element_type=f32) + bv) * slab_ref[0, 3]

            # fused sampling-offset / attention-weight projection
            oa = jnp.dot(q, w_oa, preferred_element_type=f32) + b_oa       # (R, 2*LPH)
            off = oa[:, 0:LPH]
            aw = oa[:, LPH:2 * LPH]

            # per-head softmax over L*P (global row max is a per-head-constant shift -> exact)
            e = jnp.exp(aw - jnp.max(aw, axis=-1, keepdims=True))
            denom = jnp.dot(e, c_ref[_GG_R0:_GG_R0 + LPH, 0:LPH],
                            preferred_element_type=f32)
            p_attn = e / denom                                    # exact divide (parity w/ torch)

            # dense-lane 1-D linear interpolation: hat(x, k) = max(0, 1-|x-k|), k in [0, T_l)
            # reproduces grid_sample(bilinear, zero padding, align_corners=False) exactly.
            xs = slab_ref[0, 2] + off                             # loc*T_l - 0.5    (R, LPH)
            E = c_ref[_E_R0:_E_R0 + LPH, 0:NLANES]
            xs_exp = jnp.dot(xs, E, preferred_element_type=f32)              # (R, NLANES)
            pa_exp = jnp.dot(p_attn, E, preferred_element_type=f32)          # (R, NLANES)
            contrib = jnp.maximum(1.0 - jnp.abs(xs_exp - k_lane), 0.0) * pa_exp
            a_keys = jnp.dot(contrib, c_ref[_G_R0:_G_R0 + NLANES, 0:HL],
                             preferred_element_type=f32)                      # (R, HL)

            # block-diagonal contraction over all heads; value replicated via MXU (no concat)
            bd = c_ref[_BD_R0:_BD_R0 + HL, 0:D_MODEL]
            core = None
            for b in range(b_blk):
                s_rep = c_ref[_SR_R0 + b * HL:_SR_R0 + (b + 1) * HL, 0:R]
                v_bd = jnp.dot(s_rep, value, preferred_element_type=f32) * bd   # (HL, C)
                a_b = a_keys
                if b_blk > 1:
                    a_b = a_b * c_ref[mb_r0:mb_r0 + R, b:b + 1]   # keep batches separate
                part = jnp.dot(a_b, v_bd, preferred_element_type=f32)
                core = part if core is None else core + part

            attn = jnp.dot(core, w_out, preferred_element_type=f32) + bout

            # ---------------- residual + LN + FFN ----------------
            x1 = _layernorm(x + attn, g1, be1)
            h1 = jnp.maximum(jnp.dot(x1, w_ff1, preferred_element_type=f32) + b1, 0.0)
            ff = jnp.dot(h1, w_ff2, preferred_element_type=f32) + b2
            x = _layernorm(x1 + ff, g2, be2)

        out_ref[0] = x.astype(out_ref.dtype)

    return kernel


def get_reference_points(temporal_shapes, valid_ratios):
    # Same math as the PyTorch staticmethod (tiny elementwise glue, kept in plain JAX).
    ref_list = []
    for lvl, t_l in enumerate(temporal_shapes):
        ref = jnp.arange(t_l, dtype=jnp.float32) + 0.5            # linspace(0.5, T-0.5, T)
        ref = ref[None] / (valid_ratios[:, None, lvl] * t_l)      # (N, T_l)
        ref_list.append(ref)
    reference_points = jnp.concatenate(ref_list, axis=1)          # (N, LEN)
    reference_points = reference_points[:, :, None] * valid_ratios[:, None]   # (N, LEN, L)
    return reference_points


def _default_batch_block():
    """v7x (2 TensorCores/chip): keep the batch-parallel grid; v5e/v6e: fold batch into rows."""
    try:
        kind = jax.devices()[0].device_kind.lower()
    except Exception:
        return N_BATCH
    if "v7" in kind or "7x" in kind:
        return 1
    return N_BATCH


def deformable_transformer_encoder_forward(src, valid_ratios, layer_params,
                                           pos=None, padding_mask=None,
                                           batch_block=None):
    n, length, c = src.shape
    assert (n, length, c) == (N_BATCH, LEN, D_MODEL)
    if batch_block is None:
        batch_block = _default_batch_block()
    assert N_BATCH % batch_block == 0
    num_blocks = N_BATCH // batch_block
    R = batch_block * LEN

    if pos is None:
        pos = jnp.zeros_like(src)
    if padding_mask is None:
        padding_mask = jnp.zeros((n, length), dtype=bool)

    # host-side precompute: per-column scaled reference  ref*T_l - 0.5  and padding mask
    refp = get_reference_points(TEMPORAL_SHAPES, valid_ratios)            # (N, LEN, L)
    col_lvl = jnp.asarray(_COL_LVL, dtype=jnp.int32)
    col_t = jnp.asarray([float(TEMPORAL_SHAPES[l]) for l in _COL_LVL], jnp.float32)
    sref = refp[:, :, col_lvl] * col_t - 0.5                              # (N, LEN, LPH)
    inv_pad = (1.0 - padding_mask.astype(jnp.float32))[..., None]
    inv_pad = jnp.broadcast_to(inv_pad, (n, length, D_MODEL))

    # one per-batch input slab: [src | pos | scaled_ref | inverse padding mask]
    slab = jnp.stack([src, pos, sref, inv_pad], axis=1)                   # (N, 4, LEN, C)
    slab = slab.reshape(num_blocks, batch_block, 4, LEN, D_MODEL)
    slab = jnp.swapaxes(slab, 1, 2).reshape(num_blocks, 4, R, D_MODEL)

    w_val, w_oa, w_out, w_ff1, w_ff2, vec = pack_layer_params(layer_params)
    consts = build_consts(batch_block)

    def rep_spec(shape):
        nd = len(shape)
        return pl.BlockSpec(tuple(shape), lambda i, _nd=nd: (0,) * _nd)

    out = pl.pallas_call(
        make_encoder_kernel(batch_block),
        out_shape=jax.ShapeDtypeStruct((num_blocks, R, D_MODEL), src.dtype),
        grid_spec=pltpu.PrefetchScalarGridSpec(
            num_scalar_prefetch=0,
            grid=(num_blocks,),
            in_specs=[
                pl.BlockSpec((1, 4, R, D_MODEL), lambda i: (i, 0, 0, 0)),
                rep_spec(w_val.shape), rep_spec(w_oa.shape), rep_spec(w_out.shape),
                rep_spec(w_ff1.shape), rep_spec(w_ff2.shape),
                rep_spec(vec.shape), rep_spec(consts.shape),
            ],
            out_specs=pl.BlockSpec((1, R, D_MODEL), lambda i: (i, 0, 0)),
        ),
        compiler_params=pltpu.CompilerParams(dimension_semantics=("parallel",)),
    )(slab, w_val, w_oa, w_out, w_ff1, w_ff2, vec, consts)

    return out.reshape(num_blocks, batch_block, LEN, D_MODEL).reshape(n, LEN, D_MODEL)


def init_layer_params(key):
    ks = jax.random.split(key, 12)
    s = 0.1
    hlp = N_HEADS * N_LEVELS * N_POINTS
    return dict(
        Wv=jax.random.normal(ks[0], (D_MODEL, D_MODEL)) * s,
        bv=jax.random.normal(ks[1], (1, D_MODEL)) * s,
        Woff=jax.random.normal(ks[2], (D_MODEL, hlp)) * s,
        boff=jax.random.normal(ks[3], (1, hlp)) * s,
        Wattn=jax.random.normal(ks[4], (D_MODEL, hlp)) * s,
        battn=jax.random.normal(ks[5], (1, hlp)) * s,
        Wout=jax.random.normal(ks[6], (D_MODEL, D_MODEL)) * s,
        bout=jax.random.normal(ks[7], (1, D_MODEL)) * s,
        g1=jnp.ones((1, D_MODEL), jnp.float32),
        be1=jnp.zeros((1, D_MODEL), jnp.float32),
        W1=jax.random.normal(ks[8], (D_MODEL, D_FFN)) * s,
        b1=jax.random.normal(ks[9], (1, D_FFN)) * s,
        W2=jax.random.normal(ks[10], (D_FFN, D_MODEL)) * s,
        b2=jax.random.normal(ks[11], (1, D_MODEL)) * s,
        g2=jnp.ones((1, D_MODEL), jnp.float32),
        be2=jnp.zeros((1, D_MODEL), jnp.float32),
    )


if __name__ == "__main__":
    key = jax.random.PRNGKey(0)
    k_src, k_pos, k_layers = jax.random.split(key, 3)

    src = jax.random.normal(k_src, (N_BATCH, LEN, D_MODEL), jnp.float32)
    pos = jax.random.normal(k_pos, (N_BATCH, LEN, D_MODEL), jnp.float32)

    # batch 0 fully valid; batch 1: level0 last 2 positions and level1 last 1 position padded
    padding_mask = jnp.zeros((N_BATCH, LEN), dtype=bool)
    padding_mask = padding_mask.at[1, 6:8].set(True)
    padding_mask = padding_mask.at[1, 11].set(True)
    valid_ratios = jnp.array([[1.0, 1.0], [6.0 / 8.0, 3.0 / 4.0]], dtype=jnp.float32)

    layer_keys = jax.random.split(k_layers, NUM_LAYERS)
    layer_params = [init_layer_params(k) for k in layer_keys]

    out = deformable_transformer_encoder_forward(
        src, valid_ratios, layer_params, pos=pos, padding_mask=padding_mask)
    out = jax.block_until_ready(out)
    assert out.shape == (N_BATCH, LEN, D_MODEL)
    assert bool(jnp.all(jnp.isfinite(out)))
    print("KERNEL_OK")
</pallas_src>

<mosaic_0001>
module attributes {stable_mosaic.version = 11 : i64} {
  func.func @kernel(%arg0: i32, %arg1: memref<1x4x24x32xf32, #tpu.memory_space<vmem>>, %arg2: memref<2x32x32xf32, #tpu.memory_space<vmem>>, %arg3: memref<2x32x64xf32, #tpu.memory_space<vmem>>, %arg4: memref<2x32x32xf32, #tpu.memory_space<vmem>>, %arg5: memref<2x32x64xf32, #tpu.memory_space<vmem>>, %arg6: memref<2x64x32xf32, #tpu.memory_space<vmem>>, %arg7: memref<2x16x128xf32, #tpu.memory_space<vmem>>, %arg8: memref<432x192xf32, #tpu.memory_space<vmem>>, %arg9: memref<1x24x32xf32, #tpu.memory_space<vmem>>) attributes {dimension_semantics = [#tpu.dimension_semantics<parallel>], iteration_bounds = array<i64: 1>, scalar_prefetch = 0 : i64, scratch_operands = 0 : i64, tpu.core_type = #tpu.core_type<tc>, window_params = [{transform_indices = @transform_0, window_bounds = array<i64: 1, 4, 24, 32>}, {pipeline_mode = #tpu.pipeline_mode<synchronous>, transform_indices = @transform_1, window_bounds = array<i64: 2, 32, 32>}, {pipeline_mode = #tpu.pipeline_mode<synchronous>, transform_indices = @transform_2, window_bounds = array<i64: 2, 32, 64>}, {pipeline_mode = #tpu.pipeline_mode<synchronous>, transform_indices = @transform_3, window_bounds = array<i64: 2, 32, 32>}, {pipeline_mode = #tpu.pipeline_mode<synchronous>, transform_indices = @transform_4, window_bounds = array<i64: 2, 32, 64>}, {pipeline_mode = #tpu.pipeline_mode<synchronous>, transform_indices = @transform_5, window_bounds = array<i64: 2, 64, 32>}, {pipeline_mode = #tpu.pipeline_mode<synchronous>, transform_indices = @transform_6, window_bounds = array<i64: 2, 16, 128>}, {pipeline_mode = #tpu.pipeline_mode<synchronous>, transform_indices = @transform_7, window_bounds = array<i64: 432, 192>}, {transform_indices = @transform_8, window_bounds = array<i64: 1, 24, 32>}]} {
    %c0 = arith.constant 0 : index
    %c0_0 = arith.constant 0 : index
    %c0_1 = arith.constant 0 : index
    %c0_2 = arith.constant 0 : index
    %0 = vector.load %arg1[%c0, %c0_0, %c0_1, %c0_2] : memref<1x4x24x32xf32, #tpu.memory_space<vmem>>, vector<1x1x24x32xf32>
    %1 = vector.shape_cast %0 : vector<1x1x24x32xf32> to vector<24x32xf32>
    %c0_3 = arith.constant 0 : index
    %c0_4 = arith.constant 0 : index
    %2 = vector.load %arg8[%c0_3, %c0_4] : memref<432x192xf32, #tpu.memory_space<vmem>>, vector<1x192xf32>
    %c0_5 = arith.constant 0 : index
    %c0_6 = arith.constant 0 : index
    %c0_7 = arith.constant 0 : index
    %3 = vector.load %arg2[%c0_5, %c0_6, %c0_7] : memref<2x32x32xf32, #tpu.memory_space<vmem>>, vector<1x32x32xf32>
    %4 = vector.shape_cast %3 : vector<1x32x32xf32> to vector<32x32xf32>
    %c0_8 = arith.constant 0 : index
    %c0_9 = arith.constant 0 : index
    %c0_10 = arith.constant 0 : index
    %5 = vector.load %arg3[%c0_8, %c0_9, %c0_10] : memref<2x32x64xf32, #tpu.memory_space<vmem>>, vector<1x32x64xf32>
    %6 = vector.shape_cast %5 : vector<1x32x64xf32> to vector<32x64xf32>
    %c0_11 = arith.constant 0 : index
    %c0_12 = arith.constant 0 : index
    %c0_13 = arith.constant 0 : index
    %7 = vector.load %arg4[%c0_11, %c0_12, %c0_13] : memref<2x32x32xf32, #tpu.memory_space<vmem>>, vector<1x32x32xf32>
    %8 = vector.shape_cast %7 : vector<1x32x32xf32> to vector<32x32xf32>
    %c0_14 = arith.constant 0 : index
    %c0_15 = arith.constant 0 : index
    %c0_16 = arith.constant 0 : index
    %9 = vector.load %arg5[%c0_14, %c0_15, %c0_16] : memref<2x32x64xf32, #tpu.memory_space<vmem>>, vector<1x32x64xf32>
    %10 = vector.shape_cast %9 : vector<1x32x64xf32> to vector<32x64xf32>
    %c0_17 = arith.constant 0 : index
    %c0_18 = arith.constant 0 : index
    %c0_19 = arith.constant 0 : index
    %11 = vector.load %arg6[%c0_17, %c0_18, %c0_19] : memref<2x64x32xf32, #tpu.memory_space<vmem>>, vector<1x64x32xf32>
    %12 = vector.shape_cast %11 : vector<1x64x32xf32> to vector<64x32xf32>
    %c0_20 = arith.constant 0 : index
    %c0_21 = arith.constant 0 : index
    %c0_22 = arith.constant 0 : index
    %13 = vector.load %arg7[%c0_20, %c0_21, %c0_22] : memref<2x16x128xf32, #tpu.memory_space<vmem>>, vector<1x1x32xf32>
    %14 = vector.shape_cast %13 : vector<1x1x32xf32> to vector<1x32xf32>
    %c0_23 = arith.constant 0 : index
    %c1 = arith.constant 1 : index
    %c0_24 = arith.constant 0 : index
    %15 = vector.load %arg7[%c0_23, %c1, %c0_24] : memref<2x16x128xf32, #tpu.memory_space<vmem>>, vector<1x1x64xf32>
    %16 = vector.shape_cast %15 : vector<1x1x64xf32> to vector<1x64xf32>
    %c0_25 = arith.constant 0 : index
    %c2 = arith.constant 2 : index
    %c0_26 = arith.constant 0 : index
    %17 = vector.load %arg7[%c0_25, %c2, %c0_26] : memref<2x16x128xf32, #tpu.memory_space<vmem>>, vector<1x1x32xf32>
    %18 = vector.shape_cast %17 : vector<1x1x32xf32> to vector<1x32xf32>
    %c0_27 = arith.constant 0 : index
    %c3 = arith.constant 3 : index
    %c0_28 = arith.constant 0 : index
    %19 = vector.load %arg7[%c0_27, %c3, %c0_28] : memref<2x16x128xf32, #tpu.memory_space<vmem>>, vector<1x1x32xf32>
    %20 = vector.shape_cast %19 : vector<1x1x32xf32> to vector<1x32xf32>
    %c0_29 = arith.constant 0 : index
    %c4 = arith.constant 4 : index
    %c0_30 = arith.constant 0 : index
    %21 = vector.load %arg7[%c0_29, %c4, %c0_30] : memref<2x16x128xf32, #tpu.memory_space<vmem>>, vector<1x1x32xf32>
    %22 = vector.shape_cast %21 : vector<1x1x32xf32> to vector<1x32xf32>
    %c0_31 = arith.constant 0 : index
    %c5 = arith.constant 5 : index
    %c0_32 = arith.constant 0 : index
    %23 = vector.load %arg7[%c0_31, %c5, %c0_32] : memref<2x16x128xf32, #tpu.memory_space<vmem>>, vector<1x1x64xf32>
    %24 = vector.shape_cast %23 : vector<1x1x64xf32> to vector<1x64xf32>
    %c0_33 = arith.constant 0 : index
    %c6 = arith.constant 6 : index
    %c0_34 = arith.constant 0 : index
    %25 = vector.load %arg7[%c0_33, %c6, %c0_34] : memref<2x16x128xf32, #tpu.memory_space<vmem>>, vector<1x1x32xf32>
    %26 = vector.shape_cast %25 : vector<1x1x32xf32> to vector<1x32xf32>
    %c0_35 = arith.constant 0 : index
    %c7 = arith.constant 7 : index
    %c0_36 = arith.constant 0 : index
    %27 = vector.load %arg7[%c0_35, %c7, %c0_36] : memref<2x16x128xf32, #tpu.memory_space<vmem>>, vector<1x1x32xf32>
    %28 = vector.shape_cast %27 : vector<1x1x32xf32> to vector<1x32xf32>
    %c0_37 = arith.constant 0 : index
    %c8 = arith.constant 8 : index
    %c0_38 = arith.constant 0 : index
    %29 = vector.load %arg7[%c0_37, %c8, %c0_38] : memref<2x16x128xf32, #tpu.memory_space<vmem>>, vector<1x1x32xf32>
    %30 = vector.shape_cast %29 : vector<1x1x32xf32> to vector<1x32xf32>
    %c0_39 = arith.constant 0 : index
    %c1_40 = arith.constant 1 : index
    %c0_41 = arith.constant 0 : index
    %c0_42 = arith.constant 0 : index
    %31 = vector.load %arg1[%c0_39, %c1_40, %c0_41, %c0_42] : memref<1x4x24x32xf32, #tpu.memory_space<vmem>>, vector<1x1x24x32xf32>
    %32 = vector.shape_cast %31 : vector<1x1x24x32xf32> to vector<24x32xf32>
    %33 = arith.addf %1, %32 : vector<24x32xf32>
    %cst = arith.constant dense<0.000000e+00> : vector<24x32xf32>
    %34 = tpu.matmul %1, %4, %cst {dimension_numbers = #tpu.dot_dimension_numbers<[1], [0], [0], [1], [0, 0, 1, 1], [], []>} : vector<24x32xf32>, vector<32x32xf32>, vector<24x32xf32> -> vector<24x32xf32>
    %35 = vector.broadcast %14 : vector<1x32xf32> to vector<24x32xf32>
    %36 = arith.addf %34, %35 : vector<24x32xf32>
    %c0_43 = arith.constant 0 : index
    %c3_44 = arith.constant 3 : index
    %c0_45 = arith.constant 0 : index
    %c0_46 = arith.constant 0 : index
    %37 = vector.load %arg1[%c0_43, %c3_44, %c0_45, %c0_46] : memref<1x4x24x32xf32, #tpu.memory_space<vmem>>, vector<1x1x24x32xf32>
    %38 = vector.shape_cast %37 : vector<1x1x24x32xf32> to vector<24x32xf32>
    %39 = arith.mulf %36, %38 : vector<24x32xf32>
    %cst_47 = arith.constant dense<0.000000e+00> : vector<24x64xf32>
    %40 = tpu.matmul %33, %6, %cst_47 {dimension_numbers = #tpu.dot_dimension_numbers<[1], [0], [0], [1], [0, 0, 1, 1], [], []>} : vector<24x32xf32>, vector<32x64xf32>, vector<24x64xf32> -> vector<24x64xf32>
    %41 = vector.broadcast %16 : vector<1x64xf32> to vector<24x64xf32>
    %42 = arith.addf %40, %41 : vector<24x64xf32>
    %43 = vector.extract_strided_slice %42 {offsets = [0, 0], sizes = [24, 32], strides = [1, 1]} : vector<24x64xf32> to vector<24x32xf32>
    %44 = vector.extract_strided_slice %42 {offsets = [0, 32], sizes = [24, 32], strides = [1, 1]} : vector<24x64xf32> to vector<24x32xf32>
    %cst_48 = arith.constant dense<0xFF800000> : vector<24xf32>
    %45 = vector.multi_reduction <maximumf>, %44, %cst_48 [1] : vector<24x32xf32> to vector<24xf32>
    %46 = vector.shape_cast %45 : vector<24xf32> to vector<24x1xf32>
    %47 = vector.broadcast %46 : vector<24x1xf32> to vector<24x32xf32>
    %48 = arith.subf %44, %47 : vector<24x32xf32>
    %49 = math.exp %48 : vector<24x32xf32>
    %c232 = arith.constant 232 : index
    %c0_49 = arith.constant 0 : index
    %50 = vector.load %arg8[%c232, %c0_49] : memref<432x192xf32, #tpu.memory_space<vmem>>, vector<32x32xf32>
    %cst_50 = arith.constant dense<0.000000e+00> : vector<24x32xf32>
    %51 = tpu.matmul %49, %50, %cst_50 {dimension_numbers = #tpu.dot_dimension_numbers<[1], [0], [0], [1], [0, 0, 1, 1], [], []>} : vector<24x32xf32>, vector<32x32xf32>, vector<24x32xf32> -> vector<24x32xf32>
    %52 = arith.divf %49, %51 : vector<24x32xf32>
    %c0_51 = arith.constant 0 : index
    %c2_52 = arith.constant 2 : index
    %c0_53 = arith.constant 0 : index
    %c0_54 = arith.constant 0 : index
    %53 = vector.load %arg1[%c0_51, %c2_52, %c0_53, %c0_54] : memref<1x4x24x32xf32, #tpu.memory_space<vmem>>, vector<1x1x24x32xf32>
    %54 = vector.shape_cast %53 : vector<1x1x24x32xf32> to vector<24x32xf32>
    %55 = arith.addf %54, %43 : vector<24x32xf32>
    %c8_55 = arith.constant 8 : index
    %c0_56 = arith.constant 0 : index
    %56 = vector.load %arg8[%c8_55, %c0_56] : memref<432x192xf32, #tpu.memory_space<vmem>>, vector<32x192xf32>
    %cst_57 = arith.constant dense<0.000000e+00> : vector<24x192xf32>
    %57 = tpu.matmul %55, %56, %cst_57 {dimension_numbers = #tpu.dot_dimension_numbers<[1], [0], [0], [1], [0, 0, 1, 1], [], []>} : vector<24x32xf32>, vector<32x192xf32>, vector<24x192xf32> -> vector<24x192xf32>
    %cst_58 = arith.constant dense<0.000000e+00> : vector<24x192xf32>
    %58 = tpu.matmul %52, %56, %cst_58 {dimension_numbers = #tpu.dot_dimension_numbers<[1], [0], [0], [1], [0, 0, 1, 1], [], []>} : vector<24x32xf32>, vector<32x192xf32>, vector<24x192xf32> -> vector<24x192xf32>
    %59 = vector.broadcast %2 : vector<1x192xf32> to vector<24x192xf32>
    %60 = arith.subf %57, %59 : vector<24x192xf32>
    %61 = math.absf %60 : vector<24x192xf32>
    %cst_59 = arith.constant 1.000000e+00 : f32
    %62 = vector.broadcast %cst_59 : f32 to vector<24x192xf32>
    %63 = arith.subf %62, %61 : vector<24x192xf32>
    %cst_60 = arith.constant 0.000000e+00 : f32
    %64 = vector.broadcast %cst_60 : f32 to vector<24x192xf32>
    %65 = arith.maximumf %63, %64 : vector<24x192xf32>
    %66 = arith.mulf %65, %58 : vector<24x192xf32>
    %c40 = arith.constant 40 : index
    %c0_61 = arith.constant 0 : index
    %67 = vector.load %arg8[%c40, %c0_61] : memref<432x192xf32, #tpu.memory_space<vmem>>, vector<192x48xf32>
    %cst_62 = arith.constant dense<0.000000e+00> : vector<24x48xf32>
    %68 = tpu.matmul %66, %67, %cst_62 {dimension_numbers = #tpu.dot_dimension_numbers<[1], [0], [0], [1], [0, 0, 1, 1], [], []>} : vector<24x192xf32>, vector<192x48xf32>, vector<24x48xf32> -> vector<24x48xf32>
    %c264 = arith.constant 264 : index
    %c0_63 = arith.constant 0 : index
    %69 = vector.load %arg8[%c264, %c0_63] : memref<432x192xf32, #tpu.memory_space<vmem>>, vector<48x32xf32>
    %c312 = arith.constant 312 : index
    %c0_64 = arith.constant 0 : index
    %70 = vector.load %arg8[%c312, %c0_64] : memref<432x192xf32, #tpu.memory_space<vmem>>, vector<48x24xf32>
    %cst_65 = arith.constant dense<0.000000e+00> : vector<48x32xf32>
    %71 = tpu.matmul %70, %39, %cst_65 {dimension_numbers = #tpu.dot_dimension_numbers<[1], [0], [0], [1], [0, 0, 1, 1], [], []>} : vector<48x24xf32>, vector<24x32xf32>, vector<48x32xf32> -> vector<48x32xf32>
    %72 = arith.mulf %71, %69 : vector<48x32xf32>
    %c408 = arith.constant 408 : index
    %c0_66 = arith.constant 0 : index
    %73 = vector.load %arg8[%c408, %c0_66] : memref<432x192xf32, #tpu.memory_space<vmem>>, vector<24x1xf32>
    %74 = vector.broadcast %73 : vector<24x1xf32> to vector<24x48xf32>
    %75 = arith.mulf %68, %74 : vector<24x48xf32>
    %cst_67 = arith.constant dense<0.000000e+00> : vector<24x32xf32>
    %76 = tpu.matmul %75, %72, %cst_67 {dimension_numbers = #tpu.dot_dimension_numbers<[1], [0], [0], [1], [0, 0, 1, 1], [], []>} : vector<24x48xf32>, vector<48x32xf32>, vector<24x32xf32> -> vector<24x32xf32>
    %c360 = arith.constant 360 : index
    %c0_68 = arith.constant 0 : index
    %77 = vector.load %arg8[%c360, %c0_68] : memref<432x192xf32, #tpu.memory_space<vmem>>, vector<48x24xf32>
    %cst_69 = arith.constant dense<0.000000e+00> : vector<48x32xf32>
    %78 = tpu.matmul %77, %39, %cst_69 {dimension_numbers = #tpu.dot_dimension_numbers<[1], [0], [0], [1], [0, 0, 1, 1], [], []>} : vector<48x24xf32>, vector<24x32xf32>, vector<48x32xf32> -> vector<48x32xf32>
    %79 = arith.mulf %78, %69 : vector<48x32xf32>
    %c408_70 = arith.constant 408 : index
    %c1_71 = arith.constant 1 : index
    %80 = vector.load %arg8[%c408_70, %c1_71] : memref<432x192xf32, #tpu.memory_space<vmem>>, vector<24x1xf32>
    %81 = vector.broadcast %80 : vector<24x1xf32> to vector<24x48xf32>
    %82 = arith.mulf %68, %81 : vector<24x48xf32>
    %cst_72 = arith.constant dense<0.000000e+00> : vector<24x32xf32>
    %83 = tpu.matmul %82, %79, %cst_72 {dimension_numbers = #tpu.dot_dimension_numbers<[1], [0], [0], [1], [0, 0, 1, 1], [], []>} : vector<24x48xf32>, vector<48x32xf32>, vector<24x32xf32> -> vector<24x32xf32>
    %84 = arith.addf %76, %83 : vector<24x32xf32>
    %cst_73 = arith.constant dense<0.000000e+00> : vector<24x32xf32>
    %85 = tpu.matmul %84, %8, %cst_73 {dimension_numbers = #tpu.dot_dimension_numbers<[1], [0], [0], [1], [0, 0, 1, 1], [], []>} : vector<24x32xf32>, vector<32x32xf32>, vector<24x32xf32> -> vector<24x32xf32>
    %86 = vector.broadcast %18 : vector<1x32xf32> to vector<24x32xf32>
    %87 = arith.addf %85, %86 : vector<24x32xf32>
    %88 = arith.addf %1, %87 : vector<24x32xf32>
    %cst_74 = arith.constant dense<0.000000e+00> : vector<24xf32>
    %89 = vector.multi_reduction <add>, %88, %cst_74 [1] : vector<24x32xf32> to vector<24xf32>
    %90 = vector.shape_cast %89 : vector<24xf32> to vector<24x1xf32>
    %cst_75 = arith.constant 3.200000e+01 : f32
    %91 = vector.broadcast %cst_75 : f32 to vector<24x1xf32>
    %92 = arith.divf %90, %91 : vector<24x1xf32>
    %93 = vector.broadcast %92 : vector<24x1xf32> to vector<24x32xf32>
    %94 = arith.subf %88, %93 : vector<24x32xf32>
    %95 = arith.mulf %94, %94 : vector<24x32xf32>
    %cst_76 = arith.constant dense<0.000000e+00> : vector<24xf32>
    %96 = vector.multi_reduction <add>, %95, %cst_76 [1] : vector<24x32xf32> to vector<24xf32>
    %97 = vector.shape_cast %96 : vector<24xf32> to vector<24x1xf32>
    %cst_77 = arith.constant 3.200000e+01 : f32
    %98 = vector.broadcast %cst_77 : f32 to vector<24x1xf32>
    %99 = arith.divf %97, %98 : vector<24x1xf32>
    %100 = vector.broadcast %92 : vector<24x1xf32> to vector<24x32xf32>
    %101 = arith.subf %88, %100 : vector<24x32xf32>
    %cst_78 = arith.constant 9.99999974E-6 : f32
    %102 = vector.broadcast %cst_78 : f32 to vector<24x1xf32>
    %103 = arith.addf %99, %102 : vector<24x1xf32>
    %104 = math.rsqrt %103 : vector<24x1xf32>
    %105 = vector.broadcast %104 : vector<24x1xf32> to vector<24x32xf32>
    %106 = arith.mulf %101, %105 : vector<24x32xf32>
    %107 = vector.broadcast %20 : vector<1x32xf32> to vector<24x32xf32>
    %108 = arith.mulf %106, %107 : vector<24x32xf32>
    %109 = vector.broadcast %22 : vector<1x32xf32> to vector<24x32xf32>
    %110 = arith.addf %108, %109 : vector<24x32xf32>
    %cst_79 = arith.constant dense<0.000000e+00> : vector<24x64xf32>
    %111 = tpu.matmul %110, %10, %cst_79 {dimension_numbers = #tpu.dot_dimension_numbers<[1], [0], [0], [1], [0, 0, 1, 1], [], []>} : vector<24x32xf32>, vector<32x64xf32>, vector<24x64xf32> -> vector<24x64xf32>
    %112 = vector.broadcast %24 : vector<1x64xf32> to vector<24x64xf32>
    %113 = arith.addf %111, %112 : vector<24x64xf32>
    %cst_80 = arith.constant 0.000000e+00 : f32
    %114 = vector.broadcast %cst_80 : f32 to vector<24x64xf32>
    %115 = arith.maximumf %113, %114 : vector<24x64xf32>
    %cst_81 = arith.constant dense<0.000000e+00> : vector<24x32xf32>
    %116 = tpu.matmul %115, %12, %cst_81 {dimension_numbers = #tpu.dot_dimension_numbers<[1], [0], [0], [1], [0, 0, 1, 1], [], []>} : vector<24x64xf32>, vector<64x32xf32>, vector<24x32xf32> -> vector<24x32xf32>
    %117 = vector.broadcast %26 : vector<1x32xf32> to vector<24x32xf32>
    %118 = arith.addf %116, %117 : vector<24x32xf32>
    %119 = arith.addf %110, %118 : vector<24x32xf32>
    %cst_82 = arith.constant dense<0.000000e+00> : vector<24xf32>
    %120 = vector.multi_reduction <add>, %119, %cst_82 [1] : vector<24x32xf32> to vector<24xf32>
    %121 = vector.shape_cast %120 : vector<24xf32> to vector<24x1xf32>
    %cst_83 = arith.constant 3.200000e+01 : f32
    %122 = vector.broadcast %cst_83 : f32 to vector<24x1xf32>
    %123 = arith.divf %121, %122 : vector<24x1xf32>
    %124 = vector.broadcast %123 : vector<24x1xf32> to vector<24x32xf32>
    %125 = arith.subf %119, %124 : vector<24x32xf32>
    %126 = arith.mulf %125, %125 : vector<24x32xf32>
    %cst_84 = arith.constant dense<0.000000e+00> : vector<24xf32>
    %127 = vector.multi_reduction <add>, %126, %cst_84 [1] : vector<24x32xf32> to vector<24xf32>
    %128 = vector.shape_cast %127 : vector<24xf32> to vector<24x1xf32>
    %cst_85 = arith.constant 3.200000e+01 : f32
    %129 = vector.broadcast %cst_85 : f32 to vector<24x1xf32>
    %130 = arith.divf %128, %129 : vector<24x1xf32>
    %131 = vector.broadcast %123 : vector<24x1xf32> to vector<24x32xf32>
    %132 = arith.subf %119, %131 : vector<24x32xf32>
    %cst_86 = arith.constant 9.99999974E-6 : f32
    %133 = vector.broadcast %cst_86 : f32 to vector<24x1xf32>
    %134 = arith.addf %130, %133 : vector<24x1xf32>
    %135 = math.rsqrt %134 : vector<24x1xf32>
    %136 = vector.broadcast %135 : vector<24x1xf32> to vector<24x32xf32>
    %137 = arith.mulf %132, %136 : vector<24x32xf32>
    %138 = vector.broadcast %28 : vector<1x32xf32> to vector<24x32xf32>
    %139 = arith.mulf %137, %138 : vector<24x32xf32>
    %140 = vector.broadcast %30 : vector<1x32xf32> to vector<24x32xf32>
    %141 = arith.addf %139, %140 : vector<24x32xf32>
    %c1_87 = arith.constant 1 : index
    %c0_88 = arith.constant 0 : index
    %c0_89 = arith.constant 0 : index
    %142 = vector.load %arg2[%c1_87, %c0_88, %c0_89] : memref<2x32x32xf32, #tpu.memory_space<vmem>>, vector<1x32x32xf32>
    %143 = vector.shape_cast %142 : vector<1x32x32xf32> to vector<32x32xf32>
    %c1_90 = arith.constant 1 : index
    %c0_91 = arith.constant 0 : index
    %c0_92 = arith.constant 0 : index
    %144 = vector.load %arg3[%c1_90, %c0_91, %c0_92] : memref<2x32x64xf32, #tpu.memory_space<vmem>>, vector<1x32x64xf32>
    %145 = vector.shape_cast %144 : vector<1x32x64xf32> to vector<32x64xf32>
    %c1_93 = arith.constant 1 : index
    %c0_94 = arith.constant 0 : index
    %c0_95 = arith.constant 0 : index
    %146 = vector.load %arg4[%c1_93, %c0_94, %c0_95] : memref<2x32x32xf32, #tpu.memory_space<vmem>>, vector<1x32x32xf32>
    %147 = vector.shape_cast %146 : vector<1x32x32xf32> to vector<32x32xf32>
    %c1_96 = arith.constant 1 : index
    %c0_97 = arith.constant 0 : index
    %c0_98 = arith.constant 0 : index
    %148 = vector.load %arg5[%c1_96, %c0_97, %c0_98] : memref<2x32x64xf32, #tpu.memory_space<vmem>>, vector<1x32x64xf32>
    %149 = vector.shape_cast %148 : vector<1x32x64xf32> to vector<32x64xf32>
    %c1_99 = arith.constant 1 : index
    %c0_100 = arith.constant 0 : index
    %c0_101 = arith.constant 0 : index
    %150 = vector.load %arg6[%c1_99, %c0_100, %c0_101] : memref<2x64x32xf32, #tpu.memory_space<vmem>>, vector<1x64x32xf32>
    %151 = vector.shape_cast %150 : vector<1x64x32xf32> to vector<64x32xf32>
    %c1_102 = arith.constant 1 : index
    %c0_103 = arith.constant 0 : index
    %c0_104 = arith.constant 0 : index
    %152 = vector.load %arg7[%c1_102, %c0_103, %c0_104] : memref<2x16x128xf32, #tpu.memory_space<vmem>>, vector<1x1x32xf32>
    %153 = vector.shape_cast %152 : vector<1x1x32xf32> to vector<1x32xf32>
    %c1_105 = arith.constant 1 : index
    %c1_106 = arith.constant 1 : index
    %c0_107 = arith.constant 0 : index
    %154 = vector.load %arg7[%c1_105, %c1_106, %c0_107] : memref<2x16x128xf32, #tpu.memory_space<vmem>>, vector<1x1x64xf32>
    %155 = vector.shape_cast %154 : vector<1x1x64xf32> to vector<1x64xf32>
    %c1_108 = arith.constant 1 : index
    %c2_109 = arith.constant 2 : index
    %c0_110 = arith.constant 0 : index
    %156 = vector.load %arg7[%c1_108, %c2_109, %c0_110] : memref<2x16x128xf32, #tpu.memory_space<vmem>>, vector<1x1x32xf32>
    %157 = vector.shape_cast %156 : vector<1x1x32xf32> to vector<1x32xf32>
    %c1_111 = arith.constant 1 : index
    %c3_112 = arith.constant 3 : index
    %c0_113 = arith.constant 0 : index
    %158 = vector.load %arg7[%c1_111, %c3_112, %c0_113] : memref<2x16x128xf32, #tpu.memory_space<vmem>>, vector<1x1x32xf32>
    %159 = vector.shape_cast %158 : vector<1x1x32xf32> to vector<1x32xf32>
    %c1_114 = arith.constant 1 : index
    %c4_115 = arith.constant 4 : index
    %c0_116 = arith.constant 0 : index
    %160 = vector.load %arg7[%c1_114, %c4_115, %c0_116] : memref<2x16x128xf32, #tpu.memory_space<vmem>>, vector<1x1x32xf32>
    %161 = vector.shape_cast %160 : vector<1x1x32xf32> to vector<1x32xf32>
    %c1_117 = arith.constant 1 : index
    %c5_118 = arith.constant 5 : index
    %c0_119 = arith.constant 0 : index
    %162 = vector.load %arg7[%c1_117, %c5_118, %c0_119] : memref<2x16x128xf32, #tpu.memory_space<vmem>>, vector<1x1x64xf32>
    %163 = vector.shape_cast %162 : vector<1x1x64xf32> to vector<1x64xf32>
    %c1_120 = arith.constant 1 : index
    %c6_121 = arith.constant 6 : index
    %c0_122 = arith.constant 0 : index
    %164 = vector.load %arg7[%c1_120, %c6_121, %c0_122] : memref<2x16x128xf32, #tpu.memory_space<vmem>>, vector<1x1x32xf32>
    %165 = vector.shape_cast %164 : vector<1x1x32xf32> to vector<1x32xf32>
    %c1_123 = arith.constant 1 : index
    %c7_124 = arith.constant 7 : index
    %c0_125 = arith.constant 0 : index
    %166 = vector.load %arg7[%c1_123, %c7_124, %c0_125] : memref<2x16x128xf32, #tpu.memory_space<vmem>>, vector<1x1x32xf32>
    %167 = vector.shape_cast %166 : vector<1x1x32xf32> to vector<1x32xf32>
    %c1_126 = arith.constant 1 : index
    %c8_127 = arith.constant 8 : index
    %c0_128 = arith.constant 0 : index
    %168 = vector.load %arg7[%c1_126, %c8_127, %c0_128] : memref<2x16x128xf32, #tpu.memory_space<vmem>>, vector<1x1x32xf32>
    %169 = vector.shape_cast %168 : vector<1x1x32xf32> to vector<1x32xf32>
    %c0_129 = arith.constant 0 : index
    %c1_130 = arith.constant 1 : index
    %c0_131 = arith.constant 0 : index
    %c0_132 = arith.constant 0 : index
    %170 = vector.load %arg1[%c0_129, %c1_130, %c0_131, %c0_132] : memref<1x4x24x32xf32, #tpu.memory_space<vmem>>, vector<1x1x24x32xf32>
    %171 = vector.shape_cast %170 : vector<1x1x24x32xf32> to vector<24x32xf32>
    %172 = arith.addf %141, %171 : vector<24x32xf32>
    %cst_133 = arith.constant dense<0.000000e+00> : vector<24x32xf32>
    %173 = tpu.matmul %141, %143, %cst_133 {dimension_numbers = #tpu.dot_dimension_numbers<[1], [0], [0], [1], [0, 0, 1, 1], [], []>} : vector<24x32xf32>, vector<32x32xf32>, vector<24x32xf32> -> vector<24x32xf32>
    %174 = vector.broadcast %153 : vector<1x32xf32> to vector<24x32xf32>
    %175 = arith.addf %173, %174 : vector<24x32xf32>
    %c0_134 = arith.constant 0 : index
    %c3_135 = arith.constant 3 : index
    %c0_136 = arith.constant 0 : index
    %c0_137 = arith.constant 0 : index
    %176 = vector.load %arg1[%c0_134, %c3_135, %c0_136, %c0_137] : memref<1x4x24x32xf32, #tpu.memory_space<vmem>>, vector<1x1x24x32xf32>
    %177 = vector.shape_cast %176 : vector<1x1x24x32xf32> to vector<24x32xf32>
    %178 = arith.mulf %175, %177 : vector<24x32xf32>
    %cst_138 = arith.constant dense<0.000000e+00> : vector<24x64xf32>
    %179 = tpu.matmul %172, %145, %cst_138 {dimension_numbers = #tpu.dot_dimension_numbers<[1], [0], [0], [1], [0, 0, 1, 1], [], []>} : vector<24x32xf32>, vector<32x64xf32>, vector<24x64xf32> -> vector<24x64xf32>
    %180 = vector.broadcast %155 : vector<1x64xf32> to vector<24x64xf32>
    %181 = arith.addf %179, %180 : vector<24x64xf32>
    %182 = vector.extract_strided_slice %181 {offsets = [0, 0], sizes = [24, 32], strides = [1, 1]} : vector<24x64xf32> to vector<24x32xf32>
    %183 = vector.extract_strided_slice %181 {offsets = [0, 32], sizes = [24, 32], strides = [1, 1]} : vector<24x64xf32> to vector<24x32xf32>
    %cst_139 = arith.constant dense<0xFF800000> : vector<24xf32>
    %184 = vector.multi_reduction <maximumf>, %183, %cst_139 [1] : vector<24x32xf32> to vector<24xf32>
    %185 = vector.shape_cast %184 : vector<24xf32> to vector<24x1xf32>
    %186 = vector.broadcast %185 : vector<24x1xf32> to vector<24x32xf32>
    %187 = arith.subf %183, %186 : vector<24x32xf32>
    %188 = math.exp %187 : vector<24x32xf32>
    %c232_140 = arith.constant 232 : index
    %c0_141 = arith.constant 0 : index
    %189 = vector.load %arg8[%c232_140, %c0_141] : memref<432x192xf32, #tpu.memory_space<vmem>>, vector<32x32xf32>
    %cst_142 = arith.constant dense<0.000000e+00> : vector<24x32xf32>
    %190 = tpu.matmul %188, %189, %cst_142 {dimension_numbers = #tpu.dot_dimension_numbers<[1], [0], [0], [1], [0, 0, 1, 1], [], []>} : vector<24x32xf32>, vector<32x32xf32>, vector<24x32xf32> -> vector<24x32xf32>
    %191 = arith.divf %188, %190 : vector<24x32xf32>
    %c0_143 = arith.constant 0 : index
    %c2_144 = arith.constant 2 : index
    %c0_145 = arith.constant 0 : index
    %c0_146 = arith.constant 0 : index
    %192 = vector.load %arg1[%c0_143, %c2_144, %c0_145, %c0_146] : memref<1x4x24x32xf32, #tpu.memory_space<vmem>>, vector<1x1x24x32xf32>
    %193 = vector.shape_cast %192 : vector<1x1x24x32xf32> to vector<24x32xf32>
    %194 = arith.addf %193, %182 : vector<24x32xf32>
    %c8_147 = arith.constant 8 : index
    %c0_148 = arith.constant 0 : index
    %195 = vector.load %arg8[%c8_147, %c0_148] : memref<432x192xf32, #tpu.memory_space<vmem>>, vector<32x192xf32>
    %cst_149 = arith.constant dense<0.000000e+00> : vector<24x192xf32>
    %196 = tpu.matmul %194, %195, %cst_149 {dimension_numbers = #tpu.dot_dimension_numbers<[1], [0], [0], [1], [0, 0, 1, 1], [], []>} : vector<24x32xf32>, vector<32x192xf32>, vector<24x192xf32> -> vector<24x192xf32>
    %cst_150 = arith.constant dense<0.000000e+00> : vector<24x192xf32>
    %197 = tpu.matmul %191, %195, %cst_150 {dimension_numbers = #tpu.dot_dimension_numbers<[1], [0], [0], [1], [0, 0, 1, 1], [], []>} : vector<24x32xf32>, vector<32x192xf32>, vector<24x192xf32> -> vector<24x192xf32>
    %198 = vector.broadcast %2 : vector<1x192xf32> to vector<24x192xf32>
    %199 = arith.subf %196, %198 : vector<24x192xf32>
    %200 = math.absf %199 : vector<24x192xf32>
    %cst_151 = arith.constant 1.000000e+00 : f32
    %201 = vector.broadcast %cst_151 : f32 to vector<24x192xf32>
    %202 = arith.subf %201, %200 : vector<24x192xf32>
    %cst_152 = arith.constant 0.000000e+00 : f32
    %203 = vector.broadcast %cst_152 : f32 to vector<24x192xf32>
    %204 = arith.maximumf %202, %203 : vector<24x192xf32>
    %205 = arith.mulf %204, %197 : vector<24x192xf32>
    %c40_153 = arith.constant 40 : index
    %c0_154 = arith.constant 0 : index
    %206 = vector.load %arg8[%c40_153, %c0_154] : memref<432x192xf32, #tpu.memory_space<vmem>>, vector<192x48xf32>
    %cst_155 = arith.constant dense<0.000000e+00> : vector<24x48xf32>
    %207 = tpu.matmul %205, %206, %cst_155 {dimension_numbers = #tpu.dot_dimension_numbers<[1], [0], [0], [1], [0, 0, 1, 1], [], []>} : vector<24x192xf32>, vector<192x48xf32>, vector<24x48xf32> -> vector<24x48xf32>
    %c264_156 = arith.constant 264 : index
    %c0_157 = arith.constant 0 : index
    %208 = vector.load %arg8[%c264_156, %c0_157] : memref<432x192xf32, #tpu.memory_space<vmem>>, vector<48x32xf32>
    %c312_158 = arith.constant 312 : index
    %c0_159 = arith.constant 0 : index
    %209 = vector.load %arg8[%c312_158, %c0_159] : memref<432x192xf32, #tpu.memory_space<vmem>>, vector<48x24xf32>
    %cst_160 = arith.constant dense<0.000000e+00> : vector<48x32xf32>
    %210 = tpu.matmul %209, %178, %cst_160 {dimension_numbers = #tpu.dot_dimension_numbers<[1], [0], [0], [1], [0, 0, 1, 1], [], []>} : vector<48x24xf32>, vector<24x32xf32>, vector<48x32xf32> -> vector<48x32xf32>
    %211 = arith.mulf %210, %208 : vector<48x32xf32>
    %c408_161 = arith.constant 408 : index
    %c0_162 = arith.constant 0 : index
    %212 = vector.load %arg8[%c408_161, %c0_162] : memref<432x192xf32, #tpu.memory_space<vmem>>, vector<24x1xf32>
    %213 = vector.broadcast %212 : vector<24x1xf32> to vector<24x48xf32>
    %214 = arith.mulf %207, %213 : vector<24x48xf32>
    %cst_163 = arith.constant dense<0.000000e+00> : vector<24x32xf32>
    %215 = tpu.matmul %214, %211, %cst_163 {dimension_numbers = #tpu.dot_dimension_numbers<[1], [0], [0], [1], [0, 0, 1, 1], [], []>} : vector<24x48xf32>, vector<48x32xf32>, vector<24x32xf32> -> vector<24x32xf32>
    %c360_164 = arith.constant 360 : index
    %c0_165 = arith.constant 0 : index
    %216 = vector.load %arg8[%c360_164, %c0_165] : memref<432x192xf32, #tpu.memory_space<vmem>>, vector<48x24xf32>
    %cst_166 = arith.constant dense<0.000000e+00> : vector<48x32xf32>
    %217 = tpu.matmul %216, %178, %cst_166 {dimension_numbers = #tpu.dot_dimension_numbers<[1], [0], [0], [1], [0, 0, 1, 1], [], []>} : vector<48x24xf32>, vector<24x32xf32>, vector<48x32xf32> -> vector<48x32xf32>
    %218 = arith.mulf %217, %208 : vector<48x32xf32>
    %c408_167 = arith.constant 408 : index
    %c1_168 = arith.constant 1 : index
    %219 = vector.load %arg8[%c408_167, %c1_168] : memref<432x192xf32, #tpu.memory_space<vmem>>, vector<24x1xf32>
    %220 = vector.broadcast %219 : vector<24x1xf32> to vector<24x48xf32>
    %221 = arith.mulf %207, %220 : vector<24x48xf32>
    %cst_169 = arith.constant dense<0.000000e+00> : vector<24x32xf32>
    %222 = tpu.matmul %221, %218, %cst_169 {dimension_numbers = #tpu.dot_dimension_numbers<[1], [0], [0], [1], [0, 0, 1, 1], [], []>} : vector<24x48xf32>, vector<48x32xf32>, vector<24x32xf32> -> vector<24x32xf32>
    %223 = arith.addf %215, %222 : vector<24x32xf32>
    %cst_170 = arith.constant dense<0.000000e+00> : vector<24x32xf32>
    %224 = tpu.matmul %223, %147, %cst_170 {dimension_numbers = #tpu.dot_dimension_numbers<[1], [0], [0], [1], [0, 0, 1, 1], [], []>} : vector<24x32xf32>, vector<32x32xf32>, vector<24x32xf32> -> vector<24x32xf32>
    %225 = vector.broadcast %157 : vector<1x32xf32> to vector<24x32xf32>
    %226 = arith.addf %224, %225 : vector<24x32xf32>
    %227 = arith.addf %141, %226 : vector<24x32xf32>
    %cst_171 = arith.constant dense<0.000000e+00> : vector<24xf32>
    %228 = vector.multi_reduction <add>, %227, %cst_171 [1] : vector<24x32xf32> to vector<24xf32>
    %229 = vector.shape_cast %228 : vector<24xf32> to vector<24x1xf32>
    %cst_172 = arith.constant 3.200000e+01 : f32
    %230 = vector.broadcast %cst_172 : f32 to vector<24x1xf32>
    %231 = arith.divf %229, %230 : vector<24x1xf32>
    %232 = vector.broadcast %231 : vector<24x1xf32> to vector<24x32xf32>
    %233 = arith.subf %227, %232 : vector<24x32xf32>
    %234 = arith.mulf %233, %233 : vector<24x32xf32>
    %cst_173 = arith.constant dense<0.000000e+00> : vector<24xf32>
    %235 = vector.multi_reduction <add>, %234, %cst_173 [1] : vector<24x32xf32> to vector<24xf32>
    %236 = vector.shape_cast %235 : vector<24xf32> to vector<24x1xf32>
    %cst_174 = arith.constant 3.200000e+01 : f32
    %237 = vector.broadcast %cst_174 : f32 to vector<24x1xf32>
    %238 = arith.divf %236, %237 : vector<24x1xf32>
    %239 = vector.broadcast %231 : vector<24x1xf32> to vector<24x32xf32>
    %240 = arith.subf %227, %239 : vector<24x32xf32>
    %cst_175 = arith.constant 9.99999974E-6 : f32
    %241 = vector.broadcast %cst_175 : f32 to vector<24x1xf32>
    %242 = arith.addf %238, %241 : vector<24x1xf32>
    %243 = math.rsqrt %242 : vector<24x1xf32>
    %244 = vector.broadcast %243 : vector<24x1xf32> to vector<24x32xf32>
    %245 = arith.mulf %240, %244 : vector<24x32xf32>
    %246 = vector.broadcast %159 : vector<1x32xf32> to vector<24x32xf32>
    %247 = arith.mulf %245, %246 : vector<24x32xf32>
    %248 = vector.broadcast %161 : vector<1x32xf32> to vector<24x32xf32>
    %249 = arith.addf %247, %248 : vector<24x32xf32>
    %cst_176 = arith.constant dense<0.000000e+00> : vector<24x64xf32>
    %250 = tpu.matmul %249, %149, %cst_176 {dimension_numbers = #tpu.dot_dimension_numbers<[1], [0], [0], [1], [0, 0, 1, 1], [], []>} : vector<24x32xf32>, vector<32x64xf32>, vector<24x64xf32> -> vector<24x64xf32>
    %251 = vector.broadcast %163 : vector<1x64xf32> to vector<24x64xf32>
    %252 = arith.addf %250, %251 : vector<24x64xf32>
    %cst_177 = arith.constant 0.000000e+00 : f32
    %253 = vector.broadcast %cst_177 : f32 to vector<24x64xf32>
    %254 = arith.maximumf %252, %253 : vector<24x64xf32>
    %cst_178 = arith.constant dense<0.000000e+00> : vector<24x32xf32>
    %255 = tpu.matmul %254, %151, %cst_178 {dimension_numbers = #tpu.dot_dimension_numbers<[1], [0], [0], [1], [0, 0, 1, 1], [], []>} : vector<24x64xf32>, vector<64x32xf32>, vector<24x32xf32> -> vector<24x32xf32>
    %256 = vector.broadcast %165 : vector<1x32xf32> to vector<24x32xf32>
    %257 = arith.addf %255, %256 : vector<24x32xf32>
    %258 = arith.addf %249, %257 : vector<24x32xf32>
    %cst_179 = arith.constant dense<0.000000e+00> : vector<24xf32>
    %259 = vector.multi_reduction <add>, %258, %cst_179 [1] : vector<24x32xf32> to vector<24xf32>
    %260 = vector.shape_cast %259 : vector<24xf32> to vector<24x1xf32>
    %cst_180 = arith.constant 3.200000e+01 : f32
    %261 = vector.broadcast %cst_180 : f32 to vector<24x1xf32>
    %262 = arith.divf %260, %261 : vector<24x1xf32>
    %263 = vector.broadcast %262 : vector<24x1xf32> to vector<24x32xf32>
    %264 = arith.subf %258, %263 : vector<24x32xf32>
    %265 = arith.mulf %264, %264 : vector<24x32xf32>
    %cst_181 = arith.constant dense<0.000000e+00> : vector<24xf32>
    %266 = vector.multi_reduction <add>, %265, %cst_181 [1] : vector<24x32xf32> to vector<24xf32>
    %267 = vector.shape_cast %266 : vector<24xf32> to vector<24x1xf32>
    %cst_182 = arith.constant 3.200000e+01 : f32
    %268 = vector.broadcast %cst_182 : f32 to vector<24x1xf32>
    %269 = arith.divf %267, %268 : vector<24x1xf32>
    %270 = vector.broadcast %262 : vector<24x1xf32> to vector<24x32xf32>
    %271 = arith.subf %258, %270 : vector<24x32xf32>
    %cst_183 = arith.constant 9.99999974E-6 : f32
    %272 = vector.broadcast %cst_183 : f32 to vector<24x1xf32>
    %273 = arith.addf %269, %272 : vector<24x1xf32>
    %274 = math.rsqrt %273 : vector<24x1xf32>
    %275 = vector.broadcast %274 : vector<24x1xf32> to vector<24x32xf32>
    %276 = arith.mulf %271, %275 : vector<24x32xf32>
    %277 = vector.broadcast %167 : vector<1x32xf32> to vector<24x32xf32>
    %278 = arith.mulf %276, %277 : vector<24x32xf32>
    %279 = vector.broadcast %169 : vector<1x32xf32> to vector<24x32xf32>
    %280 = arith.addf %278, %279 : vector<24x32xf32>
    %c0_184 = arith.constant 0 : index
    %c0_185 = arith.constant 0 : index
    %c0_186 = arith.constant 0 : index
    %281 = vector.load %arg9[%c0_184, %c0_185, %c0_186] : memref<1x24x32xf32, #tpu.memory_space<vmem>>, vector<1x24x32xf32>
    %282 = vector.shape_cast %281 : vector<1x24x32xf32> to vector<24x32xf32>
    %283 = vector.shape_cast %280 : vector<24x32xf32> to vector<1x24x32xf32>
    tpu.vector_store %arg9[%c0_184, %c0_185, %c0_186], %283 {strides = array<i32>} : memref<1x24x32xf32, #tpu.memory_space<vmem>>, vector<1x24x32xf32>,
    return
  }
  func.func @transform_0(%arg0: i32) -> (i32, i32, i32, i32) {
    %c0_i32 = arith.constant 0 : i32
    %c0_i32_0 = arith.constant 0 : i32
    %c0_i32_1 = arith.constant 0 : i32
    %c0_i32_2 = arith.constant 0 : i32
    return %arg0, %c0_i32, %c0_i32_0, %c0_i32_1 : i32, i32, i32, i32
  }
  func.func @transform_1(%arg0: i32) -> (i32, i32, i32) {
    %c0_i32 = arith.constant 0 : i32
    %c0_i32_0 = arith.constant 0 : i32
    %c0_i32_1 = arith.constant 0 : i32
    %c0_i32_2 = arith.constant 0 : i32
    return %c0_i32, %c0_i32_0, %c0_i32_1 : i32, i32, i32
  }
  func.func @transform_2(%arg0: i32) -> (i32, i32, i32) {
    %c0_i32 = arith.constant 0 : i32
    %c0_i32_0 = arith.constant 0 : i32
    %c0_i32_1 = arith.constant 0 : i32
    %c0_i32_2 = arith.constant 0 : i32
    return %c0_i32, %c0_i32_0, %c0_i32_1 : i32, i32, i32
  }
  func.func @transform_3(%arg0: i32) -> (i32, i32, i32) {
    %c0_i32 = arith.constant 0 : i32
    %c0_i32_0 = arith.constant 0 : i32
    %c0_i32_1 = arith.constant 0 : i32
    %c0_i32_2 = arith.constant 0 : i32
    return %c0_i32, %c0_i32_0, %c0_i32_1 : i32, i32, i32
  }
  func.func @transform_4(%arg0: i32) -> (i32, i32, i32) {
    %c0_i32 = arith.constant 0 : i32
    %c0_i32_0 = arith.constant 0 : i32
    %c0_i32_1 = arith.constant 0 : i32
    %c0_i32_2 = arith.constant 0 : i32
    return %c0_i32, %c0_i32_0, %c0_i32_1 : i32, i32, i32
  }
  func.func @transform_5(%arg0: i32) -> (i32, i32, i32) {
    %c0_i32 = arith.constant 0 : i32
    %c0_i32_0 = arith.constant 0 : i32
    %c0_i32_1 = arith.constant 0 : i32
    %c0_i32_2 = arith.constant 0 : i32
    return %c0_i32, %c0_i32_0, %c0_i32_1 : i32, i32, i32
  }
  func.func @transform_6(%arg0: i32) -> (i32, i32, i32) {
    %c0_i32 = arith.constant 0 : i32
    %c0_i32_0 = arith.constant 0 : i32
    %c0_i32_1 = arith.constant 0 : i32
    %c0_i32_2 = arith.constant 0 : i32
    return %c0_i32, %c0_i32_0, %c0_i32_1 : i32, i32, i32
  }
  func.func @transform_7(%arg0: i32) -> (i32, i32) {
    %c0_i32 = arith.constant 0 : i32
    %c0_i32_0 = arith.constant 0 : i32
    %c0_i32_1 = arith.constant 0 : i32
    return %c0_i32, %c0_i32_0 : i32, i32
  }
  func.func @transform_8(%arg0: i32) -> (i32, i32, i32) {
    %c0_i32 = arith.constant 0 : i32
    %c0_i32_0 = arith.constant 0 : i32
    %c0_i32_1 = arith.constant 0 : i32
    return %arg0, %c0_i32, %c0_i32_0 : i32, i32, i32
  }
}

</mosaic_0001>

<llo_original>
// kernel: tpu_custom_call.1
$region0: #{tpu_custom_call.1}
  #allocation0 [shape = 'u32[]', space=smem, size = 0x4, offset = 0x4, fixed_abs, tag = 'smem constant byte address 0x4 - core index']
  #allocation1 [shape = 'u32[144,128]{1,0:T(1,128)}', space=vmem, size = 0x12000, scoped, tag = 'internal scratch']
  %s0 = inlined_call_operand.vmem [shape: f32[1,4,24,32], index: 0, kind: input, shape index: {}]
  %s1 = inlined_call_operand.vmem [shape: f32[2,32,32], index: 1, kind: input, shape index: {}]
  %s2 = inlined_call_operand.vmem [shape: f32[2,32,64], index: 2, kind: input, shape index: {}]
  %s3 = inlined_call_operand.vmem [shape: f32[2,32,32], index: 3, kind: input, shape index: {}]
  %s4 = inlined_call_operand.vmem [shape: f32[2,32,64], index: 4, kind: input, shape index: {}]
  %s5 = inlined_call_operand.vmem [shape: f32[2,64,32], index: 5, kind: input, shape index: {}]
  %s6 = inlined_call_operand.vmem [shape: f32[2,16,128], index: 6, kind: input, shape index: {}]
  %s7 = inlined_call_operand.vmem [shape: f32[432,192], index: 7, kind: input, shape index: {}]
  %s8 = inlined_call_operand.hbm [shape: f32[1,24,32], index: 8, kind: output, shape index: {}]
  %s9 = sld [smem:[#allocation0]]
  $region42: #{tpu_custom_call.1} parent=0
    _
  %s11 = ssub.s32 1, %s9
  %s12 = scalar_select 0, %s11, %s9
  $region1: #{tpu_custom_call.1} parent=0
    #allocation2 [shape = 'u8[12288]{0}', space=vmem, size = 0x3000, scoped, tag = 'output window, operand 0, single buffered']
    #allocation3 [shape = 's32[1]{0}', space=sflag, size = 0x4, scoped, tag = 'scoped memory for tpu_custom_call.1']
    %13 = vsyncpa [#allocation3], 0
    // Predicated region
    $region2: #{tpu_custom_call.1} parent=1 // pred_check
      _
    $region3: #{tpu_custom_call.1} parent=1 // pred_check_branch
      %15 = sbr.rel (0) target = $region5
    $region4: #{tpu_custom_call.1} parent=1 // pred_region
      _
    $region5: #{tpu_custom_call.1} parent=1 // pred_fallthru
      _
    // Predicated region
    $region6: #{tpu_custom_call.1} parent=1 // pred_check
      _
    $region7: #{tpu_custom_call.1} parent=1 // pred_check_branch
      %17 = sbr.rel (0) target = $region9
    $region8: #{tpu_custom_call.1} parent=1 // pred_region
      _
    $region9: #{tpu_custom_call.1} parent=1 // pred_fallthru
      _
    // Predicated region
    $region10: #{tpu_custom_call.1} parent=1 // pred_check
      _
    $region11: #{tpu_custom_call.1} parent=1 // pred_check_branch
      %19 = sbr.rel (0) target = $region13
    $region12: #{tpu_custom_call.1} parent=1 // pred_region
      _
    $region13: #{tpu_custom_call.1} parent=1 // pred_fallthru
      _
    // Predicated region
    $region14: #{tpu_custom_call.1} parent=1 // pred_check
      _
    $region15: #{tpu_custom_call.1} parent=1 // pred_check_branch
      %21 = sbr.rel (0) target = $region17
    $region16: #{tpu_custom_call.1} parent=1 // pred_region
      _
    $region17: #{tpu_custom_call.1} parent=1 // pred_fallthru
      _
    // Predicated region
    $region18: #{tpu_custom_call.1} parent=1 // pred_check
      _
    $region19: #{tpu_custom_call.1} parent=1 // pred_check_branch
      %23 = sbr.rel (0) target = $region21
    $region20: #{tpu_custom_call.1} parent=1 // pred_region
      _
    $region21: #{tpu_custom_call.1} parent=1 // pred_fallthru
      _
    // Predicated region
    $region22: #{tpu_custom_call.1} parent=1 // pred_check
      _
    $region23: #{tpu_custom_call.1} parent=1 // pred_check_branch
      %25 = sbr.rel (0) target = $region25
    $region24: #{tpu_custom_call.1} parent=1 // pred_region
      _
    $region25: #{tpu_custom_call.1} parent=1 // pred_fallthru
      _
    // Predicated region
    $region26: #{tpu_custom_call.1} parent=1 // pred_check
      _
    $region27: #{tpu_custom_call.1} parent=1 // pred_check_branch
      %27 = sbr.rel (0) target = $region29
    $region28: #{tpu_custom_call.1} parent=1 // pred_region
      _
    $region29: #{tpu_custom_call.1} parent=1 // pred_fallthru
      _
    // Predicated region
    $region30: #{tpu_custom_call.1} parent=1 // pred_check
      _
    $region31: #{tpu_custom_call.1} parent=1 // pred_check_branch
      %29 = sbr.rel (0) target = $region33
    $region32: #{tpu_custom_call.1} parent=1 // pred_region
      _
    $region33: #{tpu_custom_call.1} parent=1 // pred_fallthru
      _
    %v30 = vld [vmem:[%s0] sm:$0xff]
    %v31 = vld [vmem:[%s0 + $0x8] sm:$0xff]
    %v32 = vld [vmem:[%s0 + $0x10] sm:$0xff]
    %v33 = vld [vmem:[%s7] ss:$8 sm:$0x3]
    %v34 = vld [vmem:[%s1] sm:$0xff]
    %v35 = vld [vmem:[%s1 + $0x8] sm:$0xff]
    %v36 = vld [vmem:[%s1 + $0x10] sm:$0xff]
    %v37 = vld [vmem:[%s1 + $0x18] sm:$0xff]
    %v38 = vld [vmem:[%s2] sm:$0xff]
    %v39 = vld [vmem:[%s2 + $0x8] sm:$0xff]
    %v40 = vld [vmem:[%s2 + $0x10] sm:$0xff]
    %v41 = vld [vmem:[%s2 + $0x18] sm:$0xff]
    %v42 = vld [vmem:[%s3] sm:$0xff]
    %v43 = vld [vmem:[%s3 + $0x8] sm:$0xff]
    %v44 = vld [vmem:[%s3 + $0x10] sm:$0xff]
    %v45 = vld [vmem:[%s3 + $0x18] sm:$0xff]
    %v46 = vld [vmem:[%s4] sm:$0xff]
    %v47 = vld [vmem:[%s4 + $0x8] sm:$0xff]
    %v48 = vld [vmem:[%s4 + $0x10] sm:$0xff]
    %v49 = vld [vmem:[%s4 + $0x18] sm:$0xff]
    %v50 = vld [vmem:[%s5] sm:$0xff]
    %v51 = vld [vmem:[%s5 + $0x8] sm:$0xff]
    %v52 = vld [vmem:[%s5 + $0x10] sm:$0xff]
    %v53 = vld [vmem:[%s5 + $0x18] sm:$0xff]
    %v54 = vld [vmem:[%s5 + $0x20] sm:$0xff]
    %v55 = vld [vmem:[%s5 + $0x28] sm:$0xff]
    %v56 = vld [vmem:[%s5 + $0x30] sm:$0xff]
    %v57 = vld [vmem:[%s5 + $0x38] sm:$0xff]
    %v58 = vld [vmem:[%s6] sm:$0x1]
    %v59 = vld [vmem:[%s6 + $0x1] sm:$0x1]
    %v60 = vld [vmem:[%s6 + $0x2] sm:$0x1]
    %v61 = vld [vmem:[%s6 + $0x3] sm:$0x1]
    %v62 = vld [vmem:[%s6 + $0x4] sm:$0x1]
    %v63 = vld [vmem:[%s6 + $0x5] sm:$0x1]
    %v64 = vld [vmem:[%s6 + $0x6] sm:$0x1]
    %v65 = vld [vmem:[%s6 + $0x7] sm:$0x1]
    %v66 = vld [vmem:[%s6 + $0x8] sm:$0x1]
    %s67 = scalar_lea.vmem %s0, 24
    %v68 = vld [vmem:[%s67] sm:$0xff]
    %v69 = vld [vmem:[%s67 + $0x8] sm:$0xff]
    %v70 = vld [vmem:[%s67 + $0x10] sm:$0xff]
    %v71 = vadd.f32 %v30, %v68
    %v72 = vadd.f32 %v31, %v69
    %v73 = vadd.f32 %v32, %v70
    %v74 = vlaneseq
    %v75 = vshrl.u32 %v74, 7
    %v76 = vsub.s32 0, %v75
    %v77 = vrot.slane %v58, %v76
    %vm78 = vcmask 261120
    %v80 = vsel %vm78, %v30, 0
    %v83 = vsel %vm78, %v31, 0
    %v86 = vsel %vm78, %v32, 0
    %88 = vmatprep.subr.mxu0 0.0
    %89 = vmatpush1.msra.mxu0 %v34
    %90 = vmatprep.subr.mxu0 0.0
    %91 = vmatpush1.msra.mxu0 %v35
    %92 = vmatprep.subr.mxu0 0.0
    %93 = vmatpush1.msra.mxu0 %v36
    %94 = vmatprep.subr.mxu0 0.0
    %95 = vmatpush1.msra.mxu0 %v37
    %96 = vmatprep.subr.mxu0 0.0
    %97 = vmatpush1.msra.mxu0 0.0
    %98 = vmatprep.subr.mxu0 0.0
    %99 = vmatpush1.msra.mxu0 0.0
    %100 = vmatprep.subr.mxu0 0.0
    %101 = vmatpush1.msra.mxu0 0.0
    %102 = vmatprep.subr.mxu0 0.0
    %103 = vmatpush1.msra.mxu0 0.0
    %104 = vmatprep.subr.mxu0 0.0
    %105 = vmatpush1.msra.mxu0 0.0
    %106 = vmatprep.subr.mxu0 0.0
    %107 = vmatpush1.msra.mxu0 0.0
    %108 = vmatprep.subr.mxu0 0.0
    %109 = vmatpush1.msra.mxu0 0.0
    %110 = vmatprep.subr.mxu0 0.0
    %111 = vmatpush1.msra.mxu0 0.0
    %112 = vmatprep.subr.mxu0 0.0
    %113 = vmatpush1.msra.mxu0 0.0
    %114 = vmatprep.subr.mxu0 0.0
    %115 = vmatpush1.msra.mxu0 0.0
    %116 = vmatprep.subr.mxu0 0.0
    %117 = vmatpush1.msra.mxu0 0.0
    %118 = vmatprep.subr.mxu0 0.0
    %119 = vmatpush1.msra.mxu0 0.0
    %120 = vmatprep.subr.mxu0 0.0
    %121 = vmatpush1.msra.mxu0 0.0
    %122 = vmatprep.subr.mxu0 0.0
    %123 = vmatpush1.msra.mxu0 0.0
    %124 = vmatprep.subr.mxu0 0.0
    %125 = vmatpush1.msra.mxu0 0.0
    %126 = vmatprep.subr.mxu0 0.0
    %127 = vmatpush1.msra.mxu0 0.0
    %128 = vmatprep.subr.mxu0 0.0
    %129 = vmatpush1.msra.mxu0 0.0
    %130 = vmatprep.subr.mxu0 0.0
    %131 = vmatpush1.msra.mxu0 0.0
    %132 = vmatprep.subr.mxu0 0.0
    %133 = vmatpush1.msra.mxu0 0.0
    %134 = vmatprep.subr.mxu0 0.0
    %135 = vmatpush1.msra.mxu0 0.0
    %136 = vmatprep.subr.mxu0 0.0
    %137 = vmatpush1.msra.mxu0 0.0
    %138 = vmatprep.subr.mxu0 0.0
    %139 = vmatpush1.msra.mxu0 0.0
    %140 = vmatprep.subr.mxu0 0.0
    %141 = vmatpush1.msra.mxu0 0.0
    %142 = vmatprep.subr.mxu0 0.0
    %143 = vmatpush1.msra.mxu0 0.0
    %144 = vmatprep.subr.mxu0 0.0
    %145 = vmatpush1.msra.mxu0 0.0
    %146 = vmatprep.subr.mxu0 0.0
    %147 = vmatpush1.msra.mxu0 0.0
    %148 = vmatprep.subr.mxu0 0.0
    %149 = vmatpush1.msra.mxu0 0.0
    %150 = vmatprep.subr.mxu0 0.0
    %151 = vmatpush1.msra.mxu0 0.0
    %152 = vmatprep.mubr.f32.mxu0 0.0
    %153 = vmatmul.mubr.f32.gmra.mrb[0].mxu0 %v80
    %v154 = vpop.f32.mrb[0].mxu0
    %v155 = vadd.f32 %v77, %v154
    %v156 = vpop.f32.mrb[0].mxu0
    %157 = vmatprep.mubr.f32.mxu0 0.0
    %158 = vmatmul.mubr.f32.gmra.mrb[0].mxu0 %v83
    %v159 = vpop.f32.mrb[0].mxu0
    %v160 = vadd.f32 %v77, %v159
    %v161 = vpop.f32.mrb[0].mxu0
    %162 = vmatprep.mubr.f32.mxu0 0.0
    %163 = vmatmul.mubr.f32.gmra.mrb[0].mxu0 %v86
    %v164 = vpop.f32.mrb[0].mxu0
    %v165 = vadd.f32 %v77, %v164
    %v166 = vpop.f32.mrb[0].mxu0
    %167 = vdwg.mxu0
    %s168 = scalar_lea.vmem %s0, 72
    %v169 = vld [vmem:[%s168] sm:$0xff]
    %v170 = vld [vmem:[%s168 + $0x8] sm:$0xff]
    %v171 = vld [vmem:[%s168 + $0x10] sm:$0xff]
    %v172 = vmul.f32 %v155, %v169
    %v173 = vmul.f32 %v160, %v170
    %v174 = vmul.f32 %v165, %v171
    %v175 = vlaneseq
    %v176 = vshrl.u32 %v175, 7
    %v177 = vsub.s32 0, %v176
    %v178 = vrot.slane %v59, %v177
    %v180 = vsel %vm78, %v71, 0
    %v183 = vsel %vm78, %v72, 0
    %v186 = vsel %vm78, %v73, 0
    %188 = vmatprep.subr.mxu0 0.0
    %189 = vmatpush1.msra.mxu0 %v38
    %190 = vmatprep.subr.mxu0 0.0
    %191 = vmatpush1.msra.mxu0 %v39
    %192 = vmatprep.subr.mxu0 0.0
    %193 = vmatpush1.msra.mxu0 %v40
    %194 = vmatprep.subr.mxu0 0.0
    %195 = vmatpush1.msra.mxu0 %v41
    %196 = vmatprep.subr.mxu0 0.0
    %197 = vmatpush1.msra.mxu0 0.0
    %198 = vmatprep.subr.mxu0 0.0
    %199 = vmatpush1.msra.mxu0 0.0
    %200 = vmatprep.subr.mxu0 0.0
    %201 = vmatpush1.msra.mxu0 0.0
    %202 = vmatprep.subr.mxu0 0.0
    %203 = vmatpush1.msra.mxu0 0.0
    %204 = vmatprep.subr.mxu0 0.0
    %205 = vmatpush1.msra.mxu0 0.0
    %206 = vmatprep.subr.mxu0 0.0
    %207 = vmatpush1.msra.mxu0 0.0
    %208 = vmatprep.subr.mxu0 0.0
    %209 = vmatpush1.msra.mxu0 0.0
    %210 = vmatprep.subr.mxu0 0.0
    %211 = vmatpush1.msra.mxu0 0.0
    %212 = vmatprep.subr.mxu0 0.0
    %213 = vmatpush1.msra.mxu0 0.0
    %214 = vmatprep.subr.mxu0 0.0
    %215 = vmatpush1.msra.mxu0 0.0
    %216 = vmatprep.subr.mxu0 0.0
    %217 = vmatpush1.msra.mxu0 0.0
    %218 = vmatprep.subr.mxu0 0.0
    %219 = vmatpush1.msra.mxu0 0.0
    %220 = vmatprep.subr.mxu0 0.0
    %221 = vmatpush1.msra.mxu0 0.0
    %222 = vmatprep.subr.mxu0 0.0
    %223 = vmatpush1.msra.mxu0 0.0
    %224 = vmatprep.subr.mxu0 0.0
    %225 = vmatpush1.msra.mxu0 0.0
    %226 = vmatprep.subr.mxu0 0.0
    %227 = vmatpush1.msra.mxu0 0.0
    %228 = vmatprep.subr.mxu0 0.0
    %229 = vmatpush1.msra.mxu0 0.0
    %230 = vmatprep.subr.mxu0 0.0
    %231 = vmatpush1.msra.mxu0 0.0
    %232 = vmatprep.subr.mxu0 0.0
    %233 = vmatpush1.msra.mxu0 0.0
    %234 = vmatprep.subr.mxu0 0.0
    %235 = vmatpush1.msra.mxu0 0.0
    %236 = vmatprep.subr.mxu0 0.0
    %237 = vmatpush1.msra.mxu0 0.0
    %238 = vmatprep.subr.mxu0 0.0
    %239 = vmatpush1.msra.mxu0 0.0
    %240 = vmatprep.subr.mxu0 0.0
    %241 = vmatpush1.msra.mxu0 0.0
    %242 = vmatprep.subr.mxu0 0.0
    %243 = vmatpush1.msra.mxu0 0.0
    %244 = vmatprep.subr.mxu0 0.0
    %245 = vmatpush1.msra.mxu0 0.0
    %246 = vmatprep.subr.mxu0 0.0
    %247 = vmatpush1.msra.mxu0 0.0
    %248 = vmatprep.subr.mxu0 0.0
    %249 = vmatpush1.msra.mxu0 0.0
    %250 = vmatprep.subr.mxu0 0.0
    %251 = vmatpush1.msra.mxu0 0.0
    %252 = vmatprep.mubr.f32.mxu0 0.0
    %253 = vmatmul.mubr.f32.gmra.mrb[0].mxu0 %v180
    %v254 = vpop.f32.mrb[0].mxu0
    %v255 = vadd.f32 %v178, %v254
    %v256 = vpop.f32.mrb[0].mxu0
    %257 = vmatprep.mubr.f32.mxu0 0.0
    %258 = vmatmul.mubr.f32.gmra.mrb[0].mxu0 %v183
    %v259 = vpop.f32.mrb[0].mxu0
    %v260 = vadd.f32 %v178, %v259
    %v261 = vpop.f32.mrb[0].mxu0
    %262 = vmatprep.mubr.f32.mxu0 0.0
    %263 = vmatmul.mubr.f32.gmra.mrb[0].mxu0 %v186
    %v264 = vpop.f32.mrb[0].mxu0
    %v265 = vadd.f32 %v178, %v264
    %v266 = vpop.f32.mrb[0].mxu0
    %267 = vdwg.mxu0
    %vm268 = vcmask 523520
    %v269 = vsel %vm268, %v255, -inf
    %270 = vmax.xlane.f32.xlu0 %v269
    %v271 = vpop.xlane.xlu0 %270
    %v272 = vsel %vm268, %v260, -inf
    %273 = vmax.xlane.f32.xlu0 %v272
    %v274 = vpop.xlane.xlu0 %273
    %v275 = vsel %vm268, %v265, -inf
    %276 = vmax.xlane.f32.xlu0 %v275
    %v277 = vpop.xlane.xlu0 %276
    %v278 = vsub.f32 %v255, %v271
    %v279 = vsub.f32 %v260, %v274
    %v280 = vsub.f32 %v265, %v277
    %v281 = vmul.f32 %v278, 1.442695
    %v282 = vpow.pop %v281
    %v283 = vmul.f32 %v279, 1.442695
    %v284 = vpow.pop %v283
    %v285 = vmul.f32 %v280, 1.442695
    %v286 = vpow.pop %v285
    %v287 = vld [vmem:[%s7 + $0x1d0] sm:$0xff]
    %v288 = vld [vmem:[%s7 + $0x1e0] sm:$0xff]
    %v289 = vld [vmem:[%s7 + $0x1f0] sm:$0xff]
    %v290 = vld [vmem:[%s7 + $0x200] sm:$0xff]
    %294 = vrot.lane.b32.xlu0 %v282, 96
    %v295 = vpop.permute.xlu0 %294
    %296 = vrot.lane.b32.xlu0 %v284, 96
    %v297 = vpop.permute.xlu0 %296
    %298 = vrot.lane.b32.xlu0 %v286, 96
    %v299 = vpop.permute.xlu0 %298
    %v300 = vsel %vm78, %v295, 0
    %v302 = vsel %vm78, %v297, 0
    %v304 = vsel %vm78, %v299, 0
    %306 = vmatprep.subr.mxu0 0.0
    %307 = vmatpush1.msra.mxu0 %v287
    %308 = vmatprep.subr.mxu0 0.0
    %309 = vmatpush1.msra.mxu0 %v288
    %310 = vmatprep.subr.mxu0 0.0
    %311 = vmatpush1.msra.mxu0 %v289
    %312 = vmatprep.subr.mxu0 0.0
    %313 = vmatpush1.msra.mxu0 %v290
    %314 = vmatprep.subr.mxu0 0.0
    %315 = vmatpush1.msra.mxu0 0.0
    %316 = vmatprep.subr.mxu0 0.0
    %317 = vmatpush1.msra.mxu0 0.0
    %318 = vmatprep.subr.mxu0 0.0
    %319 = vmatpush1.msra.mxu0 0.0
    %320 = vmatprep.subr.mxu0 0.0
    %321 = vmatpush1.msra.mxu0 0.0
    %322 = vmatprep.subr.mxu0 0.0
    %323 = vmatpush1.msra.mxu0 0.0
    %324 = vmatprep.subr.mxu0 0.0
    %325 = vmatpush1.msra.mxu0 0.0
    %326 = vmatprep.subr.mxu0 0.0
    %327 = vmatpush1.msra.mxu0 0.0
    %328 = vmatprep.subr.mxu0 0.0
    %329 = vmatpush1.msra.mxu0 0.0
    %330 = vmatprep.subr.mxu0 0.0
    %331 = vmatpush1.msra.mxu0 0.0
    %332 = vmatprep.subr.mxu0 0.0
    %333 = vmatpush1.msra.mxu0 0.0
    %334 = vmatprep.subr.mxu0 0.0
    %335 = vmatpush1.msra.mxu0 0.0
    %336 = vmatprep.subr.mxu0 0.0
    %337 = vmatpush1.msra.mxu0 0.0
    %338 = vmatprep.subr.mxu0 0.0
    %339 = vmatpush1.msra.mxu0 0.0
    %340 = vmatprep.subr.mxu0 0.0
    %341 = vmatpush1.msra.mxu0 0.0
    %342 = vmatprep.subr.mxu0 0.0
    %343 = vmatpush1.msra.mxu0 0.0
    %344 = vmatprep.subr.mxu0 0.0
    %345 = vmatpush1.msra.mxu0 0.0
    %346 = vmatprep.subr.mxu0 0.0
    %347 = vmatpush1.msra.mxu0 0.0
    %348 = vmatprep.subr.mxu0 0.0
    %349 = vmatpush1.msra.mxu0 0.0
    %350 = vmatprep.subr.mxu0 0.0
    %351 = vmatpush1.msra.mxu0 0.0
    %352 = vmatprep.subr.mxu0 0.0
    %353 = vmatpush1.msra.mxu0 0.0
    %354 = vmatprep.subr.mxu0 0.0
    %355 = vmatpush1.msra.mxu0 0.0
    %356 = vmatprep.subr.mxu0 0.0
    %357 = vmatpush1.msra.mxu0 0.0
    %358 = vmatprep.subr.mxu0 0.0
    %359 = vmatpush1.msra.mxu0 0.0
    %360 = vmatprep.subr.mxu0 0.0
    %361 = vmatpush1.msra.mxu0 0.0
    %362 = vmatprep.subr.mxu0 0.0
    %363 = vmatpush1.msra.mxu0 0.0
    %364 = vmatprep.subr.mxu0 0.0
    %365 = vmatpush1.msra.mxu0 0.0
    %366 = vmatprep.subr.mxu0 0.0
    %367 = vmatpush1.msra.mxu0 0.0
    %368 = vmatprep.subr.mxu0 0.0
    %369 = vmatpush1.msra.mxu0 0.0
    %370 = vmatprep.mubr.f32.mxu0 0.0
    %371 = vmatmul.mubr.f32.gmra.mrb[0].mxu0 %v300
    %v372 = vpop.f32.mrb[0].mxu0
    %v373 = vadd.f32 0.0, %v372
    %v374 = vpop.f32.mrb[0].mxu0
    %375 = vmatprep.mubr.f32.mxu0 0.0
    %376 = vmatmul.mubr.f32.gmra.mrb[0].mxu0 %v302
    %v377 = vpop.f32.mrb[0].mxu0
    %v378 = vadd.f32 0.0, %v377
    %v379 = vpop.f32.mrb[0].mxu0
    %380 = vmatprep.mubr.f32.mxu0 0.0
    %381 = vmatmul.mubr.f32.gmra.mrb[0].mxu0 %v304
    %v382 = vpop.f32.mrb[0].mxu0
    %v383 = vadd.f32 0.0, %v382
    %v384 = vpop.f32.mrb[0].mxu0
    %385 = vdwg.mxu0
    %389 = vrot.lane.b32.xlu0 %v373, 32
    %v390 = vpop.permute.xlu0 %389
    %391 = vrot.lane.b32.xlu0 %v378, 32
    %v392 = vpop.permute.xlu0 %391
    %393 = vrot.lane.b32.xlu0 %v383, 32
    %v394 = vpop.permute.xlu0 %393
    %v398 = vrcp.pop %v390
    %v399 = vmul.f32 %v282, %v398
    %v400 = vrcp.pop %v392
    %v401 = vmul.f32 %v284, %v400
    %v402 = vrcp.pop %v394
    %v403 = vmul.f32 %v286, %v402
    %s404 = scalar_lea.vmem %s0, 48
    %v405 = vld [vmem:[%s404] sm:$0xff]
    %v406 = vld [vmem:[%s404 + $0x8] sm:$0xff]
    %v407 = vld [vmem:[%s404 + $0x10] sm:$0xff]
    %v408 = vadd.f32 %v405, %v255
    %v409 = vadd.f32 %v406, %v260
    %v410 = vadd.f32 %v407, %v265
    %v411 = vld [vmem:[%s7 + $0x10] sm:$0xff]
    %v412 = vld [vmem:[%s7 + $0x18] sm:$0xff]
    %v413 = vld [vmem:[%s7 + $0x20] sm:$0xff]
    %v414 = vld [vmem:[%s7 + $0x28] sm:$0xff]
    %v415 = vld [vmem:[%s7 + $0x30] sm:$0xff]
    %v416 = vld [vmem:[%s7 + $0x38] sm:$0xff]
    %v417 = vld [vmem:[%s7 + $0x40] sm:$0xff]
    %v418 = vld [vmem:[%s7 + $0x48] sm:$0xff]
    %v420 = vsel %vm78, %v408, 0
    %v423 = vsel %vm78, %v409, 0
    %v426 = vsel %vm78, %v410, 0
    %428 = vmatprep.subr.mxu0 %v412
    %429 = vmatpush1.msra.mxu0 %v411
    %430 = vmatprep.subr.mxu0 %v414
    %431 = vmatpush1.msra.mxu0 %v413
    %432 = vmatprep.subr.mxu0 %v416
    %433 = vmatpush1.msra.mxu0 %v415
    %434 = vmatprep.subr.mxu0 %v418
    %435 = vmatpush1.msra.mxu0 %v417
    %436 = vmatprep.subr.mxu0 0.0
    %437 = vmatpush1.msra.mxu0 0.0
    %438 = vmatprep.subr.mxu0 0.0
    %439 = vmatpush1.msra.mxu0 0.0
    %440 = vmatprep.subr.mxu0 0.0
    %441 = vmatpush1.msra.mxu0 0.0
    %442 = vmatprep.subr.mxu0 0.0
    %443 = vmatpush1.msra.mxu0 0.0
    %444 = vmatprep.subr.mxu0 0.0
    %445 = vmatpush1.msra.mxu0 0.0
    %446 = vmatprep.subr.mxu0 0.0
    %447 = vmatpush1.msra.mxu0 0.0
    %448 = vmatprep.subr.mxu0 0.0
    %449 = vmatpush1.msra.mxu0 0.0
    %450 = vmatprep.subr.mxu0 0.0
    %451 = vmatpush1.msra.mxu0 0.0
    %452 = vmatprep.subr.mxu0 0.0
    %453 = vmatpush1.msra.mxu0 0.0
    %454 = vmatprep.subr.mxu0 0.0
    %455 = vmatpush1.msra.mxu0 0.0
    %456 = vmatprep.subr.mxu0 0.0
    %457 = vmatpush1.msra.mxu0 0.0
    %458 = vmatprep.subr.mxu0 0.0
    %459 = vmatpush1.msra.mxu0 0.0
    %460 = vmatprep.subr.mxu0 0.0
    %461 = vmatpush1.msra.mxu0 0.0
    %462 = vmatprep.subr.mxu0 0.0
    %463 = vmatpush1.msra.mxu0 0.0
    %464 = vmatprep.subr.mxu0 0.0
    %465 = vmatpush1.msra.mxu0 0.0
    %466 = vmatprep.subr.mxu0 0.0
    %467 = vmatpush1.msra.mxu0 0.0
    %468 = vmatprep.subr.mxu0 0.0
    %469 = vmatpush1.msra.mxu0 0.0
    %470 = vmatprep.subr.mxu0 0.0
    %471 = vmatpush1.msra.mxu0 0.0
    %472 = vmatprep.subr.mxu0 0.0
    %473 = vmatpush1.msra.mxu0 0.0
    %474 = vmatprep.subr.mxu0 0.0
    %475 = vmatpush1.msra.mxu0 0.0
    %476 = vmatprep.subr.mxu0 0.0
    %477 = vmatpush1.msra.mxu0 0.0
    %478 = vmatprep.subr.mxu0 0.0
    %479 = vmatpush1.msra.mxu0 0.0
    %480 = vmatprep.subr.mxu0 0.0
    %481 = vmatpush1.msra.mxu0 0.0
    %482 = vmatprep.subr.mxu0 0.0
    %483 = vmatpush1.msra.mxu0 0.0
    %484 = vmatprep.subr.mxu0 0.0
    %485 = vmatpush1.msra.mxu0 0.0
    %486 = vmatprep.subr.mxu0 0.0
    %487 = vmatpush1.msra.mxu0 0.0
    %488 = vmatprep.subr.mxu0 0.0
    %489 = vmatpush1.msra.mxu0 0.0
    %490 = vmatprep.subr.mxu0 0.0
    %491 = vmatpush1.msra.mxu0 0.0
    %492 = vmatprep.mubr.f32.mxu0 0.0
    %493 = vmatmul.mubr.f32.gmra.mrb[0].mxu0 %v420
    %v494 = vpop.f32.mrb[0].mxu0
    %v495 = vadd.f32 0.0, %v494
    %v496 = vpop.f32.mrb[0].mxu0
    %v497 = vadd.f32 0.0, %v496
    %498 = vmatprep.mubr.f32.mxu0 0.0
    %499 = vmatmul.mubr.f32.gmra.mrb[0].mxu0 %v423
    %v500 = vpop.f32.mrb[0].mxu0
    %v501 = vadd.f32 0.0, %v500
    %v502 = vpop.f32.mrb[0].mxu0
    %v503 = vadd.f32 0.0, %v502
    %504 = vmatprep.mubr.f32.mxu0 0.0
    %505 = vmatmul.mubr.f32.gmra.mrb[0].mxu0 %v426
    %v506 = vpop.f32.mrb[0].mxu0
    %v507 = vadd.f32 0.0, %v506
    %v508 = vpop.f32.mrb[0].mxu0
    %v509 = vadd.f32 0.0, %v508
    %510 = vdwg.mxu0
    %514 = vrot.lane.b32.xlu0 %v399, 96
    %v515 = vpop.permute.xlu0 %514
    %516 = vrot.lane.b32.xlu0 %v401, 96
    %v517 = vpop.permute.xlu0 %516
    %518 = vrot.lane.b32.xlu0 %v403, 96
    %v519 = vpop.permute.xlu0 %518
    %v520 = vsel %vm78, %v515, 0
    %v522 = vsel %vm78, %v517, 0
    %v524 = vsel %vm78, %v519, 0
    %526 = vmatprep.subr.mxu0 %v412
    %527 = vmatpush1.msra.mxu0 %v411
    %528 = vmatprep.subr.mxu0 %v414
    %529 = vmatpush1.msra.mxu0 %v413
    %530 = vmatprep.subr.mxu0 %v416
    %531 = vmatpush1.msra.mxu0 %v415
    %532 = vmatprep.subr.mxu0 %v418
    %533 = vmatpush1.msra.mxu0 %v417
    %534 = vmatprep.subr.mxu0 0.0
    %535 = vmatpush1.msra.mxu0 0.0
    %536 = vmatprep.subr.mxu0 0.0
    %537 = vmatpush1.msra.mxu0 0.0
    %538 = vmatprep.subr.mxu0 0.0
    %539 = vmatpush1.msra.mxu0 0.0
    %540 = vmatprep.subr.mxu0 0.0
    %541 = vmatpush1.msra.mxu0 0.0
    %542 = vmatprep.subr.mxu0 0.0
    %543 = vmatpush1.msra.mxu0 0.0
    %544 = vmatprep.subr.mxu0 0.0
    %545 = vmatpush1.msra.mxu0 0.0
    %546 = vmatprep.subr.mxu0 0.0
    %547 = vmatpush1.msra.mxu0 0.0
    %548 = vmatprep.subr.mxu0 0.0
    %549 = vmatpush1.msra.mxu0 0.0
    %550 = vmatprep.subr.mxu0 0.0
    %551 = vmatpush1.msra.mxu0 0.0
    %552 = vmatprep.subr.mxu0 0.0
    %553 = vmatpush1.msra.mxu0 0.0
    %554 = vmatprep.subr.mxu0 0.0
    %555 = vmatpush1.msra.mxu0 0.0
    %556 = vmatprep.subr.mxu0 0.0
    %557 = vmatpush1.msra.mxu0 0.0
    %558 = vmatprep.subr.mxu0 0.0
    %559 = vmatpush1.msra.mxu0 0.0
    %560 = vmatprep.subr.mxu0 0.0
    %561 = vmatpush1.msra.mxu0 0.0
    %562 = vmatprep.subr.mxu0 0.0
    %563 = vmatpush1.msra.mxu0 0.0
    %564 = vmatprep.subr.mxu0 0.0
    %565 = vmatpush1.msra.mxu0 0.0
    %566 = vmatprep.subr.mxu0 0.0
    %567 = vmatpush1.msra.mxu0 0.0
    %568 = vmatprep.subr.mxu0 0.0
    %569 = vmatpush1.msra.mxu0 0.0
    %570 = vmatprep.subr.mxu0 0.0
    %571 = vmatpush1.msra.mxu0 0.0
    %572 = vmatprep.subr.mxu0 0.0
    %573 = vmatpush1.msra.mxu0 0.0
    %574 = vmatprep.subr.mxu0 0.0
    %575 = vmatpush1.msra.mxu0 0.0
    %576 = vmatprep.subr.mxu0 0.0
    %577 = vmatpush1.msra.mxu0 0.0
    %578 = vmatprep.subr.mxu0 0.0
    %579 = vmatpush1.msra.mxu0 0.0
    %580 = vmatprep.subr.mxu0 0.0
    %581 = vmatpush1.msra.mxu0 0.0
    %582 = vmatprep.subr.mxu0 0.0
    %583 = vmatpush1.msra.mxu0 0.0
    %584 = vmatprep.subr.mxu0 0.0
    %585 = vmatpush1.msra.mxu0 0.0
    %586 = vmatprep.subr.mxu0 0.0
    %587 = vmatpush1.msra.mxu0 0.0
    %588 = vmatprep.subr.mxu0 0.0
    %589 = vmatpush1.msra.mxu0 0.0
    %590 = vmatprep.mubr.f32.mxu0 0.0
    %591 = vmatmul.mubr.f32.gmra.mrb[0].mxu0 %v520
    %v592 = vpop.f32.mrb[0].mxu0
    %v593 = vadd.f32 0.0, %v592
    %v594 = vpop.f32.mrb[0].mxu0
    %v595 = vadd.f32 0.0, %v594
    %596 = vmatprep.mubr.f32.mxu0 0.0
    %597 = vmatmul.mubr.f32.gmra.mrb[0].mxu0 %v522
    %v598 = vpop.f32.mrb[0].mxu0
    %v599 = vadd.f32 0.0, %v598
    %v600 = vpop.f32.mrb[0].mxu0
    %v601 = vadd.f32 0.0, %v600
    %602 = vmatprep.mubr.f32.mxu0 0.0
    %603 = vmatmul.mubr.f32.gmra.mrb[0].mxu0 %v524
    %v604 = vpop.f32.mrb[0].mxu0
    %v605 = vadd.f32 0.0, %v604
    %v606 = vpop.f32.mrb[0].mxu0
    %v607 = vadd.f32 0.0, %v606
    %608 = vdwg.mxu0
    %v610 = vlaneseq
    %v611 = vshrl.u32 %v610, 7
    %v612 = vsub.s32 0, %v611
    %v613 = vrot.slane %v33, %v612
    %v614 = vlaneseq
    %v615 = vshrl.u32 %v614, 7
    %v616 = vsub.s32 1, %v615
    %v617 = vrot.slane %v33, %v616
    %v620 = vsub.f32 %v495, %v613
    %v621 = vsub.f32 %v497, %v617
    %v622 = vsub.f32 %v501, %v613
    %v623 = vsub.f32 %v503, %v617
    %v624 = vsub.f32 %v507, %v613
    %v625 = vsub.f32 %v509, %v617
    %v626 = vand.u32 2147483647, %v620
    %v627 = vand.u32 2147483647, %v621
    %v628 = vand.u32 2147483647, %v622
    %v629 = vand.u32 2147483647, %v623
    %v630 = vand.u32 2147483647, %v624
    %v631 = vand.u32 2147483647, %v625
    %v632 = vsub.f32 1.0, %v626
    %v633 = vsub.f32 1.0, %v627
    %v634 = vsub.f32 1.0, %v628
    %v635 = vsub.f32 1.0, %v629
    %v636 = vsub.f32 1.0, %v630
    %v637 = vsub.f32 1.0, %v631
    %v638 = vmax.f32 %v632, 0.0
    %v639 = vmax.f32 %v633, 0.0
    %v640 = vmax.f32 %v634, 0.0
    %v641 = vmax.f32 %v635, 0.0
    %v642 = vmax.f32 %v636, 0.0
    %v643 = vmax.f32 %v637, 0.0
    %v644 = vmul.f32 %v638, %v593
    %v645 = vmul.f32 %v639, %v595
    %v646 = vmul.f32 %v640, %v599
    %v647 = vmul.f32 %v641, %v601
    %v648 = vmul.f32 %v642, %v605
    %v649 = vmul.f32 %v643, %v607
    %v650 = vld [vmem:[%s7 + $0x50] sm:$0xff]
    %v651 = vld [vmem:[%s7 + $0x60] sm:$0xff]
    %v652 = vld [vmem:[%s7 + $0x70] sm:$0xff]
    %v653 = vld [vmem:[%s7 + $0x80] sm:$0xff]
    %v654 = vld [vmem:[%s7 + $0x90] sm:$0xff]
    %v655 = vld [vmem:[%s7 + $0xa0] sm:$0xff]
    %v656 = vld [vmem:[%s7 + $0xb0] sm:$0xff]
    %v657 = vld [vmem:[%s7 + $0xc0] sm:$0xff]
    %v658 = vld [vmem:[%s7 + $0xd0] sm:$0xff]
    %v659 = vld [vmem:[%s7 + $0xe0] sm:$0xff]
    %v660 = vld [vmem:[%s7 + $0xf0] sm:$0xff]
    %v661 = vld [vmem:[%s7 + $0x100] sm:$0xff]
    %v662 = vld [vmem:[%s7 + $0x110] sm:$0xff]
    %v663 = vld [vmem:[%s7 + $0x120] sm:$0xff]
    %v664 = vld [vmem:[%s7 + $0x130] sm:$0xff]
    %v665 = vld [vmem:[%s7 + $0x140] sm:$0xff]
    %v666 = vld [vmem:[%s7 + $0x150] sm:$0xff]
    %v667 = vld [vmem:[%s7 + $0x160] sm:$0xff]
    %v668 = vld [vmem:[%s7 + $0x170] sm:$0xff]
    %v669 = vld [vmem:[%s7 + $0x180] sm:$0xff]
    %v670 = vld [vmem:[%s7 + $0x190] sm:$0xff]
    %v671 = vld [vmem:[%s7 + $0x1a0] sm:$0xff]
    %v672 = vld [vmem:[%s7 + $0x1b0] sm:$0xff]
    %v673 = vld [vmem:[%s7 + $0x1c0] sm:$0xff]
    %vm674 = vcmask 523264
    %v676 = vsel %vm674, %v645, 0
    %v679 = vsel %vm674, %v647, 0
    %v682 = vsel %vm674, %v649, 0
    %684 = vmatprep.subr.mxu0 0.0
    %685 = vmatpush1.msra.mxu0 %v650
    %686 = vmatprep.subr.mxu0 0.0
    %687 = vmatpush1.msra.mxu0 %v651
    %688 = vmatprep.subr.mxu0 0.0
    %689 = vmatpush1.msra.mxu0 %v652
    %690 = vmatprep.subr.mxu0 0.0
    %691 = vmatpush1.msra.mxu0 %v653
    %692 = vmatprep.subr.mxu0 0.0
    %693 = vmatpush1.msra.mxu0 %v654
    %694 = vmatprep.subr.mxu0 0.0
    %695 = vmatpush1.msra.mxu0 %v655
    %696 = vmatprep.subr.mxu0 0.0
    %697 = vmatpush1.msra.mxu0 %v656
    %698 = vmatprep.subr.mxu0 0.0
    %699 = vmatpush1.msra.mxu0 %v657
    %700 = vmatprep.subr.mxu0 0.0
    %701 = vmatpush1.msra.mxu0 %v658
    %702 = vmatprep.subr.mxu0 0.0
    %703 = vmatpush1.msra.mxu0 %v659
    %704 = vmatprep.subr.mxu0 0.0
    %705 = vmatpush1.msra.mxu0 %v660
    %706 = vmatprep.subr.mxu0 0.0
    %707 = vmatpush1.msra.mxu0 %v661
    %708 = vmatprep.subr.mxu0 0.0
    %709 = vmatpush1.msra.mxu0 %v662
    %710 = vmatprep.subr.mxu0 0.0
    %711 = vmatpush1.msra.mxu0 %v663
    %712 = vmatprep.subr.mxu0 0.0
    %713 = vmatpush1.msra.mxu0 %v664
    %714 = vmatprep.subr.mxu0 0.0
    %715 = vmatpush1.msra.mxu0 %v665
    %716 = vmatprep.subr.mxu0 0.0
    %717 = vmatpush1.msra.mxu0 %v666
    %718 = vmatprep.subr.mxu0 0.0
    %719 = vmatpush1.msra.mxu0 %v667
    %720 = vmatprep.subr.mxu0 0.0
    %721 = vmatpush1.msra.mxu0 %v668
    %722 = vmatprep.subr.mxu0 0.0
    %723 = vmatpush1.msra.mxu0 %v669
    %724 = vmatprep.subr.mxu0 0.0
    %725 = vmatpush1.msra.mxu0 %v670
    %726 = vmatprep.subr.mxu0 0.0
    %727 = vmatpush1.msra.mxu0 %v671
    %728 = vmatprep.subr.mxu0 0.0
    %729 = vmatpush1.msra.mxu0 %v672
    %730 = vmatprep.subr.mxu0 0.0
    %731 = vmatpush1.msra.mxu0 %v673
    %732 = vmatprep.subr.mxu0 0.0
    %733 = vmatpush1.msra.mxu0 0.0
    %734 = vmatprep.subr.mxu0 0.0
    %735 = vmatpush1.msra.mxu0 0.0
    %736 = vmatprep.subr.mxu0 0.0
    %737 = vmatpush1.msra.mxu0 0.0
    %738 = vmatprep.subr.mxu0 0.0
    %739 = vmatpush1.msra.mxu0 0.0
    %740 = vmatprep.subr.mxu0 0.0
    %741 = vmatpush1.msra.mxu0 0.0
    %742 = vmatprep.subr.mxu0 0.0
    %743 = vmatpush1.msra.mxu0 0.0
    %744 = vmatprep.subr.mxu0 0.0
    %745 = vmatpush1.msra.mxu0 0.0
    %746 = vmatprep.subr.mxu0 0.0
    %747 = vmatpush1.msra.mxu0 0.0
    %748 = vmatprep.mubr.f32.mxu0 %v676
    %749 = vmatmul.mubr.f32.gmra.mrb[0].mxu0 %v644
    %v750 = vpop.f32.mrb[0].mxu0
    %v751 = vadd.f32 0.0, %v750
    %v752 = vpop.f32.mrb[0].mxu0
    %753 = vmatprep.mubr.f32.mxu0 %v679
    %754 = vmatmul.mubr.f32.gmra.mrb[0].mxu0 %v646
    %v755 = vpop.f32.mrb[0].mxu0
    %v756 = vadd.f32 0.0, %v755
    %v757 = vpop.f32.mrb[0].mxu0
    %758 = vmatprep.mubr.f32.mxu0 %v682
    %759 = vmatmul.mubr.f32.gmra.mrb[0].mxu0 %v648
    %v760 = vpop.f32.mrb[0].mxu0
    %v761 = vadd.f32 0.0, %v760
    %v762 = vpop.f32.mrb[0].mxu0
    %763 = vdwg.mxu0
    %v764 = vld [vmem:[%s7 + $0x210] sm:$0xff]
    %v765 = vld [vmem:[%s7 + $0x220] sm:$0xff]
    %v766 = vld [vmem:[%s7 + $0x230] sm:$0xff]
    %v767 = vld [vmem:[%s7 + $0x240] sm:$0xff]
    %v768 = vld [vmem:[%s7 + $0x250] sm:$0xff]
    %v769 = vld [vmem:[%s7 + $0x260] sm:$0xff]
    %v770 = vld [vmem:[%s7 + $0x270] sm:$0xff]
    %v771 = vld [vmem:[%s7 + $0x280] sm:$0xff]
    %v772 = vld [vmem:[%s7 + $0x290] sm:$0xff]
    %v773 = vld [vmem:[%s7 + $0x2a0] sm:$0xff]
    %v774 = vld [vmem:[%s7 + $0x2b0] sm:$0xff]
    %v775 = vld [vmem:[%s7 + $0x2c0] sm:$0xff]
    %vm776 = vcmask 195584
    %v778 = vsel %vm776, %v770, 0
    %v781 = vsel %vm776, %v771, 0
    %v784 = vsel %vm776, %v772, 0
    %v787 = vsel %vm776, %v773, 0
    %v790 = vsel %vm776, %v774, 0
    %v793 = vsel %vm776, %v775, 0
    %795 = vmatprep.subr.mxu0 0.0
    %796 = vmatpush1.msra.mxu0 %v172
    %797 = vmatprep.subr.mxu0 0.0
    %798 = vmatpush1.msra.mxu0 %v173
    %799 = vmatprep.subr.mxu0 0.0
    %800 = vmatpush1.msra.mxu0 %v174
    %801 = vmatprep.subr.mxu0 0.0
    %802 = vmatpush1.msra.mxu0 0.0
    %803 = vmatprep.subr.mxu0 0.0
    %804 = vmatpush1.msra.mxu0 0.0
    %805 = vmatprep.subr.mxu0 0.0
    %806 = vmatpush1.msra.mxu0 0.0
    %807 = vmatprep.subr.mxu0 0.0
    %808 = vmatpush1.msra.mxu0 0.0
    %809 = vmatprep.subr.mxu0 0.0
    %810 = vmatpush1.msra.mxu0 0.0
    %811 = vmatprep.subr.mxu0 0.0
    %812 = vmatpush1.msra.mxu0 0.0
    %813 = vmatprep.subr.mxu0 0.0
    %814 = vmatpush1.msra.mxu0 0.0
    %815 = vmatprep.subr.mxu0 0.0
    %816 = vmatpush1.msra.mxu0 0.0
    %817 = vmatprep.subr.mxu0 0.0
    %818 = vmatpush1.msra.mxu0 0.0
    %819 = vmatprep.subr.mxu0 0.0
    %820 = vmatpush1.msra.mxu0 0.0
    %821 = vmatprep.subr.mxu0 0.0
    %822 = vmatpush1.msra.mxu0 0.0
    %823 = vmatprep.subr.mxu0 0.0
    %824 = vmatpush1.msra.mxu0 0.0
    %825 = vmatprep.subr.mxu0 0.0
    %826 = vmatpush1.msra.mxu0 0.0
    %827 = vmatprep.subr.mxu0 0.0
    %828 = vmatpush1.msra.mxu0 0.0
    %829 = vmatprep.subr.mxu0 0.0
    %830 = vmatpush1.msra.mxu0 0.0
    %831 = vmatprep.subr.mxu0 0.0
    %832 = vmatpush1.msra.mxu0 0.0
    %833 = vmatprep.subr.mxu0 0.0
    %834 = vmatpush1.msra.mxu0 0.0
    %835 = vmatprep.subr.mxu0 0.0
    %836 = vmatpush1.msra.mxu0 0.0
    %837 = vmatprep.subr.mxu0 0.0
    %838 = vmatpush1.msra.mxu0 0.0
    %839 = vmatprep.subr.mxu0 0.0
    %840 = vmatpush1.msra.mxu0 0.0
    %841 = vmatprep.subr.mxu0 0.0
    %842 = vmatpush1.msra.mxu0 0.0
    %843 = vmatprep.subr.mxu0 0.0
    %844 = vmatpush1.msra.mxu0 0.0
    %845 = vmatprep.subr.mxu0 0.0
    %846 = vmatpush1.msra.mxu0 0.0
    %847 = vmatprep.subr.mxu0 0.0
    %848 = vmatpush1.msra.mxu0 0.0
    %849 = vmatprep.subr.mxu0 0.0
    %850 = vmatpush1.msra.mxu0 0.0
    %851 = vmatprep.subr.mxu0 0.0
    %852 = vmatpush1.msra.mxu0 0.0
    %853 = vmatprep.subr.mxu0 0.0
    %854 = vmatpush1.msra.mxu0 0.0
    %855 = vmatprep.subr.mxu0 0.0
    %856 = vmatpush1.msra.mxu0 0.0
    %857 = vmatprep.subr.mxu0 0.0
    %858 = vmatpush1.msra.mxu0 0.0
    %859 = vmatprep.mubr.f32.mxu0 0.0
    %860 = vmatmul.mubr.f32.gmra.mrb[0].mxu0 %v778
    %v861 = vpop.f32.mrb[0].mxu0
    %v862 = vadd.f32 0.0, %v861
    %v863 = vpop.f32.mrb[0].mxu0
    %864 = vmatprep.mubr.f32.mxu0 0.0
    %865 = vmatmul.mubr.f32.gmra.mrb[0].mxu0 %v781
    %v866 = vpop.f32.mrb[0].mxu0
    %v867 = vadd.f32 0.0, %v866
    %v868 = vpop.f32.mrb[0].mxu0
    %869 = vmatprep.mubr.f32.mxu0 0.0
    %870 = vmatmul.mubr.f32.gmra.mrb[0].mxu0 %v784
    %v871 = vpop.f32.mrb[0].mxu0
    %v872 = vadd.f32 0.0, %v871
    %v873 = vpop.f32.mrb[0].mxu0
    %874 = vmatprep.mubr.f32.mxu0 0.0
    %875 = vmatmul.mubr.f32.gmra.mrb[0].mxu0 %v787
    %v876 = vpop.f32.mrb[0].mxu0
    %v877 = vadd.f32 0.0, %v876
    %v878 = vpop.f32.mrb[0].mxu0
    %879 = vmatprep.mubr.f32.mxu0 0.0
    %880 = vmatmul.mubr.f32.gmra.mrb[0].mxu0 %v790
    %v881 = vpop.f32.mrb[0].mxu0
    %v882 = vadd.f32 0.0, %v881
    %v883 = vpop.f32.mrb[0].mxu0
    %884 = vmatprep.mubr.f32.mxu0 0.0
    %885 = vmatmul.mubr.f32.gmra.mrb[0].mxu0 %v793
    %v886 = vpop.f32.mrb[0].mxu0
    %v887 = vadd.f32 0.0, %v886
    %v888 = vpop.f32.mrb[0].mxu0
    %889 = vdwg.mxu0
    %v890 = vmul.f32 %v862, %v764
    %v891 = vmul.f32 %v867, %v765
    %v892 = vmul.f32 %v872, %v766
    %v893 = vmul.f32 %v877, %v767
    %v894 = vmul.f32 %v882, %v768
    %v895 = vmul.f32 %v887, %v769
    %v896 = vld [vmem:[%s7 + $0x330] sm:$0xff]
    %v897 = vld [vmem:[%s7 + $0x340] sm:$0xff]
    %v898 = vld [vmem:[%s7 + $0x350] sm:$0xff]
    %900 = vset.pattern.permute.xlu0 0
    %901 = vperm.xlu0 %900, %v896
    %v902 = vpop.permute.xlu0 %901
    %905 = vset.pattern.permute.xlu0 0
    %906 = vperm.xlu0 %905, %v897
    %v907 = vpop.permute.xlu0 %906
    %910 = vset.pattern.permute.xlu0 0
    %911 = vperm.xlu0 %910, %v898
    %v912 = vpop.permute.xlu0 %911
    %v914 = vmul.f32 %v751, %v902
    %v915 = vmul.f32 %v756, %v907
    %v916 = vmul.f32 %v761, %v912
    %v917 = vld [vmem:[%s7 + $0x2d0] sm:$0xff]
    %v918 = vld [vmem:[%s7 + $0x2e0] sm:$0xff]
    %v919 = vld [vmem:[%s7 + $0x2f0] sm:$0xff]
    %v920 = vld [vmem:[%s7 + $0x300] sm:$0xff]
    %v921 = vld [vmem:[%s7 + $0x310] sm:$0xff]
    %v922 = vld [vmem:[%s7 + $0x320] sm:$0xff]
    %v924 = vsel %vm776, %v917, 0
    %v927 = vsel %vm776, %v918, 0
    %v930 = vsel %vm776, %v919, 0
    %v933 = vsel %vm776, %v920, 0
    %v936 = vsel %vm776, %v921, 0
    %v939 = vsel %vm776, %v922, 0
    %941 = vmatprep.subr.mxu0 0.0
    %942 = vmatpush1.msra.mxu0 %v172
    %943 = vmatprep.subr.mxu0 0.0
    %944 = vmatpush1.msra.mxu0 %v173
    %945 = vmatprep.subr.mxu0 0.0
    %946 = vmatpush1.msra.mxu0 %v174
    %947 = vmatprep.subr.mxu0 0.0
    %948 = vmatpush1.msra.mxu0 0.0
    %949 = vmatprep.subr.mxu0 0.0
    %950 = vmatpush1.msra.mxu0 0.0
    %951 = vmatprep.subr.mxu0 0.0
    %952 = vmatpush1.msra.mxu0 0.0
    %953 = vmatprep.subr.mxu0 0.0
    %954 = vmatpush1.msra.mxu0 0.0
    %955 = vmatprep.subr.mxu0 0.0
    %956 = vmatpush1.msra.mxu0 0.0
    %957 = vmatprep.subr.mxu0 0.0
    %958 = vmatpush1.msra.mxu0 0.0
    %959 = vmatprep.subr.mxu0 0.0
    %960 = vmatpush1.msra.mxu0 0.0
    %961 = vmatprep.subr.mxu0 0.0
    %962 = vmatpush1.msra.mxu0 0.0
    %963 = vmatprep.subr.mxu0 0.0
    %964 = vmatpush1.msra.mxu0 0.0
    %965 = vmatprep.subr.mxu0 0.0
    %966 = vmatpush1.msra.mxu0 0.0
    %967 = vmatprep.subr.mxu0 0.0
    %968 = vmatpush1.msra.mxu0 0.0
    %969 = vmatprep.subr.mxu0 0.0
    %970 = vmatpush1.msra.mxu0 0.0
    %971 = vmatprep.subr.mxu0 0.0
    %972 = vmatpush1.msra.mxu0 0.0
    %973 = vmatprep.subr.mxu0 0.0
    %974 = vmatpush1.msra.mxu0 0.0
    %975 = vmatprep.subr.mxu0 0.0
    %976 = vmatpush1.msra.mxu0 0.0
    %977 = vmatprep.subr.mxu0 0.0
    %978 = vmatpush1.msra.mxu0 0.0
    %979 = vmatprep.subr.mxu0 0.0
    %980 = vmatpush1.msra.mxu0 0.0
    %981 = vmatprep.subr.mxu0 0.0
    %982 = vmatpush1.msra.mxu0 0.0
    %983 = vmatprep.subr.mxu0 0.0
    %984 = vmatpush1.msra.mxu0 0.0
    %985 = vmatprep.subr.mxu0 0.0
    %986 = vmatpush1.msra.mxu0 0.0
    %987 = vmatprep.subr.mxu0 0.0
    %988 = vmatpush1.msra.mxu0 0.0
    %989 = vmatprep.subr.mxu0 0.0
    %990 = vmatpush1.msra.mxu0 0.0
    %991 = vmatprep.subr.mxu0 0.0
    %992 = vmatpush1.msra.mxu0 0.0
    %993 = vmatprep.subr.mxu0 0.0
    %994 = vmatpush1.msra.mxu0 0.0
    %995 = vmatprep.subr.mxu0 0.0
    %996 = vmatpush1.msra.mxu0 0.0
    %997 = vmatprep.subr.mxu0 0.0
    %998 = vmatpush1.msra.mxu0 0.0
    %999 = vmatprep.subr.mxu0 0.0
    %1000 = vmatpush1.msra.mxu0 0.0
    %1001 = vmatprep.subr.mxu0 0.0
    %1002 = vmatpush1.msra.mxu0 0.0
    %1003 = vmatprep.subr.mxu0 0.0
    %1004 = vmatpush1.msra.mxu0 0.0
    %1005 = vmatprep.mubr.f32.mxu0 0.0
    %1006 = vmatmul.mubr.f32.gmra.mrb[0].mxu0 %v924
    %v1007 = vpop.f32.mrb[0].mxu0
    %v1008 = vadd.f32 0.0, %v1007
    %v1009 = vpop.f32.mrb[0].mxu0
    %1010 = vmatprep.mubr.f32.mxu0 0.0
    %1011 = vmatmul.mubr.f32.gmra.mrb[0].mxu0 %v927
    %v1012 = vpop.f32.mrb[0].mxu0
    %v1013 = vadd.f32 0.0, %v1012
    %v1014 = vpop.f32.mrb[0].mxu0
    %1015 = vmatprep.mubr.f32.mxu0 0.0
    %1016 = vmatmul.mubr.f32.gmra.mrb[0].mxu0 %v930
    %v1017 = vpop.f32.mrb[0].mxu0
    %v1018 = vadd.f32 0.0, %v1017
    %v1019 = vpop.f32.mrb[0].mxu0
    %1020 = vmatprep.mubr.f32.mxu0 0.0
    %1021 = vmatmul.mubr.f32.gmra.mrb[0].mxu0 %v933
    %v1022 = vpop.f32.mrb[0].mxu0
    %v1023 = vadd.f32 0.0, %v1022
    %v1024 = vpop.f32.mrb[0].mxu0
    %1025 = vmatprep.mubr.f32.mxu0 0.0
    %1026 = vmatmul.mubr.f32.gmra.mrb[0].mxu0 %v936
    %v1027 = vpop.f32.mrb[0].mxu0
    %v1028 = vadd.f32 0.0, %v1027
    %v1029 = vpop.f32.mrb[0].mxu0
    %1030 = vmatprep.mubr.f32.mxu0 0.0
    %1031 = vmatmul.mubr.f32.gmra.mrb[0].mxu0 %v939
    %v1032 = vpop.f32.mrb[0].mxu0
    %v1033 = vadd.f32 0.0, %v1032
    %v1034 = vpop.f32.mrb[0].mxu0
    %1035 = vdwg.mxu0
    %v1036 = vmul.f32 %v1008, %v764
    %v1037 = vmul.f32 %v1013, %v765
    %v1038 = vmul.f32 %v1018, %v766
    %v1039 = vmul.f32 %v1023, %v767
    %v1040 = vmul.f32 %v1028, %v768
    %v1041 = vmul.f32 %v1033, %v769
    %1042 = vset.pattern.permute.xlu0 1
    %1043 = vperm.xlu0 %1042, %v896
    %v1044 = vpop.permute.xlu0 %1043
    %1046 = vset.pattern.permute.xlu0 1
    %1047 = vperm.xlu0 %1046, %v897
    %v1048 = vpop.permute.xlu0 %1047
    %1050 = vset.pattern.permute.xlu0 1
    %1051 = vperm.xlu0 %1050, %v898
    %v1052 = vpop.permute.xlu0 %1051
    %v1054 = vmul.f32 %v751, %v1044
    %v1055 = vmul.f32 %v756, %v1048
    %v1056 = vmul.f32 %v761, %v1052
    %vm1057 = vcmask 392192
    %v1059 = vsel %vm1057, %v1054, 0
    %v1062 = vsel %vm1057, %v1055, 0
    %v1065 = vsel %vm1057, %v1056, 0
    %1067 = vmatprep.subr.mxu0 0.0
    %1068 = vmatpush1.msra.mxu0 %v1036
    %1069 = vmatprep.subr.mxu0 0.0
    %1070 = vmatpush1.msra.mxu0 %v1037
    %1071 = vmatprep.subr.mxu0 0.0
    %1072 = vmatpush1.msra.mxu0 %v1038
    %1073 = vmatprep.subr.mxu0 0.0
    %1074 = vmatpush1.msra.mxu0 %v1039
    %1075 = vmatprep.subr.mxu0 0.0
    %1076 = vmatpush1.msra.mxu0 %v1040
    %1077 = vmatprep.subr.mxu0 0.0
    %1078 = vmatpush1.msra.mxu0 %v1041
    %1079 = vmatprep.subr.mxu0 0.0
    %1080 = vmatpush1.msra.mxu0 0.0
    %1081 = vmatprep.subr.mxu0 0.0
    %1082 = vmatpush1.msra.mxu0 0.0
    %1083 = vmatprep.subr.mxu0 0.0
    %1084 = vmatpush1.msra.mxu0 0.0
    %1085 = vmatprep.subr.mxu0 0.0
    %1086 = vmatpush1.msra.mxu0 0.0
    %1087 = vmatprep.subr.mxu0 0.0
    %1088 = vmatpush1.msra.mxu0 0.0
    %1089 = vmatprep.subr.mxu0 0.0
    %1090 = vmatpush1.msra.mxu0 0.0
    %1091 = vmatprep.subr.mxu0 0.0
    %1092 = vmatpush1.msra.mxu0 0.0
    %1093 = vmatprep.subr.mxu0 0.0
    %1094 = vmatpush1.msra.mxu0 0.0
    %1095 = vmatprep.subr.mxu0 0.0
    %1096 = vmatpush1.msra.mxu0 0.0
    %1097 = vmatprep.subr.mxu0 0.0
    %1098 = vmatpush1.msra.mxu0 0.0
    %1099 = vmatprep.subr.mxu0 0.0
    %1100 = vmatpush1.msra.mxu0 0.0
    %1101 = vmatprep.subr.mxu0 0.0
    %1102 = vmatpush1.msra.mxu0 0.0
    %1103 = vmatprep.subr.mxu0 0.0
    %1104 = vmatpush1.msra.mxu0 0.0
    %1105 = vmatprep.subr.mxu0 0.0
    %1106 = vmatpush1.msra.mxu0 0.0
    %1107 = vmatprep.subr.mxu0 0.0
    %1108 = vmatpush1.msra.mxu0 0.0
    %1109 = vmatprep.subr.mxu0 0.0
    %1110 = vmatpush1.msra.mxu0 0.0
    %1111 = vmatprep.subr.mxu0 0.0
    %1112 = vmatpush1.msra.mxu0 0.0
    %1113 = vmatprep.subr.mxu0 0.0
    %1114 = vmatpush1.msra.mxu0 0.0
    %1115 = vmatprep.subr.mxu0 0.0
    %1116 = vmatpush1.msra.mxu0 0.0
    %1117 = vmatprep.subr.mxu0 0.0
    %1118 = vmatpush1.msra.mxu0 0.0
    %1119 = vmatprep.subr.mxu0 0.0
    %1120 = vmatpush1.msra.mxu0 0.0
    %1121 = vmatprep.subr.mxu0 0.0
    %1122 = vmatpush1.msra.mxu0 0.0
    %1123 = vmatprep.subr.mxu0 0.0
    %1124 = vmatpush1.msra.mxu0 0.0
    %1125 = vmatprep.subr.mxu0 0.0
    %1126 = vmatpush1.msra.mxu0 0.0
    %1127 = vmatprep.subr.mxu0 0.0
    %1128 = vmatpush1.msra.mxu0 0.0
    %1129 = vmatprep.subr.mxu0 0.0
    %1130 = vmatpush1.msra.mxu0 0.0
    %1131 = vmatprep.mubr.f32.mxu0 0.0
    %1132 = vmatmul.mubr.f32.gmra.mrb[0].mxu0 %v1059
    %v1133 = vpop.f32.mrb[0].mxu0
    %v1134 = vadd.f32 0.0, %v1133
    %v1135 = vpop.f32.mrb[0].mxu0
    %1136 = vmatprep.mubr.f32.mxu0 0.0
    %1137 = vmatmul.mubr.f32.gmra.mrb[0].mxu0 %v1062
    %v1138 = vpop.f32.mrb[0].mxu0
    %v1139 = vadd.f32 0.0, %v1138
    %v1140 = vpop.f32.mrb[0].mxu0
    %1141 = vmatprep.mubr.f32.mxu0 0.0
    %1142 = vmatmul.mubr.f32.gmra.mrb[0].mxu0 %v1065
    %v1143 = vpop.f32.mrb[0].mxu0
    %v1144 = vadd.f32 0.0, %v1143
    %v1145 = vpop.f32.mrb[0].mxu0
    %1146 = vdwg.mxu0
    %v1148 = vsel %vm1057, %v914, 0
    %v1151 = vsel %vm1057, %v915, 0
    %v1154 = vsel %vm1057, %v916, 0
    %1156 = vmatprep.subr.mxu0 0.0
    %1157 = vmatpush1.msra.mxu0 %v890
    %1158 = vmatprep.subr.mxu0 0.0
    %1159 = vmatpush1.msra.mxu0 %v891
    %1160 = vmatprep.subr.mxu0 0.0
    %1161 = vmatpush1.msra.mxu0 %v892
    %1162 = vmatprep.subr.mxu0 0.0
    %1163 = vmatpush1.msra.mxu0 %v893
    %1164 = vmatprep.subr.mxu0 0.0
    %1165 = vmatpush1.msra.mxu0 %v894
    %1166 = vmatprep.subr.mxu0 0.0
    %1167 = vmatpush1.msra.mxu0 %v895
    %1168 = vmatprep.subr.mxu0 0.0
    %1169 = vmatpush1.msra.mxu0 0.0
    %1170 = vmatprep.subr.mxu0 0.0
    %1171 = vmatpush1.msra.mxu0 0.0
    %1172 = vmatprep.subr.mxu0 0.0
    %1173 = vmatpush1.msra.mxu0 0.0
    %1174 = vmatprep.subr.mxu0 0.0
    %1175 = vmatpush1.msra.mxu0 0.0
    %1176 = vmatprep.subr.mxu0 0.0
    %1177 = vmatpush1.msra.mxu0 0.0
    %1178 = vmatprep.subr.mxu0 0.0
    %1179 = vmatpush1.msra.mxu0 0.0
    %1180 = vmatprep.subr.mxu0 0.0
    %1181 = vmatpush1.msra.mxu0 0.0
    %1182 = vmatprep.subr.mxu0 0.0
    %1183 = vmatpush1.msra.mxu0 0.0
    %1184 = vmatprep.subr.mxu0 0.0
    %1185 = vmatpush1.msra.mxu0 0.0
    %1186 = vmatprep.subr.mxu0 0.0
    %1187 = vmatpush1.msra.mxu0 0.0
    %1188 = vmatprep.subr.mxu0 0.0
    %1189 = vmatpush1.msra.mxu0 0.0
    %1190 = vmatprep.subr.mxu0 0.0
    %1191 = vmatpush1.msra.mxu0 0.0
    %1192 = vmatprep.subr.mxu0 0.0
    %1193 = vmatpush1.msra.mxu0 0.0
    %1194 = vmatprep.subr.mxu0 0.0
    %1195 = vmatpush1.msra.mxu0 0.0
    %1196 = vmatprep.subr.mxu0 0.0
    %1197 = vmatpush1.msra.mxu0 0.0
    %1198 = vmatprep.subr.mxu0 0.0
    %1199 = vmatpush1.msra.mxu0 0.0
    %1200 = vmatprep.subr.mxu0 0.0
    %1201 = vmatpush1.msra.mxu0 0.0
    %1202 = vmatprep.subr.mxu0 0.0
    %1203 = vmatpush1.msra.mxu0 0.0
    %1204 = vmatprep.subr.mxu0 0.0
    %1205 = vmatpush1.msra.mxu0 0.0
    %1206 = vmatprep.subr.mxu0 0.0
    %1207 = vmatpush1.msra.mxu0 0.0
    %1208 = vmatprep.subr.mxu0 0.0
    %1209 = vmatpush1.msra.mxu0 0.0
    %1210 = vmatprep.subr.mxu0 0.0
    %1211 = vmatpush1.msra.mxu0 0.0
    %1212 = vmatprep.subr.mxu0 0.0
    %1213 = vmatpush1.msra.mxu0 0.0
    %1214 = vmatprep.subr.mxu0 0.0
    %1215 = vmatpush1.msra.mxu0 0.0
    %1216 = vmatprep.subr.mxu0 0.0
    %1217 = vmatpush1.msra.mxu0 0.0
    %1218 = vmatprep.subr.mxu0 0.0
    %1219 = vmatpush1.msra.mxu0 0.0
    %1220 = vmatprep.mubr.f32.mxu0 0.0
    %1221 = vmatmul.mubr.f32.gmra.mrb[0].mxu0 %v1148
    %v1222 = vpop.f32.mrb[0].mxu0
    %v1223 = vadd.f32 %v1134, %v1222
    %v1224 = vpop.f32.mrb[0].mxu0
    %1225 = vmatprep.mubr.f32.mxu0 0.0
    %1226 = vmatmul.mubr.f32.gmra.mrb[0].mxu0 %v1151
    %v1227 = vpop.f32.mrb[0].mxu0
    %v1228 = vadd.f32 %v1139, %v1227
    %v1229 = vpop.f32.mrb[0].mxu0
    %1230 = vmatprep.mubr.f32.mxu0 0.0
    %1231 = vmatmul.mubr.f32.gmra.mrb[0].mxu0 %v1154
    %v1232 = vpop.f32.mrb[0].mxu0
    %v1233 = vadd.f32 %v1144, %v1232
    %v1234 = vpop.f32.mrb[0].mxu0
    %1235 = vdwg.mxu0
    %v1236 = vlaneseq
    %v1237 = vshrl.u32 %v1236, 7
    %v1238 = vsub.s32 0, %v1237
    %v1239 = vrot.slane %v60, %v1238
    %v1241 = vsel %vm78, %v1223, 0
    %v1244 = vsel %vm78, %v1228, 0
    %v1247 = vsel %vm78, %v1233, 0
    %1249 = vmatprep.subr.mxu0 0.0
    %1250 = vmatpush1.msra.mxu0 %v42
    %1251 = vmatprep.subr.mxu0 0.0
    %1252 = vmatpush1.msra.mxu0 %v43
    %1253 = vmatprep.subr.mxu0 0.0
    %1254 = vmatpush1.msra.mxu0 %v44
    %1255 = vmatprep.subr.mxu0 0.0
    %1256 = vmatpush1.msra.mxu0 %v45
    %1257 = vmatprep.subr.mxu0 0.0
    %1258 = vmatpush1.msra.mxu0 0.0
    %1259 = vmatprep.subr.mxu0 0.0
    %1260 = vmatpush1.msra.mxu0 0.0
    %1261 = vmatprep.subr.mxu0 0.0
    %1262 = vmatpush1.msra.mxu0 0.0
    %1263 = vmatprep.subr.mxu0 0.0
    %1264 = vmatpush1.msra.mxu0 0.0
    %1265 = vmatprep.subr.mxu0 0.0
    %1266 = vmatpush1.msra.mxu0 0.0
    %1267 = vmatprep.subr.mxu0 0.0
    %1268 = vmatpush1.msra.mxu0 0.0
    %1269 = vmatprep.subr.mxu0 0.0
    %1270 = vmatpush1.msra.mxu0 0.0
    %1271 = vmatprep.subr.mxu0 0.0
    %1272 = vmatpush1.msra.mxu0 0.0
    %1273 = vmatprep.subr.mxu0 0.0
    %1274 = vmatpush1.msra.mxu0 0.0
    %1275 = vmatprep.subr.mxu0 0.0
    %1276 = vmatpush1.msra.mxu0 0.0
    %1277 = vmatprep.subr.mxu0 0.0
    %1278 = vmatpush1.msra.mxu0 0.0
    %1279 = vmatprep.subr.mxu0 0.0
    %1280 = vmatpush1.msra.mxu0 0.0
    %1281 = vmatprep.subr.mxu0 0.0
    %1282 = vmatpush1.msra.mxu0 0.0
    %1283 = vmatprep.subr.mxu0 0.0
    %1284 = vmatpush1.msra.mxu0 0.0
    %1285 = vmatprep.subr.mxu0 0.0
    %1286 = vmatpush1.msra.mxu0 0.0
    %1287 = vmatprep.subr.mxu0 0.0
    %1288 = vmatpush1.msra.mxu0 0.0
    %1289 = vmatprep.subr.mxu0 0.0
    %1290 = vmatpush1.msra.mxu0 0.0
    %1291 = vmatprep.subr.mxu0 0.0
    %1292 = vmatpush1.msra.mxu0 0.0
    %1293 = vmatprep.subr.mxu0 0.0
    %1294 = vmatpush1.msra.mxu0 0.0
    %1295 = vmatprep.subr.mxu0 0.0
    %1296 = vmatpush1.msra.mxu0 0.0
    %1297 = vmatprep.subr.mxu0 0.0
    %1298 = vmatpush1.msra.mxu0 0.0
    %1299 = vmatprep.subr.mxu0 0.0
    %1300 = vmatpush1.msra.mxu0 0.0
    %1301 = vmatprep.subr.mxu0 0.0
    %1302 = vmatpush1.msra.mxu0 0.0
    %1303 = vmatprep.subr.mxu0 0.0
    %1304 = vmatpush1.msra.mxu0 0.0
    %1305 = vmatprep.subr.mxu0 0.0
    %1306 = vmatpush1.msra.mxu0 0.0
    %1307 = vmatprep.subr.mxu0 0.0
    %1308 = vmatpush1.msra.mxu0 0.0
    %1309 = vmatprep.subr.mxu0 0.0
    %1310 = vmatpush1.msra.mxu0 0.0
    %1311 = vmatprep.subr.mxu0 0.0
    %1312 = vmatpush1.msra.mxu0 0.0
    %1313 = vmatprep.mubr.f32.mxu0 0.0
    %1314 = vmatmul.mubr.f32.gmra.mrb[0].mxu0 %v1241
    %v1315 = vpop.f32.mrb[0].mxu0
    %v1316 = vadd.f32 %v1239, %v1315
    %v1317 = vpop.f32.mrb[0].mxu0
    %1318 = vmatprep.mubr.f32.mxu0 0.0
    %1319 = vmatmul.mubr.f32.gmra.mrb[0].mxu0 %v1244
    %v1320 = vpop.f32.mrb[0].mxu0
    %v1321 = vadd.f32 %v1239, %v1320
    %v1322 = vpop.f32.mrb[0].mxu0
    %1323 = vmatprep.mubr.f32.mxu0 0.0
    %1324 = vmatmul.mubr.f32.gmra.mrb[0].mxu0 %v1247
    %v1325 = vpop.f32.mrb[0].mxu0
    %v1326 = vadd.f32 %v1239, %v1325
    %v1327 = vpop.f32.mrb[0].mxu0
    %1328 = vdwg.mxu0
    %v1329 = vadd.f32 %v30, %v1316
    %v1330 = vadd.f32 %v31, %v1321
    %v1331 = vadd.f32 %v32, %v1326
    %v1332 = vsel %vm78, %v1329, 0.0
    %1333 = vadd.xlane.f32.xlu0 %v1332
    %v1334 = vpop.xlane.xlu0 %1333
    %v1335 = vsel %vm78, %v1330, 0.0
    %1336 = vadd.xlane.f32.xlu0 %v1335
    %v1337 = vpop.xlane.xlu0 %1336
    %v1338 = vsel %vm78, %v1331, 0.0
    %1339 = vadd.xlane.f32.xlu0 %v1338
    %v1340 = vpop.xlane.xlu0 %1339
    %v1341 = vrcp.pop 32.0
    %v1342 = vmul.f32 %v1334, %v1341
    %v1343 = vmul.f32 %v1337, %v1341
    %v1344 = vmul.f32 %v1340, %v1341
    %v1345 = vsub.f32 %v1329, %v1342
    %v1346 = vsub.f32 %v1330, %v1343
    %v1347 = vsub.f32 %v1331, %v1344
    %v1348 = vmul.f32 %v1345, %v1345
    %v1349 = vmul.f32 %v1346, %v1346
    %v1350 = vmul.f32 %v1347, %v1347
    %v1351 = vsel %vm78, %v1348, 0.0
    %1352 = vadd.xlane.f32.xlu0 %v1351
    %v1353 = vpop.xlane.xlu0 %1352
    %v1354 = vsel %vm78, %v1349, 0.0
    %1355 = vadd.xlane.f32.xlu0 %v1354
    %v1356 = vpop.xlane.xlu0 %1355
    %v1357 = vsel %vm78, %v1350, 0.0
    %1358 = vadd.xlane.f32.xlu0 %v1357
    %v1359 = vpop.xlane.xlu0 %1358
    %v1360 = vmul.f32 %v1353, %v1341
    %v1361 = vmul.f32 %v1356, %v1341
    %v1362 = vmul.f32 %v1359, %v1341
    %v1363 = vadd.f32 %v1360, 1e-05
    %v1364 = vadd.f32 %v1361, 1e-05
    %v1365 = vadd.f32 %v1362, 1e-05
    %v1366 = vrsqrt.pop %v1363
    %v1367 = vrsqrt.pop %v1364
    %v1368 = vrsqrt.pop %v1365
    %v1369 = vmul.f32 %v1345, %v1366
    %v1370 = vmul.f32 %v1346, %v1367
    %v1371 = vmul.f32 %v1347, %v1368
    %v1372 = vlaneseq
    %v1373 = vshrl.u32 %v1372, 7
    %v1374 = vsub.s32 0, %v1373
    %v1375 = vrot.slane %v61, %v1374
    %v1376 = vmul.f32 %v1369, %v1375
    %v1377 = vmul.f32 %v1370, %v1375
    %v1378 = vmul.f32 %v1371, %v1375
    %v1379 = vlaneseq
    %v1380 = vshrl.u32 %v1379, 7
    %v1381 = vsub.s32 0, %v1380
    %v1382 = vrot.slane %v62, %v1381
    %v1383 = vadd.f32 %v1376, %v1382
    %v1384 = vadd.f32 %v1377, %v1382
    %v1385 = vadd.f32 %v1378, %v1382
    %v1386 = vlaneseq
    %v1387 = vshrl.u32 %v1386, 7
    %v1388 = vsub.s32 0, %v1387
    %v1389 = vrot.slane %v63, %v1388
    %v1391 = vsel %vm78, %v1383, 0
    %v1394 = vsel %vm78, %v1384, 0
    %v1397 = vsel %vm78, %v1385, 0
    %1399 = vmatprep.subr.mxu0 0.0
    %1400 = vmatpush1.msra.mxu0 %v46
    %1401 = vmatprep.subr.mxu0 0.0
    %1402 = vmatpush1.msra.mxu0 %v47
    %1403 = vmatprep.subr.mxu0 0.0
    %1404 = vmatpush1.msra.mxu0 %v48
    %1405 = vmatprep.subr.mxu0 0.0
    %1406 = vmatpush1.msra.mxu0 %v49
    %1407 = vmatprep.subr.mxu0 0.0
    %1408 = vmatpush1.msra.mxu0 0.0
    %1409 = vmatprep.subr.mxu0 0.0
    %1410 = vmatpush1.msra.mxu0 0.0
    %1411 = vmatprep.subr.mxu0 0.0
    %1412 = vmatpush1.msra.mxu0 0.0
    %1413 = vmatprep.subr.mxu0 0.0
    %1414 = vmatpush1.msra.mxu0 0.0
    %1415 = vmatprep.subr.mxu0 0.0
    %1416 = vmatpush1.msra.mxu0 0.0
    %1417 = vmatprep.subr.mxu0 0.0
    %1418 = vmatpush1.msra.mxu0 0.0
    %1419 = vmatprep.subr.mxu0 0.0
    %1420 = vmatpush1.msra.mxu0 0.0
    %1421 = vmatprep.subr.mxu0 0.0
    %1422 = vmatpush1.msra.mxu0 0.0
    %1423 = vmatprep.subr.mxu0 0.0
    %1424 = vmatpush1.msra.mxu0 0.0
    %1425 = vmatprep.subr.mxu0 0.0
    %1426 = vmatpush1.msra.mxu0 0.0
    %1427 = vmatprep.subr.mxu0 0.0
    %1428 = vmatpush1.msra.mxu0 0.0
    %1429 = vmatprep.subr.mxu0 0.0
    %1430 = vmatpush1.msra.mxu0 0.0
    %1431 = vmatprep.subr.mxu0 0.0
    %1432 = vmatpush1.msra.mxu0 0.0
    %1433 = vmatprep.subr.mxu0 0.0
    %1434 = vmatpush1.msra.mxu0 0.0
    %1435 = vmatprep.subr.mxu0 0.0
    %1436 = vmatpush1.msra.mxu0 0.0
    %1437 = vmatprep.subr.mxu0 0.0
    %1438 = vmatpush1.msra.mxu0 0.0
    %1439 = vmatprep.subr.mxu0 0.0
    %1440 = vmatpush1.msra.mxu0 0.0
    %1441 = vmatprep.subr.mxu0 0.0
    %1442 = vmatpush1.msra.mxu0 0.0
    %1443 = vmatprep.subr.mxu0 0.0
    %1444 = vmatpush1.msra.mxu0 0.0
    %1445 = vmatprep.subr.mxu0 0.0
    %1446 = vmatpush1.msra.mxu0 0.0
    %1447 = vmatprep.subr.mxu0 0.0
    %1448 = vmatpush1.msra.mxu0 0.0
    %1449 = vmatprep.subr.mxu0 0.0
    %1450 = vmatpush1.msra.mxu0 0.0
    %1451 = vmatprep.subr.mxu0 0.0
    %1452 = vmatpush1.msra.mxu0 0.0
    %1453 = vmatprep.subr.mxu0 0.0
    %1454 = vmatpush1.msra.mxu0 0.0
    %1455 = vmatprep.subr.mxu0 0.0
    %1456 = vmatpush1.msra.mxu0 0.0
    %1457 = vmatprep.subr.mxu0 0.0
    %1458 = vmatpush1.msra.mxu0 0.0
    %1459 = vmatprep.subr.mxu0 0.0
    %1460 = vmatpush1.msra.mxu0 0.0
    %1461 = vmatprep.subr.mxu0 0.0
    %1462 = vmatpush1.msra.mxu0 0.0
    %1463 = vmatprep.mubr.f32.mxu0 0.0
    %1464 = vmatmul.mubr.f32.gmra.mrb[0].mxu0 %v1391
    %v1465 = vpop.f32.mrb[0].mxu0
    %v1466 = vadd.f32 %v1389, %v1465
    %v1467 = vpop.f32.mrb[0].mxu0
    %1468 = vmatprep.mubr.f32.mxu0 0.0
    %1469 = vmatmul.mubr.f32.gmra.mrb[0].mxu0 %v1394
    %v1470 = vpop.f32.mrb[0].mxu0
    %v1471 = vadd.f32 %v1389, %v1470
    %v1472 = vpop.f32.mrb[0].mxu0
    %1473 = vmatprep.mubr.f32.mxu0 0.0
    %1474 = vmatmul.mubr.f32.gmra.mrb[0].mxu0 %v1397
    %v1475 = vpop.f32.mrb[0].mxu0
    %v1476 = vadd.f32 %v1389, %v1475
    %v1477 = vpop.f32.mrb[0].mxu0
    %1478 = vdwg.mxu0
    %v1479 = vmax.f32 %v1466, 0.0
    %v1480 = vmax.f32 %v1471, 0.0
    %v1481 = vmax.f32 %v1476, 0.0
    %v1482 = vlaneseq
    %v1483 = vshrl.u32 %v1482, 7
    %v1484 = vsub.s32 0, %v1483
    %v1485 = vrot.slane %v64, %v1484
    %v1487 = vsel %vm674, %v1479, 0
    %v1490 = vsel %vm674, %v1480, 0
    %v1493 = vsel %vm674, %v1481, 0
    %1495 = vmatprep.subr.mxu0 0.0
    %1496 = vmatpush1.msra.mxu0 %v50
    %1497 = vmatprep.subr.mxu0 0.0
    %1498 = vmatpush1.msra.mxu0 %v51
    %1499 = vmatprep.subr.mxu0 0.0
    %1500 = vmatpush1.msra.mxu0 %v52
    %1501 = vmatprep.subr.mxu0 0.0
    %1502 = vmatpush1.msra.mxu0 %v53
    %1503 = vmatprep.subr.mxu0 0.0
    %1504 = vmatpush1.msra.mxu0 %v54
    %1505 = vmatprep.subr.mxu0 0.0
    %1506 = vmatpush1.msra.mxu0 %v55
    %1507 = vmatprep.subr.mxu0 0.0
    %1508 = vmatpush1.msra.mxu0 %v56
    %1509 = vmatprep.subr.mxu0 0.0
    %1510 = vmatpush1.msra.mxu0 %v57
    %1511 = vmatprep.subr.mxu0 0.0
    %1512 = vmatpush1.msra.mxu0 0.0
    %1513 = vmatprep.subr.mxu0 0.0
    %1514 = vmatpush1.msra.mxu0 0.0
    %1515 = vmatprep.subr.mxu0 0.0
    %1516 = vmatpush1.msra.mxu0 0.0
    %1517 = vmatprep.subr.mxu0 0.0
    %1518 = vmatpush1.msra.mxu0 0.0
    %1519 = vmatprep.subr.mxu0 0.0
    %1520 = vmatpush1.msra.mxu0 0.0
    %1521 = vmatprep.subr.mxu0 0.0
    %1522 = vmatpush1.msra.mxu0 0.0
    %1523 = vmatprep.subr.mxu0 0.0
    %1524 = vmatpush1.msra.mxu0 0.0
    %1525 = vmatprep.subr.mxu0 0.0
    %1526 = vmatpush1.msra.mxu0 0.0
    %1527 = vmatprep.subr.mxu0 0.0
    %1528 = vmatpush1.msra.mxu0 0.0
    %1529 = vmatprep.subr.mxu0 0.0
    %1530 = vmatpush1.msra.mxu0 0.0
    %1531 = vmatprep.subr.mxu0 0.0
    %1532 = vmatpush1.msra.mxu0 0.0
    %1533 = vmatprep.subr.mxu0 0.0
    %1534 = vmatpush1.msra.mxu0 0.0
    %1535 = vmatprep.subr.mxu0 0.0
    %1536 = vmatpush1.msra.mxu0 0.0
    %1537 = vmatprep.subr.mxu0 0.0
    %1538 = vmatpush1.msra.mxu0 0.0
    %1539 = vmatprep.subr.mxu0 0.0
    %1540 = vmatpush1.msra.mxu0 0.0
    %1541 = vmatprep.subr.mxu0 0.0
    %1542 = vmatpush1.msra.mxu0 0.0
    %1543 = vmatprep.subr.mxu0 0.0
    %1544 = vmatpush1.msra.mxu0 0.0
    %1545 = vmatprep.subr.mxu0 0.0
    %1546 = vmatpush1.msra.mxu0 0.0
    %1547 = vmatprep.subr.mxu0 0.0
    %1548 = vmatpush1.msra.mxu0 0.0
    %1549 = vmatprep.subr.mxu0 0.0
    %1550 = vmatpush1.msra.mxu0 0.0
    %1551 = vmatprep.subr.mxu0 0.0
    %1552 = vmatpush1.msra.mxu0 0.0
    %1553 = vmatprep.subr.mxu0 0.0
    %1554 = vmatpush1.msra.mxu0 0.0
    %1555 = vmatprep.subr.mxu0 0.0
    %1556 = vmatpush1.msra.mxu0 0.0
    %1557 = vmatprep.subr.mxu0 0.0
    %1558 = vmatpush1.msra.mxu0 0.0
    %1559 = vmatprep.mubr.f32.mxu0 0.0
    %1560 = vmatmul.mubr.f32.gmra.mrb[0].mxu0 %v1487
    %v1561 = vpop.f32.mrb[0].mxu0
    %v1562 = vadd.f32 %v1485, %v1561
    %v1563 = vpop.f32.mrb[0].mxu0
    %1564 = vmatprep.mubr.f32.mxu0 0.0
    %1565 = vmatmul.mubr.f32.gmra.mrb[0].mxu0 %v1490
    %v1566 = vpop.f32.mrb[0].mxu0
    %v1567 = vadd.f32 %v1485, %v1566
    %v1568 = vpop.f32.mrb[0].mxu0
    %1569 = vmatprep.mubr.f32.mxu0 0.0
    %1570 = vmatmul.mubr.f32.gmra.mrb[0].mxu0 %v1493
    %v1571 = vpop.f32.mrb[0].mxu0
    %v1572 = vadd.f32 %v1485, %v1571
    %v1573 = vpop.f32.mrb[0].mxu0
    %1574 = vdwg.mxu0
    %v1575 = vadd.f32 %v1383, %v1562
    %v1576 = vadd.f32 %v1384, %v1567
    %v1577 = vadd.f32 %v1385, %v1572
    %v1578 = vsel %vm78, %v1575, 0.0
    %1579 = vadd.xlane.f32.xlu0 %v1578
    %v1580 = vpop.xlane.xlu0 %1579
    %v1581 = vsel %vm78, %v1576, 0.0
    %1582 = vadd.xlane.f32.xlu0 %v1581
    %v1583 = vpop.xlane.xlu0 %1582
    %v1584 = vsel %vm78, %v1577, 0.0
    %1585 = vadd.xlane.f32.xlu0 %v1584
    %v1586 = vpop.xlane.xlu0 %1585
    %v1587 = vmul.f32 %v1580, %v1341
    %v1588 = vmul.f32 %v1583, %v1341
    %v1589 = vmul.f32 %v1586, %v1341
    %v1590 = vsub.f32 %v1575, %v1587
    %v1591 = vsub.f32 %v1576, %v1588
    %v1592 = vsub.f32 %v1577, %v1589
    %v1593 = vmul.f32 %v1590, %v1590
    %v1594 = vmul.f32 %v1591, %v1591
    %v1595 = vmul.f32 %v1592, %v1592
    %v1596 = vsel %vm78, %v1593, 0.0
    %1597 = vadd.xlane.f32.xlu0 %v1596
    %v1598 = vpop.xlane.xlu0 %1597
    %v1599 = vsel %vm78, %v1594, 0.0
    %1600 = vadd.xlane.f32.xlu0 %v1599
    %v1601 = vpop.xlane.xlu0 %1600
    %v1602 = vsel %vm78, %v1595, 0.0
    %1603 = vadd.xlane.f32.xlu0 %v1602
    %v1604 = vpop.xlane.xlu0 %1603
    %v1605 = vmul.f32 %v1598, %v1341
    %v1606 = vmul.f32 %v1601, %v1341
    %v1607 = vmul.f32 %v1604, %v1341
    %v1608 = vadd.f32 %v1605, 1e-05
    %v1609 = vadd.f32 %v1606, 1e-05
    %v1610 = vadd.f32 %v1607, 1e-05
    %v1611 = vrsqrt.pop %v1608
    %v1612 = vrsqrt.pop %v1609
    %v1613 = vrsqrt.pop %v1610
    %v1614 = vmul.f32 %v1590, %v1611
    %v1615 = vmul.f32 %v1591, %v1612
    %v1616 = vmul.f32 %v1592, %v1613
    %v1617 = vlaneseq
    %v1618 = vshrl.u32 %v1617, 7
    %v1619 = vsub.s32 0, %v1618
    %v1620 = vrot.slane %v65, %v1619
    %v1621 = vmul.f32 %v1614, %v1620
    %v1622 = vmul.f32 %v1615, %v1620
    %v1623 = vmul.f32 %v1616, %v1620
    %v1624 = vlaneseq
    %v1625 = vshrl.u32 %v1624, 7
    %v1626 = vsub.s32 0, %v1625
    %v1627 = vrot.slane %v66, %v1626
    %v1628 = vadd.f32 %v1621, %v1627
    %v1629 = vadd.f32 %v1622, %v1627
    %v1630 = vadd.f32 %v1623, %v1627
    %s1631 = scalar_lea.vmem %s1, 32
    %v1632 = vld [vmem:[%s1631] sm:$0xff]
    %v1633 = vld [vmem:[%s1631 + $0x8] sm:$0xff]
    %v1634 = vld [vmem:[%s1631 + $0x10] sm:$0xff]
    %v1635 = vld [vmem:[%s1631 + $0x18] sm:$0xff]
    %s1636 = scalar_lea.vmem %s2, 32
    %v1637 = vld [vmem:[%s1636] sm:$0xff]
    %v1638 = vld [vmem:[%s1636 + $0x8] sm:$0xff]
    %v1639 = vld [vmem:[%s1636 + $0x10] sm:$0xff]
    %v1640 = vld [vmem:[%s1636 + $0x18] sm:$0xff]
    %s1641 = scalar_lea.vmem %s3, 32
    %v1642 = vld [vmem:[%s1641] sm:$0xff]
    %v1643 = vld [vmem:[%s1641 + $0x8] sm:$0xff]
    %v1644 = vld [vmem:[%s1641 + $0x10] sm:$0xff]
    %v1645 = vld [vmem:[%s1641 + $0x18] sm:$0xff]
    %s1646 = scalar_lea.vmem %s4, 32
    %v1647 = vld [vmem:[%s1646] sm:$0xff]
    %v1648 = vld [vmem:[%s1646 + $0x8] sm:$0xff]
    %v1649 = vld [vmem:[%s1646 + $0x10] sm:$0xff]
    %v1650 = vld [vmem:[%s1646 + $0x18] sm:$0xff]
    %s1651 = scalar_lea.vmem %s5, 64
    %v1652 = vld [vmem:[%s1651] sm:$0xff]
    %v1653 = vld [vmem:[%s1651 + $0x8] sm:$0xff]
    %v1654 = vld [vmem:[%s1651 + $0x10] sm:$0xff]
    %v1655 = vld [vmem:[%s1651 + $0x18] sm:$0xff]
    %v1656 = vld [vmem:[%s1651 + $0x20] sm:$0xff]
    %v1657 = vld [vmem:[%s1651 + $0x28] sm:$0xff]
    %v1658 = vld [vmem:[%s1651 + $0x30] sm:$0xff]
    %v1659 = vld [vmem:[%s1651 + $0x38] sm:$0xff]
    %s1660 = scalar_lea.vmem %s6, 16
    %v1661 = vld [vmem:[%s1660] sm:$0x1]
    %v1662 = vld [vmem:[%s1660 + $0x1] sm:$0x1]
    %v1663 = vld [vmem:[%s1660 + $0x2] sm:$0x1]
    %v1664 = vld [vmem:[%s1660 + $0x3] sm:$0x1]
    %v1665 = vld [vmem:[%s1660 + $0x4] sm:$0x1]
    %v1666 = vld [vmem:[%s1660 + $0x5] sm:$0x1]
    %v1667 = vld [vmem:[%s1660 + $0x6] sm:$0x1]
    %v1668 = vld [vmem:[%s1660 + $0x7] sm:$0x1]
    %v1669 = vld [vmem:[%s1660 + $0x8] sm:$0x1]
    %v1670 = vadd.f32 %v1628, %v68
    %v1671 = vadd.f32 %v1629, %v69
    %v1672 = vadd.f32 %v1630, %v70
    %v1673 = vlaneseq
    %v1674 = vshrl.u32 %v1673, 7
    %v1675 = vsub.s32 0, %v1674
    %v1676 = vrot.slane %v1661, %v1675
    %v1678 = vsel %vm78, %v1628, 0
    %v1681 = vsel %vm78, %v1629, 0
    %v1684 = vsel %vm78, %v1630, 0
    %1686 = vmatprep.subr.mxu0 0.0
    %1687 = vmatpush1.msra.mxu0 %v1632
    %1688 = vmatprep.subr.mxu0 0.0
    %1689 = vmatpush1.msra.mxu0 %v1633
    %1690 = vmatprep.subr.mxu0 0.0
    %1691 = vmatpush1.msra.mxu0 %v1634
    %1692 = vmatprep.subr.mxu0 0.0
    %1693 = vmatpush1.msra.mxu0 %v1635
    %1694 = vmatprep.subr.mxu0 0.0
    %1695 = vmatpush1.msra.mxu0 0.0
    %1696 = vmatprep.subr.mxu0 0.0
    %1697 = vmatpush1.msra.mxu0 0.0
    %1698 = vmatprep.subr.mxu0 0.0
    %1699 = vmatpush1.msra.mxu0 0.0
    %1700 = vmatprep.subr.mxu0 0.0
    %1701 = vmatpush1.msra.mxu0 0.0
    %1702 = vmatprep.subr.mxu0 0.0
    %1703 = vmatpush1.msra.mxu0 0.0
    %1704 = vmatprep.subr.mxu0 0.0
    %1705 = vmatpush1.msra.mxu0 0.0
    %1706 = vmatprep.subr.mxu0 0.0
    %1707 = vmatpush1.msra.mxu0 0.0
    %1708 = vmatprep.subr.mxu0 0.0
    %1709 = vmatpush1.msra.mxu0 0.0
    %1710 = vmatprep.subr.mxu0 0.0
    %1711 = vmatpush1.msra.mxu0 0.0
    %1712 = vmatprep.subr.mxu0 0.0
    %1713 = vmatpush1.msra.mxu0 0.0
    %1714 = vmatprep.subr.mxu0 0.0
    %1715 = vmatpush1.msra.mxu0 0.0
    %1716 = vmatprep.subr.mxu0 0.0
    %1717 = vmatpush1.msra.mxu0 0.0
    %1718 = vmatprep.subr.mxu0 0.0
    %1719 = vmatpush1.msra.mxu0 0.0
    %1720 = vmatprep.subr.mxu0 0.0
    %1721 = vmatpush1.msra.mxu0 0.0
    %1722 = vmatprep.subr.mxu0 0.0
    %1723 = vmatpush1.msra.mxu0 0.0
    %1724 = vmatprep.subr.mxu0 0.0
    %1725 = vmatpush1.msra.mxu0 0.0
    %1726 = vmatprep.subr.mxu0 0.0
    %1727 = vmatpush1.msra.mxu0 0.0
    %1728 = vmatprep.subr.mxu0 0.0
    %1729 = vmatpush1.msra.mxu0 0.0
    %1730 = vmatprep.subr.mxu0 0.0
    %1731 = vmatpush1.msra.mxu0 0.0
    %1732 = vmatprep.subr.mxu0 0.0
    %1733 = vmatpush1.msra.mxu0 0.0
    %1734 = vmatprep.subr.mxu0 0.0
    %1735 = vmatpush1.msra.mxu0 0.0
    %1736 = vmatprep.subr.mxu0 0.0
    %1737 = vmatpush1.msra.mxu0 0.0
    %1738 = vmatprep.subr.mxu0 0.0
    %1739 = vmatpush1.msra.mxu0 0.0
    %1740 = vmatprep.subr.mxu0 0.0
    %1741 = vmatpush1.msra.mxu0 0.0
    %1742 = vmatprep.subr.mxu0 0.0
    %1743 = vmatpush1.msra.mxu0 0.0
    %1744 = vmatprep.subr.mxu0 0.0
    %1745 = vmatpush1.msra.mxu0 0.0
    %1746 = vmatprep.subr.mxu0 0.0
    %1747 = vmatpush1.msra.mxu0 0.0
    %1748 = vmatprep.subr.mxu0 0.0
    %1749 = vmatpush1.msra.mxu0 0.0
    %1750 = vmatprep.mubr.f32.mxu0 0.0
    %1751 = vmatmul.mubr.f32.gmra.mrb[0].mxu0 %v1678
    %v1752 = vpop.f32.mrb[0].mxu0
    %v1753 = vadd.f32 %v1676, %v1752
    %v1754 = vpop.f32.mrb[0].mxu0
    %1755 = vmatprep.mubr.f32.mxu0 0.0
    %1756 = vmatmul.mubr.f32.gmra.mrb[0].mxu0 %v1681
    %v1757 = vpop.f32.mrb[0].mxu0
    %v1758 = vadd.f32 %v1676, %v1757
    %v1759 = vpop.f32.mrb[0].mxu0
    %1760 = vmatprep.mubr.f32.mxu0 0.0
    %1761 = vmatmul.mubr.f32.gmra.mrb[0].mxu0 %v1684
    %v1762 = vpop.f32.mrb[0].mxu0
    %v1763 = vadd.f32 %v1676, %v1762
    %v1764 = vpop.f32.mrb[0].mxu0
    %1765 = vdwg.mxu0
    %v1766 = vmul.f32 %v1753, %v169
    %v1767 = vmul.f32 %v1758, %v170
    %v1768 = vmul.f32 %v1763, %v171
    %v1769 = vlaneseq
    %v1770 = vshrl.u32 %v1769, 7
    %v1771 = vsub.s32 0, %v1770
    %v1772 = vrot.slane %v1662, %v1771
    %v1774 = vsel %vm78, %v1670, 0
    %v1777 = vsel %vm78, %v1671, 0
    %v1780 = vsel %vm78, %v1672, 0
    %1782 = vmatprep.subr.mxu0 0.0
    %1783 = vmatpush1.msra.mxu0 %v1637
    %1784 = vmatprep.subr.mxu0 0.0
    %1785 = vmatpush1.msra.mxu0 %v1638
    %1786 = vmatprep.subr.mxu0 0.0
    %1787 = vmatpush1.msra.mxu0 %v1639
    %1788 = vmatprep.subr.mxu0 0.0
    %1789 = vmatpush1.msra.mxu0 %v1640
    %1790 = vmatprep.subr.mxu0 0.0
    %1791 = vmatpush1.msra.mxu0 0.0
    %1792 = vmatprep.subr.mxu0 0.0
    %1793 = vmatpush1.msra.mxu0 0.0
    %1794 = vmatprep.subr.mxu0 0.0
    %1795 = vmatpush1.msra.mxu0 0.0
    %1796 = vmatprep.subr.mxu0 0.0
    %1797 = vmatpush1.msra.mxu0 0.0
    %1798 = vmatprep.subr.mxu0 0.0
    %1799 = vmatpush1.msra.mxu0 0.0
    %1800 = vmatprep.subr.mxu0 0.0
    %1801 = vmatpush1.msra.mxu0 0.0
    %1802 = vmatprep.subr.mxu0 0.0
    %1803 = vmatpush1.msra.mxu0 0.0
    %1804 = vmatprep.subr.mxu0 0.0
    %1805 = vmatpush1.msra.mxu0 0.0
    %1806 = vmatprep.subr.mxu0 0.0
    %1807 = vmatpush1.msra.mxu0 0.0
    %1808 = vmatprep.subr.mxu0 0.0
    %1809 = vmatpush1.msra.mxu0 0.0
    %1810 = vmatprep.subr.mxu0 0.0
    %1811 = vmatpush1.msra.mxu0 0.0
    %1812 = vmatprep.subr.mxu0 0.0
    %1813 = vmatpush1.msra.mxu0 0.0
    %1814 = vmatprep.subr.mxu0 0.0
    %1815 = vmatpush1.msra.mxu0 0.0
    %1816 = vmatprep.subr.mxu0 0.0
    %1817 = vmatpush1.msra.mxu0 0.0
    %1818 = vmatprep.subr.mxu0 0.0
    %1819 = vmatpush1.msra.mxu0 0.0
    %1820 = vmatprep.subr.mxu0 0.0
    %1821 = vmatpush1.msra.mxu0 0.0
    %1822 = vmatprep.subr.mxu0 0.0
    %1823 = vmatpush1.msra.mxu0 0.0
    %1824 = vmatprep.subr.mxu0 0.0
    %1825 = vmatpush1.msra.mxu0 0.0
    %1826 = vmatprep.subr.mxu0 0.0
    %1827 = vmatpush1.msra.mxu0 0.0
    %1828 = vmatprep.subr.mxu0 0.0
    %1829 = vmatpush1.msra.mxu0 0.0
    %1830 = vmatprep.subr.mxu0 0.0
    %1831 = vmatpush1.msra.mxu0 0.0
    %1832 = vmatprep.subr.mxu0 0.0
    %1833 = vmatpush1.msra.mxu0 0.0
    %1834 = vmatprep.subr.mxu0 0.0
    %1835 = vmatpush1.msra.mxu0 0.0
    %1836 = vmatprep.subr.mxu0 0.0
    %1837 = vmatpush1.msra.mxu0 0.0
    %1838 = vmatprep.subr.mxu0 0.0
    %1839 = vmatpush1.msra.mxu0 0.0
    %1840 = vmatprep.subr.mxu0 0.0
    %1841 = vmatpush1.msra.mxu0 0.0
    %1842 = vmatprep.subr.mxu0 0.0
    %1843 = vmatpush1.msra.mxu0 0.0
    %1844 = vmatprep.subr.mxu0 0.0
    %1845 = vmatpush1.msra.mxu0 0.0
    %1846 = vmatprep.mubr.f32.mxu0 0.0
    %1847 = vmatmul.mubr.f32.gmra.mrb[0].mxu0 %v1774
    %v1848 = vpop.f32.mrb[0].mxu0
    %v1849 = vadd.f32 %v1772, %v1848
    %v1850 = vpop.f32.mrb[0].mxu0
    %1851 = vmatprep.mubr.f32.mxu0 0.0
    %1852 = vmatmul.mubr.f32.gmra.mrb[0].mxu0 %v1777
    %v1853 = vpop.f32.mrb[0].mxu0
    %v1854 = vadd.f32 %v1772, %v1853
    %v1855 = vpop.f32.mrb[0].mxu0
    %1856 = vmatprep.mubr.f32.mxu0 0.0
    %1857 = vmatmul.mubr.f32.gmra.mrb[0].mxu0 %v1780
    %v1858 = vpop.f32.mrb[0].mxu0
    %v1859 = vadd.f32 %v1772, %v1858
    %v1860 = vpop.f32.mrb[0].mxu0
    %1861 = vdwg.mxu0
    %v1862 = vsel %vm268, %v1849, -inf
    %1863 = vmax.xlane.f32.xlu0 %v1862
    %v1864 = vpop.xlane.xlu0 %1863
    %v1865 = vsel %vm268, %v1854, -inf
    %1866 = vmax.xlane.f32.xlu0 %v1865
    %v1867 = vpop.xlane.xlu0 %1866
    %v1868 = vsel %vm268, %v1859, -inf
    %1869 = vmax.xlane.f32.xlu0 %v1868
    %v1870 = vpop.xlane.xlu0 %1869
    %v1871 = vsub.f32 %v1849, %v1864
    %v1872 = vsub.f32 %v1854, %v1867
    %v1873 = vsub.f32 %v1859, %v1870
    %v1874 = vmul.f32 %v1871, 1.442695
    %v1875 = vpow.pop %v1874
    %v1876 = vmul.f32 %v1872, 1.442695
    %v1877 = vpow.pop %v1876
    %v1878 = vmul.f32 %v1873, 1.442695
    %v1879 = vpow.pop %v1878
    %1883 = vrot.lane.b32.xlu0 %v1875, 96
    %v1884 = vpop.permute.xlu0 %1883
    %1885 = vrot.lane.b32.xlu0 %v1877, 96
    %v1886 = vpop.permute.xlu0 %1885
    %1887 = vrot.lane.b32.xlu0 %v1879, 96
    %v1888 = vpop.permute.xlu0 %1887
    %v1889 = vsel %vm78, %v1884, 0
    %v1891 = vsel %vm78, %v1886, 0
    %v1893 = vsel %vm78, %v1888, 0
    %1895 = vmatprep.subr.mxu0 0.0
    %1896 = vmatpush1.msra.mxu0 %v287
    %1897 = vmatprep.subr.mxu0 0.0
    %1898 = vmatpush1.msra.mxu0 %v288
    %1899 = vmatprep.subr.mxu0 0.0
    %1900 = vmatpush1.msra.mxu0 %v289
    %1901 = vmatprep.subr.mxu0 0.0
    %1902 = vmatpush1.msra.mxu0 %v290
    %1903 = vmatprep.subr.mxu0 0.0
    %1904 = vmatpush1.msra.mxu0 0.0
    %1905 = vmatprep.subr.mxu0 0.0
    %1906 = vmatpush1.msra.mxu0 0.0
    %1907 = vmatprep.subr.mxu0 0.0
    %1908 = vmatpush1.msra.mxu0 0.0
    %1909 = vmatprep.subr.mxu0 0.0
    %1910 = vmatpush1.msra.mxu0 0.0
    %1911 = vmatprep.subr.mxu0 0.0
    %1912 = vmatpush1.msra.mxu0 0.0
    %1913 = vmatprep.subr.mxu0 0.0
    %1914 = vmatpush1.msra.mxu0 0.0
    %1915 = vmatprep.subr.mxu0 0.0
    %1916 = vmatpush1.msra.mxu0 0.0
    %1917 = vmatprep.subr.mxu0 0.0
    %1918 = vmatpush1.msra.mxu0 0.0
    %1919 = vmatprep.subr.mxu0 0.0
    %1920 = vmatpush1.msra.mxu0 0.0
    %1921 = vmatprep.subr.mxu0 0.0
    %1922 = vmatpush1.msra.mxu0 0.0
    %1923 = vmatprep.subr.mxu0 0.0
    %1924 = vmatpush1.msra.mxu0 0.0
    %1925 = vmatprep.subr.mxu0 0.0
    %1926 = vmatpush1.msra.mxu0 0.0
    %1927 = vmatprep.subr.mxu0 0.0
    %1928 = vmatpush1.msra.mxu0 0.0
    %1929 = vmatprep.subr.mxu0 0.0
    %1930 = vmatpush1.msra.mxu0 0.0
    %1931 = vmatprep.subr.mxu0 0.0
    %1932 = vmatpush1.msra.mxu0 0.0
    %1933 = vmatprep.subr.mxu0 0.0
    %1934 = vmatpush1.msra.mxu0 0.0
    %1935 = vmatprep.subr.mxu0 0.0
    %1936 = vmatpush1.msra.mxu0 0.0
    %1937 = vmatprep.subr.mxu0 0.0
    %1938 = vmatpush1.msra.mxu0 0.0
    %1939 = vmatprep.subr.mxu0 0.0
    %1940 = vmatpush1.msra.mxu0 0.0
    %1941 = vmatprep.subr.mxu0 0.0
    %1942 = vmatpush1.msra.mxu0 0.0
    %1943 = vmatprep.subr.mxu0 0.0
    %1944 = vmatpush1.msra.mxu0 0.0
    %1945 = vmatprep.subr.mxu0 0.0
    %1946 = vmatpush1.msra.mxu0 0.0
    %1947 = vmatprep.subr.mxu0 0.0
    %1948 = vmatpush1.msra.mxu0 0.0
    %1949 = vmatprep.subr.mxu0 0.0
    %1950 = vmatpush1.msra.mxu0 0.0
    %1951 = vmatprep.subr.mxu0 0.0
    %1952 = vmatpush1.msra.mxu0 0.0
    %1953 = vmatprep.subr.mxu0 0.0
    %1954 = vmatpush1.msra.mxu0 0.0
    %1955 = vmatprep.subr.mxu0 0.0
    %1956 = vmatpush1.msra.mxu0 0.0
    %1957 = vmatprep.subr.mxu0 0.0
    %1958 = vmatpush1.msra.mxu0 0.0
    %1959 = vmatprep.mubr.f32.mxu0 0.0
    %1960 = vmatmul.mubr.f32.gmra.mrb[0].mxu0 %v1889
    %v1961 = vpop.f32.mrb[0].mxu0
    %v1962 = vadd.f32 0.0, %v1961
    %v1963 = vpop.f32.mrb[0].mxu0
    %1964 = vmatprep.mubr.f32.mxu0 0.0
    %1965 = vmatmul.mubr.f32.gmra.mrb[0].mxu0 %v1891
    %v1966 = vpop.f32.mrb[0].mxu0
    %v1967 = vadd.f32 0.0, %v1966
    %v1968 = vpop.f32.mrb[0].mxu0
    %1969 = vmatprep.mubr.f32.mxu0 0.0
    %1970 = vmatmul.mubr.f32.gmra.mrb[0].mxu0 %v1893
    %v1971 = vpop.f32.mrb[0].mxu0
    %v1972 = vadd.f32 0.0, %v1971
    %v1973 = vpop.f32.mrb[0].mxu0
    %1974 = vdwg.mxu0
    %1978 = vrot.lane.b32.xlu0 %v1962, 32
    %v1979 = vpop.permute.xlu0 %1978
    %1980 = vrot.lane.b32.xlu0 %v1967, 32
    %v1981 = vpop.permute.xlu0 %1980
    %1982 = vrot.lane.b32.xlu0 %v1972, 32
    %v1983 = vpop.permute.xlu0 %1982
    %v1987 = vrcp.pop %v1979
    %v1988 = vmul.f32 %v1875, %v1987
    %v1989 = vrcp.pop %v1981
    %v1990 = vmul.f32 %v1877, %v1989
    %v1991 = vrcp.pop %v1983
    %v1992 = vmul.f32 %v1879, %v1991
    %v1993 = vadd.f32 %v405, %v1849
    %v1994 = vadd.f32 %v406, %v1854
    %v1995 = vadd.f32 %v407, %v1859
    %v1997 = vsel %vm78, %v1993, 0
    %v2000 = vsel %vm78, %v1994, 0
    %v2003 = vsel %vm78, %v1995, 0
    %2005 = vmatprep.subr.mxu0 %v412
    %2006 = vmatpush1.msra.mxu0 %v411
    %2007 = vmatprep.subr.mxu0 %v414
    %2008 = vmatpush1.msra.mxu0 %v413
    %2009 = vmatprep.subr.mxu0 %v416
    %2010 = vmatpush1.msra.mxu0 %v415
    %2011 = vmatprep.subr.mxu0 %v418
    %2012 = vmatpush1.msra.mxu0 %v417
    %2013 = vmatprep.subr.mxu0 0.0
    %2014 = vmatpush1.msra.mxu0 0.0
    %2015 = vmatprep.subr.mxu0 0.0
    %2016 = vmatpush1.msra.mxu0 0.0
    %2017 = vmatprep.subr.mxu0 0.0
    %2018 = vmatpush1.msra.mxu0 0.0
    %2019 = vmatprep.subr.mxu0 0.0
    %2020 = vmatpush1.msra.mxu0 0.0
    %2021 = vmatprep.subr.mxu0 0.0
    %2022 = vmatpush1.msra.mxu0 0.0
    %2023 = vmatprep.subr.mxu0 0.0
    %2024 = vmatpush1.msra.mxu0 0.0
    %2025 = vmatprep.subr.mxu0 0.0
    %2026 = vmatpush1.msra.mxu0 0.0
    %2027 = vmatprep.subr.mxu0 0.0
    %2028 = vmatpush1.msra.mxu0 0.0
    %2029 = vmatprep.subr.mxu0 0.0
    %2030 = vmatpush1.msra.mxu0 0.0
    %2031 = vmatprep.subr.mxu0 0.0
    %2032 = vmatpush1.msra.mxu0 0.0
    %2033 = vmatprep.subr.mxu0 0.0
    %2034 = vmatpush1.msra.mxu0 0.0
    %2035 = vmatprep.subr.mxu0 0.0
    %2036 = vmatpush1.msra.mxu0 0.0
    %2037 = vmatprep.subr.mxu0 0.0
    %2038 = vmatpush1.msra.mxu0 0.0
    %2039 = vmatprep.subr.mxu0 0.0
    %2040 = vmatpush1.msra.mxu0 0.0
    %2041 = vmatprep.subr.mxu0 0.0
    %2042 = vmatpush1.msra.mxu0 0.0
    %2043 = vmatprep.subr.mxu0 0.0
    %2044 = vmatpush1.msra.mxu0 0.0
    %2045 = vmatprep.subr.mxu0 0.0
    %2046 = vmatpush1.msra.mxu0 0.0
    %2047 = vmatprep.subr.mxu0 0.0
    %2048 = vmatpush1.msra.mxu0 0.0
    %2049 = vmatprep.subr.mxu0 0.0
    %2050 = vmatpush1.msra.mxu0 0.0
    %2051 = vmatprep.subr.mxu0 0.0
    %2052 = vmatpush1.msra.mxu0 0.0
    %2053 = vmatprep.subr.mxu0 0.0
    %2054 = vmatpush1.msra.mxu0 0.0
    %2055 = vmatprep.subr.mxu0 0.0
    %2056 = vmatpush1.msra.mxu0 0.0
    %2057 = vmatprep.subr.mxu0 0.0
    %2058 = vmatpush1.msra.mxu0 0.0
    %2059 = vmatprep.subr.mxu0 0.0
    %2060 = vmatpush1.msra.mxu0 0.0
    %2061 = vmatprep.subr.mxu0 0.0
    %2062 = vmatpush1.msra.mxu0 0.0
    %2063 = vmatprep.subr.mxu0 0.0
    %2064 = vmatpush1.msra.mxu0 0.0
    %2065 = vmatprep.subr.mxu0 0.0
    %2066 = vmatpush1.msra.mxu0 0.0
    %2067 = vmatprep.subr.mxu0 0.0
    %2068 = vmatpush1.msra.mxu0 0.0
    %2069 = vmatprep.mubr.f32.mxu0 0.0
    %2070 = vmatmul.mubr.f32.gmra.mrb[0].mxu0 %v1997
    %v2071 = vpop.f32.mrb[0].mxu0
    %v2072 = vadd.f32 0.0, %v2071
    %v2073 = vpop.f32.mrb[0].mxu0
    %v2074 = vadd.f32 0.0, %v2073
    %2075 = vmatprep.mubr.f32.mxu0 0.0
    %2076 = vmatmul.mubr.f32.gmra.mrb[0].mxu0 %v2000
    %v2077 = vpop.f32.mrb[0].mxu0
    %v2078 = vadd.f32 0.0, %v2077
    %v2079 = vpop.f32.mrb[0].mxu0
    %v2080 = vadd.f32 0.0, %v2079
    %2081 = vmatprep.mubr.f32.mxu0 0.0
    %2082 = vmatmul.mubr.f32.gmra.mrb[0].mxu0 %v2003
    %v2083 = vpop.f32.mrb[0].mxu0
    %v2084 = vadd.f32 0.0, %v2083
    %v2085 = vpop.f32.mrb[0].mxu0
    %v2086 = vadd.f32 0.0, %v2085
    %2087 = vdwg.mxu0
    %2091 = vrot.lane.b32.xlu0 %v1988, 96
    %v2092 = vpop.permute.xlu0 %2091
    %2093 = vrot.lane.b32.xlu0 %v1990, 96
    %v2094 = vpop.permute.xlu0 %2093
    %2095 = vrot.lane.b32.xlu0 %v1992, 96
    %v2096 = vpop.permute.xlu0 %2095
    %v2097 = vsel %vm78, %v2092, 0
    %v2099 = vsel %vm78, %v2094, 0
    %v2101 = vsel %vm78, %v2096, 0
    %2103 = vmatprep.subr.mxu0 %v412
    %2104 = vmatpush1.msra.mxu0 %v411
    %2105 = vmatprep.subr.mxu0 %v414
    %2106 = vmatpush1.msra.mxu0 %v413
    %2107 = vmatprep.subr.mxu0 %v416
    %2108 = vmatpush1.msra.mxu0 %v415
    %2109 = vmatprep.subr.mxu0 %v418
    %2110 = vmatpush1.msra.mxu0 %v417
    %2111 = vmatprep.subr.mxu0 0.0
    %2112 = vmatpush1.msra.mxu0 0.0
    %2113 = vmatprep.subr.mxu0 0.0
    %2114 = vmatpush1.msra.mxu0 0.0
    %2115 = vmatprep.subr.mxu0 0.0
    %2116 = vmatpush1.msra.mxu0 0.0
    %2117 = vmatprep.subr.mxu0 0.0
    %2118 = vmatpush1.msra.mxu0 0.0
    %2119 = vmatprep.subr.mxu0 0.0
    %2120 = vmatpush1.msra.mxu0 0.0
    %2121 = vmatprep.subr.mxu0 0.0
    %2122 = vmatpush1.msra.mxu0 0.0
    %2123 = vmatprep.subr.mxu0 0.0
    %2124 = vmatpush1.msra.mxu0 0.0
    %2125 = vmatprep.subr.mxu0 0.0
    %2126 = vmatpush1.msra.mxu0 0.0
    %2127 = vmatprep.subr.mxu0 0.0
    %2128 = vmatpush1.msra.mxu0 0.0
    %2129 = vmatprep.subr.mxu0 0.0
    %2130 = vmatpush1.msra.mxu0 0.0
    %2131 = vmatprep.subr.mxu0 0.0
    %2132 = vmatpush1.msra.mxu0 0.0
    %2133 = vmatprep.subr.mxu0 0.0
    %2134 = vmatpush1.msra.mxu0 0.0
    %2135 = vmatprep.subr.mxu0 0.0
    %2136 = vmatpush1.msra.mxu0 0.0
    %2137 = vmatprep.subr.mxu0 0.0
    %2138 = vmatpush1.msra.mxu0 0.0
    %2139 = vmatprep.subr.mxu0 0.0
    %2140 = vmatpush1.msra.mxu0 0.0
    %2141 = vmatprep.subr.mxu0 0.0
    %2142 = vmatpush1.msra.mxu0 0.0
    %2143 = vmatprep.subr.mxu0 0.0
    %2144 = vmatpush1.msra.mxu0 0.0
    %2145 = vmatprep.subr.mxu0 0.0
    %2146 = vmatpush1.msra.mxu0 0.0
    %2147 = vmatprep.subr.mxu0 0.0
    %2148 = vmatpush1.msra.mxu0 0.0
    %2149 = vmatprep.subr.mxu0 0.0
    %2150 = vmatpush1.msra.mxu0 0.0
    %2151 = vmatprep.subr.mxu0 0.0
    %2152 = vmatpush1.msra.mxu0 0.0
    %2153 = vmatprep.subr.mxu0 0.0
    %2154 = vmatpush1.msra.mxu0 0.0
    %2155 = vmatprep.subr.mxu0 0.0
    %2156 = vmatpush1.msra.mxu0 0.0
    %2157 = vmatprep.subr.mxu0 0.0
    %2158 = vmatpush1.msra.mxu0 0.0
    %2159 = vmatprep.subr.mxu0 0.0
    %2160 = vmatpush1.msra.mxu0 0.0
    %2161 = vmatprep.subr.mxu0 0.0
    %2162 = vmatpush1.msra.mxu0 0.0
    %2163 = vmatprep.subr.mxu0 0.0
    %2164 = vmatpush1.msra.mxu0 0.0
    %2165 = vmatprep.subr.mxu0 0.0
    %2166 = vmatpush1.msra.mxu0 0.0
    %2167 = vmatprep.mubr.f32.mxu0 0.0
    %2168 = vmatmul.mubr.f32.gmra.mrb[0].mxu0 %v2097
    %v2169 = vpop.f32.mrb[0].mxu0
    %v2170 = vadd.f32 0.0, %v2169
    %v2171 = vpop.f32.mrb[0].mxu0
    %v2172 = vadd.f32 0.0, %v2171
    %2173 = vmatprep.mubr.f32.mxu0 0.0
    %2174 = vmatmul.mubr.f32.gmra.mrb[0].mxu0 %v2099
    %v2175 = vpop.f32.mrb[0].mxu0
    %v2176 = vadd.f32 0.0, %v2175
    %v2177 = vpop.f32.mrb[0].mxu0
    %v2178 = vadd.f32 0.0, %v2177
    %2179 = vmatprep.mubr.f32.mxu0 0.0
    %2180 = vmatmul.mubr.f32.gmra.mrb[0].mxu0 %v2101
    %v2181 = vpop.f32.mrb[0].mxu0
    %v2182 = vadd.f32 0.0, %v2181
    %v2183 = vpop.f32.mrb[0].mxu0
    %v2184 = vadd.f32 0.0, %v2183
    %2185 = vdwg.mxu0
    %v2186 = vsub.f32 %v2072, %v613
    %v2187 = vsub.f32 %v2074, %v617
    %v2188 = vsub.f32 %v2078, %v613
    %v2189 = vsub.f32 %v2080, %v617
    %v2190 = vsub.f32 %v2084, %v613
    %v2191 = vsub.f32 %v2086, %v617
    %v2192 = vand.u32 2147483647, %v2186
    %v2193 = vand.u32 2147483647, %v2187
    %v2194 = vand.u32 2147483647, %v2188
    %v2195 = vand.u32 2147483647, %v2189
    %v2196 = vand.u32 2147483647, %v2190
    %v2197 = vand.u32 2147483647, %v2191
    %v2198 = vsub.f32 1.0, %v2192
    %v2199 = vsub.f32 1.0, %v2193
    %v2200 = vsub.f32 1.0, %v2194
    %v2201 = vsub.f32 1.0, %v2195
    %v2202 = vsub.f32 1.0, %v2196
    %v2203 = vsub.f32 1.0, %v2197
    %v2204 = vmax.f32 %v2198, 0.0
    %v2205 = vmax.f32 %v2199, 0.0
    %v2206 = vmax.f32 %v2200, 0.0
    %v2207 = vmax.f32 %v2201, 0.0
    %v2208 = vmax.f32 %v2202, 0.0
    %v2209 = vmax.f32 %v2203, 0.0
    %v2210 = vmul.f32 %v2204, %v2170
    %v2211 = vmul.f32 %v2205, %v2172
    %v2212 = vmul.f32 %v2206, %v2176
    %v2213 = vmul.f32 %v2207, %v2178
    %v2214 = vmul.f32 %v2208, %v2182
    %v2215 = vmul.f32 %v2209, %v2184
    %v2217 = vsel %vm674, %v2211, 0
    %v2220 = vsel %vm674, %v2213, 0
    %v2223 = vsel %vm674, %v2215, 0
    %2225 = vmatprep.subr.mxu0 0.0
    %2226 = vmatpush1.msra.mxu0 %v650
    %2227 = vmatprep.subr.mxu0 0.0
    %2228 = vmatpush1.msra.mxu0 %v651
    %2229 = vmatprep.subr.mxu0 0.0
    %2230 = vmatpush1.msra.mxu0 %v652
    %2231 = vmatprep.subr.mxu0 0.0
    %2232 = vmatpush1.msra.mxu0 %v653
    %2233 = vmatprep.subr.mxu0 0.0
    %2234 = vmatpush1.msra.mxu0 %v654
    %2235 = vmatprep.subr.mxu0 0.0
    %2236 = vmatpush1.msra.mxu0 %v655
    %2237 = vmatprep.subr.mxu0 0.0
    %2238 = vmatpush1.msra.mxu0 %v656
    %2239 = vmatprep.subr.mxu0 0.0
    %2240 = vmatpush1.msra.mxu0 %v657
    %2241 = vmatprep.subr.mxu0 0.0
    %2242 = vmatpush1.msra.mxu0 %v658
    %2243 = vmatprep.subr.mxu0 0.0
    %2244 = vmatpush1.msra.mxu0 %v659
    %2245 = vmatprep.subr.mxu0 0.0
    %2246 = vmatpush1.msra.mxu0 %v660
    %2247 = vmatprep.subr.mxu0 0.0
    %2248 = vmatpush1.msra.mxu0 %v661
    %2249 = vmatprep.subr.mxu0 0.0
    %2250 = vmatpush1.msra.mxu0 %v662
    %2251 = vmatprep.subr.mxu0 0.0
    %2252 = vmatpush1.msra.mxu0 %v663
    %2253 = vmatprep.subr.mxu0 0.0
    %2254 = vmatpush1.msra.mxu0 %v664
    %2255 = vmatprep.subr.mxu0 0.0
    %2256 = vmatpush1.msra.mxu0 %v665
    %2257 = vmatprep.subr.mxu0 0.0
    %2258 = vmatpush1.msra.mxu0 %v666
    %2259 = vmatprep.subr.mxu0 0.0
    %2260 = vmatpush1.msra.mxu0 %v667
    %2261 = vmatprep.subr.mxu0 0.0
    %2262 = vmatpush1.msra.mxu0 %v668
    %2263 = vmatprep.subr.mxu0 0.0
    %2264 = vmatpush1.msra.mxu0 %v669
    %2265 = vmatprep.subr.mxu0 0.0
    %2266 = vmatpush1.msra.mxu0 %v670
    %2267 = vmatprep.subr.mxu0 0.0
    %2268 = vmatpush1.msra.mxu0 %v671
    %2269 = vmatprep.subr.mxu0 0.0
    %2270 = vmatpush1.msra.mxu0 %v672
    %2271 = vmatprep.subr.mxu0 0.0
    %2272 = vmatpush1.msra.mxu0 %v673
    %2273 = vmatprep.subr.mxu0 0.0
    %2274 = vmatpush1.msra.mxu0 0.0
    %2275 = vmatprep.subr.mxu0 0.0
    %2276 = vmatpush1.msra.mxu0 0.0
    %2277 = vmatprep.subr.mxu0 0.0
    %2278 = vmatpush1.msra.mxu0 0.0
    %2279 = vmatprep.subr.mxu0 0.0
    %2280 = vmatpush1.msra.mxu0 0.0
    %2281 = vmatprep.subr.mxu0 0.0
    %2282 = vmatpush1.msra.mxu0 0.0
    %2283 = vmatprep.subr.mxu0 0.0
    %2284 = vmatpush1.msra.mxu0 0.0
    %2285 = vmatprep.subr.mxu0 0.0
    %2286 = vmatpush1.msra.mxu0 0.0
    %2287 = vmatprep.subr.mxu0 0.0
    %2288 = vmatpush1.msra.mxu0 0.0
    %2289 = vmatprep.mubr.f32.mxu0 %v2217
    %2290 = vmatmul.mubr.f32.gmra.mrb[0].mxu0 %v2210
    %v2291 = vpop.f32.mrb[0].mxu0
    %v2292 = vadd.f32 0.0, %v2291
    %v2293 = vpop.f32.mrb[0].mxu0
    %2294 = vmatprep.mubr.f32.mxu0 %v2220
    %2295 = vmatmul.mubr.f32.gmra.mrb[0].mxu0 %v2212
    %v2296 = vpop.f32.mrb[0].mxu0
    %v2297 = vadd.f32 0.0, %v2296
    %v2298 = vpop.f32.mrb[0].mxu0
    %2299 = vmatprep.mubr.f32.mxu0 %v2223
    %2300 = vmatmul.mubr.f32.gmra.mrb[0].mxu0 %v2214
    %v2301 = vpop.f32.mrb[0].mxu0
    %v2302 = vadd.f32 0.0, %v2301
    %v2303 = vpop.f32.mrb[0].mxu0
    %2304 = vdwg.mxu0
    %2305 = vmatprep.subr.mxu0 0.0
    %2306 = vmatpush1.msra.mxu0 %v1766
    %2307 = vmatprep.subr.mxu0 0.0
    %2308 = vmatpush1.msra.mxu0 %v1767
    %2309 = vmatprep.subr.mxu0 0.0
    %2310 = vmatpush1.msra.mxu0 %v1768
    %2311 = vmatprep.subr.mxu0 0.0
    %2312 = vmatpush1.msra.mxu0 0.0
    %2313 = vmatprep.subr.mxu0 0.0
    %2314 = vmatpush1.msra.mxu0 0.0
    %2315 = vmatprep.subr.mxu0 0.0
    %2316 = vmatpush1.msra.mxu0 0.0
    %2317 = vmatprep.subr.mxu0 0.0
    %2318 = vmatpush1.msra.mxu0 0.0
    %2319 = vmatprep.subr.mxu0 0.0
    %2320 = vmatpush1.msra.mxu0 0.0
    %2321 = vmatprep.subr.mxu0 0.0
    %2322 = vmatpush1.msra.mxu0 0.0
    %2323 = vmatprep.subr.mxu0 0.0
    %2324 = vmatpush1.msra.mxu0 0.0
    %2325 = vmatprep.subr.mxu0 0.0
    %2326 = vmatpush1.msra.mxu0 0.0
    %2327 = vmatprep.subr.mxu0 0.0
    %2328 = vmatpush1.msra.mxu0 0.0
    %2329 = vmatprep.subr.mxu0 0.0
    %2330 = vmatpush1.msra.mxu0 0.0
    %2331 = vmatprep.subr.mxu0 0.0
    %2332 = vmatpush1.msra.mxu0 0.0
    %2333 = vmatprep.subr.mxu0 0.0
    %2334 = vmatpush1.msra.mxu0 0.0
    %2335 = vmatprep.subr.mxu0 0.0
    %2336 = vmatpush1.msra.mxu0 0.0
    %2337 = vmatprep.subr.mxu0 0.0
    %2338 = vmatpush1.msra.mxu0 0.0
    %2339 = vmatprep.subr.mxu0 0.0
    %2340 = vmatpush1.msra.mxu0 0.0
    %2341 = vmatprep.subr.mxu0 0.0
    %2342 = vmatpush1.msra.mxu0 0.0
    %2343 = vmatprep.subr.mxu0 0.0
    %2344 = vmatpush1.msra.mxu0 0.0
    %2345 = vmatprep.subr.mxu0 0.0
    %2346 = vmatpush1.msra.mxu0 0.0
    %2347 = vmatprep.subr.mxu0 0.0
    %2348 = vmatpush1.msra.mxu0 0.0
    %2349 = vmatprep.subr.mxu0 0.0
    %2350 = vmatpush1.msra.mxu0 0.0
    %2351 = vmatprep.subr.mxu0 0.0
    %2352 = vmatpush1.msra.mxu0 0.0
    %2353 = vmatprep.subr.mxu0 0.0
    %2354 = vmatpush1.msra.mxu0 0.0
    %2355 = vmatprep.subr.mxu0 0.0
    %2356 = vmatpush1.msra.mxu0 0.0
    %2357 = vmatprep.subr.mxu0 0.0
    %2358 = vmatpush1.msra.mxu0 0.0
    %2359 = vmatprep.subr.mxu0 0.0
    %2360 = vmatpush1.msra.mxu0 0.0
    %2361 = vmatprep.subr.mxu0 0.0
    %2362 = vmatpush1.msra.mxu0 0.0
    %2363 = vmatprep.subr.mxu0 0.0
    %2364 = vmatpush1.msra.mxu0 0.0
    %2365 = vmatprep.subr.mxu0 0.0
    %2366 = vmatpush1.msra.mxu0 0.0
    %2367 = vmatprep.subr.mxu0 0.0
    %2368 = vmatpush1.msra.mxu0 0.0
    %2369 = vmatprep.mubr.f32.mxu0 0.0
    %2370 = vmatmul.mubr.f32.gmra.mrb[0].mxu0 %v778
    %v2371 = vpop.f32.mrb[0].mxu0
    %v2372 = vadd.f32 0.0, %v2371
    %v2373 = vpop.f32.mrb[0].mxu0
    %2374 = vmatprep.mubr.f32.mxu0 0.0
    %2375 = vmatmul.mubr.f32.gmra.mrb[0].mxu0 %v781
    %v2376 = vpop.f32.mrb[0].mxu0
    %v2377 = vadd.f32 0.0, %v2376
    %v2378 = vpop.f32.mrb[0].mxu0
    %2379 = vmatprep.mubr.f32.mxu0 0.0
    %2380 = vmatmul.mubr.f32.gmra.mrb[0].mxu0 %v784
    %v2381 = vpop.f32.mrb[0].mxu0
    %v2382 = vadd.f32 0.0, %v2381
    %v2383 = vpop.f32.mrb[0].mxu0
    %2384 = vmatprep.mubr.f32.mxu0 0.0
    %2385 = vmatmul.mubr.f32.gmra.mrb[0].mxu0 %v787
    %v2386 = vpop.f32.mrb[0].mxu0
    %v2387 = vadd.f32 0.0, %v2386
    %v2388 = vpop.f32.mrb[0].mxu0
    %2389 = vmatprep.mubr.f32.mxu0 0.0
    %2390 = vmatmul.mubr.f32.gmra.mrb[0].mxu0 %v790
    %v2391 = vpop.f32.mrb[0].mxu0
    %v2392 = vadd.f32 0.0, %v2391
    %v2393 = vpop.f32.mrb[0].mxu0
    %2394 = vmatprep.mubr.f32.mxu0 0.0
    %2395 = vmatmul.mubr.f32.gmra.mrb[0].mxu0 %v793
    %v2396 = vpop.f32.mrb[0].mxu0
    %v2397 = vadd.f32 0.0, %v2396
    %v2398 = vpop.f32.mrb[0].mxu0
    %2399 = vdwg.mxu0
    %v2400 = vmul.f32 %v2372, %v764
    %v2401 = vmul.f32 %v2377, %v765
    %v2402 = vmul.f32 %v2382, %v766
    %v2403 = vmul.f32 %v2387, %v767
    %v2404 = vmul.f32 %v2392, %v768
    %v2405 = vmul.f32 %v2397, %v769
    %v2406 = vmul.f32 %v2292, %v902
    %v2407 = vmul.f32 %v2297, %v907
    %v2408 = vmul.f32 %v2302, %v912
    %2409 = vmatprep.subr.mxu0 0.0
    %2410 = vmatpush1.msra.mxu0 %v1766
    %2411 = vmatprep.subr.mxu0 0.0
    %2412 = vmatpush1.msra.mxu0 %v1767
    %2413 = vmatprep.subr.mxu0 0.0
    %2414 = vmatpush1.msra.mxu0 %v1768
    %2415 = vmatprep.subr.mxu0 0.0
    %2416 = vmatpush1.msra.mxu0 0.0
    %2417 = vmatprep.subr.mxu0 0.0
    %2418 = vmatpush1.msra.mxu0 0.0
    %2419 = vmatprep.subr.mxu0 0.0
    %2420 = vmatpush1.msra.mxu0 0.0
    %2421 = vmatprep.subr.mxu0 0.0
    %2422 = vmatpush1.msra.mxu0 0.0
    %2423 = vmatprep.subr.mxu0 0.0
    %2424 = vmatpush1.msra.mxu0 0.0
    %2425 = vmatprep.subr.mxu0 0.0
    %2426 = vmatpush1.msra.mxu0 0.0
    %2427 = vmatprep.subr.mxu0 0.0
    %2428 = vmatpush1.msra.mxu0 0.0
    %2429 = vmatprep.subr.mxu0 0.0
    %2430 = vmatpush1.msra.mxu0 0.0
    %2431 = vmatprep.subr.mxu0 0.0
    %2432 = vmatpush1.msra.mxu0 0.0
    %2433 = vmatprep.subr.mxu0 0.0
    %2434 = vmatpush1.msra.mxu0 0.0
    %2435 = vmatprep.subr.mxu0 0.0
    %2436 = vmatpush1.msra.mxu0 0.0
    %2437 = vmatprep.subr.mxu0 0.0
    %2438 = vmatpush1.msra.mxu0 0.0
    %2439 = vmatprep.subr.mxu0 0.0
    %2440 = vmatpush1.msra.mxu0 0.0
    %2441 = vmatprep.subr.mxu0 0.0
    %2442 = vmatpush1.msra.mxu0 0.0
    %2443 = vmatprep.subr.mxu0 0.0
    %2444 = vmatpush1.msra.mxu0 0.0
    %2445 = vmatprep.subr.mxu0 0.0
    %2446 = vmatpush1.msra.mxu0 0.0
    %2447 = vmatprep.subr.mxu0 0.0
    %2448 = vmatpush1.msra.mxu0 0.0
    %2449 = vmatprep.subr.mxu0 0.0
    %2450 = vmatpush1.msra.mxu0 0.0
    %2451 = vmatprep.subr.mxu0 0.0
    %2452 = vmatpush1.msra.mxu0 0.0
    %2453 = vmatprep.subr.mxu0 0.0
    %2454 = vmatpush1.msra.mxu0 0.0
    %2455 = vmatprep.subr.mxu0 0.0
    %2456 = vmatpush1.msra.mxu0 0.0
    %2457 = vmatprep.subr.mxu0 0.0
    %2458 = vmatpush1.msra.mxu0 0.0
    %2459 = vmatprep.subr.mxu0 0.0
    %2460 = vmatpush1.msra.mxu0 0.0
    %2461 = vmatprep.subr.mxu0 0.0
    %2462 = vmatpush1.msra.mxu0 0.0
    %2463 = vmatprep.subr.mxu0 0.0
    %2464 = vmatpush1.msra.mxu0 0.0
    %2465 = vmatprep.subr.mxu0 0.0
    %2466 = vmatpush1.msra.mxu0 0.0
    %2467 = vmatprep.subr.mxu0 0.0
    %2468 = vmatpush1.msra.mxu0 0.0
    %2469 = vmatprep.subr.mxu0 0.0
    %2470 = vmatpush1.msra.mxu0 0.0
    %2471 = vmatprep.subr.mxu0 0.0
    %2472 = vmatpush1.msra.mxu0 0.0
    %2473 = vmatprep.mubr.f32.mxu0 0.0
    %2474 = vmatmul.mubr.f32.gmra.mrb[0].mxu0 %v924
    %v2475 = vpop.f32.mrb[0].mxu0
    %v2476 = vadd.f32 0.0, %v2475
    %v2477 = vpop.f32.mrb[0].mxu0
    %2478 = vmatprep.mubr.f32.mxu0 0.0
    %2479 = vmatmul.mubr.f32.gmra.mrb[0].mxu0 %v927
    %v2480 = vpop.f32.mrb[0].mxu0
    %v2481 = vadd.f32 0.0, %v2480
    %v2482 = vpop.f32.mrb[0].mxu0
    %2483 = vmatprep.mubr.f32.mxu0 0.0
    %2484 = vmatmul.mubr.f32.gmra.mrb[0].mxu0 %v930
    %v2485 = vpop.f32.mrb[0].mxu0
    %v2486 = vadd.f32 0.0, %v2485
    %v2487 = vpop.f32.mrb[0].mxu0
    %2488 = vmatprep.mubr.f32.mxu0 0.0
    %2489 = vmatmul.mubr.f32.gmra.mrb[0].mxu0 %v933
    %v2490 = vpop.f32.mrb[0].mxu0
    %v2491 = vadd.f32 0.0, %v2490
    %v2492 = vpop.f32.mrb[0].mxu0
    %2493 = vmatprep.mubr.f32.mxu0 0.0
    %2494 = vmatmul.mubr.f32.gmra.mrb[0].mxu0 %v936
    %v2495 = vpop.f32.mrb[0].mxu0
    %v2496 = vadd.f32 0.0, %v2495
    %v2497 = vpop.f32.mrb[0].mxu0
    %2498 = vmatprep.mubr.f32.mxu0 0.0
    %2499 = vmatmul.mubr.f32.gmra.mrb[0].mxu0 %v939
    %v2500 = vpop.f32.mrb[0].mxu0
    %v2501 = vadd.f32 0.0, %v2500
    %v2502 = vpop.f32.mrb[0].mxu0
    %2503 = vdwg.mxu0
    %v2504 = vmul.f32 %v2476, %v764
    %v2505 = vmul.f32 %v2481, %v765
    %v2506 = vmul.f32 %v2486, %v766
    %v2507 = vmul.f32 %v2491, %v767
    %v2508 = vmul.f32 %v2496, %v768
    %v2509 = vmul.f32 %v2501, %v769
    %v2510 = vmul.f32 %v2292, %v1044
    %v2511 = vmul.f32 %v2297, %v1048
    %v2512 = vmul.f32 %v2302, %v1052
    %v2514 = vsel %vm1057, %v2510, 0
    %v2517 = vsel %vm1057, %v2511, 0
    %v2520 = vsel %vm1057, %v2512, 0
    %2522 = vmatprep.subr.mxu0 0.0
    %2523 = vmatpush1.msra.mxu0 %v2504
    %2524 = vmatprep.subr.mxu0 0.0
    %2525 = vmatpush1.msra.mxu0 %v2505
    %2526 = vmatprep.subr.mxu0 0.0
    %2527 = vmatpush1.msra.mxu0 %v2506
    %2528 = vmatprep.subr.mxu0 0.0
    %2529 = vmatpush1.msra.mxu0 %v2507
    %2530 = vmatprep.subr.mxu0 0.0
    %2531 = vmatpush1.msra.mxu0 %v2508
    %2532 = vmatprep.subr.mxu0 0.0
    %2533 = vmatpush1.msra.mxu0 %v2509
    %2534 = vmatprep.subr.mxu0 0.0
    %2535 = vmatpush1.msra.mxu0 0.0
    %2536 = vmatprep.subr.mxu0 0.0
    %2537 = vmatpush1.msra.mxu0 0.0
    %2538 = vmatprep.subr.mxu0 0.0
    %2539 = vmatpush1.msra.mxu0 0.0
    %2540 = vmatprep.subr.mxu0 0.0
    %2541 = vmatpush1.msra.mxu0 0.0
    %2542 = vmatprep.subr.mxu0 0.0
    %2543 = vmatpush1.msra.mxu0 0.0
    %2544 = vmatprep.subr.mxu0 0.0
    %2545 = vmatpush1.msra.mxu0 0.0
    %2546 = vmatprep.subr.mxu0 0.0
    %2547 = vmatpush1.msra.mxu0 0.0
    %2548 = vmatprep.subr.mxu0 0.0
    %2549 = vmatpush1.msra.mxu0 0.0
    %2550 = vmatprep.subr.mxu0 0.0
    %2551 = vmatpush1.msra.mxu0 0.0
    %2552 = vmatprep.subr.mxu0 0.0
    %2553 = vmatpush1.msra.mxu0 0.0
    %2554 = vmatprep.subr.mxu0 0.0
    %2555 = vmatpush1.msra.mxu0 0.0
    %2556 = vmatprep.subr.mxu0 0.0
    %2557 = vmatpush1.msra.mxu0 0.0
    %2558 = vmatprep.subr.mxu0 0.0
    %2559 = vmatpush1.msra.mxu0 0.0
    %2560 = vmatprep.subr.mxu0 0.0
    %2561 = vmatpush1.msra.mxu0 0.0
    %2562 = vmatprep.subr.mxu0 0.0
    %2563 = vmatpush1.msra.mxu0 0.0
    %2564 = vmatprep.subr.mxu0 0.0
    %2565 = vmatpush1.msra.mxu0 0.0
    %2566 = vmatprep.subr.mxu0 0.0
    %2567 = vmatpush1.msra.mxu0 0.0
    %2568 = vmatprep.subr.mxu0 0.0
    %2569 = vmatpush1.msra.mxu0 0.0
    %2570 = vmatprep.subr.mxu0 0.0
    %2571 = vmatpush1.msra.mxu0 0.0
    %2572 = vmatprep.subr.mxu0 0.0
    %2573 = vmatpush1.msra.mxu0 0.0
    %2574 = vmatprep.subr.mxu0 0.0
    %2575 = vmatpush1.msra.mxu0 0.0
    %2576 = vmatprep.subr.mxu0 0.0
    %2577 = vmatpush1.msra.mxu0 0.0
    %2578 = vmatprep.subr.mxu0 0.0
    %2579 = vmatpush1.msra.mxu0 0.0
    %2580 = vmatprep.subr.mxu0 0.0
    %2581 = vmatpush1.msra.mxu0 0.0
    %2582 = vmatprep.subr.mxu0 0.0
    %2583 = vmatpush1.msra.mxu0 0.0
    %2584 = vmatprep.subr.mxu0 0.0
    %2585 = vmatpush1.msra.mxu0 0.0
    %2586 = vmatprep.mubr.f32.mxu0 0.0
    %2587 = vmatmul.mubr.f32.gmra.mrb[0].mxu0 %v2514
    %v2588 = vpop.f32.mrb[0].mxu0
    %v2589 = vadd.f32 0.0, %v2588
    %v2590 = vpop.f32.mrb[0].mxu0
    %2591 = vmatprep.mubr.f32.mxu0 0.0
    %2592 = vmatmul.mubr.f32.gmra.mrb[0].mxu0 %v2517
    %v2593 = vpop.f32.mrb[0].mxu0
    %v2594 = vadd.f32 0.0, %v2593
    %v2595 = vpop.f32.mrb[0].mxu0
    %2596 = vmatprep.mubr.f32.mxu0 0.0
    %2597 = vmatmul.mubr.f32.gmra.mrb[0].mxu0 %v2520
    %v2598 = vpop.f32.mrb[0].mxu0
    %v2599 = vadd.f32 0.0, %v2598
    %v2600 = vpop.f32.mrb[0].mxu0
    %2601 = vdwg.mxu0
    %v2603 = vsel %vm1057, %v2406, 0
    %v2606 = vsel %vm1057, %v2407, 0
    %v2609 = vsel %vm1057, %v2408, 0
    %2611 = vmatprep.subr.mxu0 0.0
    %2612 = vmatpush1.msra.mxu0 %v2400
    %2613 = vmatprep.subr.mxu0 0.0
    %2614 = vmatpush1.msra.mxu0 %v2401
    %2615 = vmatprep.subr.mxu0 0.0
    %2616 = vmatpush1.msra.mxu0 %v2402
    %2617 = vmatprep.subr.mxu0 0.0
    %2618 = vmatpush1.msra.mxu0 %v2403
    %2619 = vmatprep.subr.mxu0 0.0
    %2620 = vmatpush1.msra.mxu0 %v2404
    %2621 = vmatprep.subr.mxu0 0.0
    %2622 = vmatpush1.msra.mxu0 %v2405
    %2623 = vmatprep.subr.mxu0 0.0
    %2624 = vmatpush1.msra.mxu0 0.0
    %2625 = vmatprep.subr.mxu0 0.0
    %2626 = vmatpush1.msra.mxu0 0.0
    %2627 = vmatprep.subr.mxu0 0.0
    %2628 = vmatpush1.msra.mxu0 0.0
    %2629 = vmatprep.subr.mxu0 0.0
    %2630 = vmatpush1.msra.mxu0 0.0
    %2631 = vmatprep.subr.mxu0 0.0
    %2632 = vmatpush1.msra.mxu0 0.0
    %2633 = vmatprep.subr.mxu0 0.0
    %2634 = vmatpush1.msra.mxu0 0.0
    %2635 = vmatprep.subr.mxu0 0.0
    %2636 = vmatpush1.msra.mxu0 0.0
    %2637 = vmatprep.subr.mxu0 0.0
    %2638 = vmatpush1.msra.mxu0 0.0
    %2639 = vmatprep.subr.mxu0 0.0
    %2640 = vmatpush1.msra.mxu0 0.0
    %2641 = vmatprep.subr.mxu0 0.0
    %2642 = vmatpush1.msra.mxu0 0.0
    %2643 = vmatprep.subr.mxu0 0.0
    %2644 = vmatpush1.msra.mxu0 0.0
    %2645 = vmatprep.subr.mxu0 0.0
    %2646 = vmatpush1.msra.mxu0 0.0
    %2647 = vmatprep.subr.mxu0 0.0
    %2648 = vmatpush1.msra.mxu0 0.0
    %2649 = vmatprep.subr.mxu0 0.0
    %2650 = vmatpush1.msra.mxu0 0.0
    %2651 = vmatprep.subr.mxu0 0.0
    %2652 = vmatpush1.msra.mxu0 0.0
    %2653 = vmatprep.subr.mxu0 0.0
    %2654 = vmatpush1.msra.mxu0 0.0
    %2655 = vmatprep.subr.mxu0 0.0
    %2656 = vmatpush1.msra.mxu0 0.0
    %2657 = vmatprep.subr.mxu0 0.0
    %2658 = vmatpush1.msra.mxu0 0.0
    %2659 = vmatprep.subr.mxu0 0.0
    %2660 = vmatpush1.msra.mxu0 0.0
    %2661 = vmatprep.subr.mxu0 0.0
    %2662 = vmatpush1.msra.mxu0 0.0
    %2663 = vmatprep.subr.mxu0 0.0
    %2664 = vmatpush1.msra.mxu0 0.0
    %2665 = vmatprep.subr.mxu0 0.0
    %2666 = vmatpush1.msra.mxu0 0.0
    %2667 = vmatprep.subr.mxu0 0.0
    %2668 = vmatpush1.msra.mxu0 0.0
    %2669 = vmatprep.subr.mxu0 0.0
    %2670 = vmatpush1.msra.mxu0 0.0
    %2671 = vmatprep.subr.mxu0 0.0
    %2672 = vmatpush1.msra.mxu0 0.0
    %2673 = vmatprep.subr.mxu0 0.0
    %2674 = vmatpush1.msra.mxu0 0.0
    %2675 = vmatprep.mubr.f32.mxu0 0.0
    %2676 = vmatmul.mubr.f32.gmra.mrb[0].mxu0 %v2603
    %v2677 = vpop.f32.mrb[0].mxu0
    %v2678 = vadd.f32 %v2589, %v2677
    %v2679 = vpop.f32.mrb[0].mxu0
    %2680 = vmatprep.mubr.f32.mxu0 0.0
    %2681 = vmatmul.mubr.f32.gmra.mrb[0].mxu0 %v2606
    %v2682 = vpop.f32.mrb[0].mxu0
    %v2683 = vadd.f32 %v2594, %v2682
    %v2684 = vpop.f32.mrb[0].mxu0
    %2685 = vmatprep.mubr.f32.mxu0 0.0
    %2686 = vmatmul.mubr.f32.gmra.mrb[0].mxu0 %v2609
    %v2687 = vpop.f32.mrb[0].mxu0
    %v2688 = vadd.f32 %v2599, %v2687
    %v2689 = vpop.f32.mrb[0].mxu0
    %2690 = vdwg.mxu0
    %v2691 = vlaneseq
    %v2692 = vshrl.u32 %v2691, 7
    %v2693 = vsub.s32 0, %v2692
    %v2694 = vrot.slane %v1663, %v2693
    %v2696 = vsel %vm78, %v2678, 0
    %v2699 = vsel %vm78, %v2683, 0
    %v2702 = vsel %vm78, %v2688, 0
    %2704 = vmatprep.subr.mxu0 0.0
    %2705 = vmatpush1.msra.mxu0 %v1642
    %2706 = vmatprep.subr.mxu0 0.0
    %2707 = vmatpush1.msra.mxu0 %v1643
    %2708 = vmatprep.subr.mxu0 0.0
    %2709 = vmatpush1.msra.mxu0 %v1644
    %2710 = vmatprep.subr.mxu0 0.0
    %2711 = vmatpush1.msra.mxu0 %v1645
    %2712 = vmatprep.subr.mxu0 0.0
    %2713 = vmatpush1.msra.mxu0 0.0
    %2714 = vmatprep.subr.mxu0 0.0
    %2715 = vmatpush1.msra.mxu0 0.0
    %2716 = vmatprep.subr.mxu0 0.0
    %2717 = vmatpush1.msra.mxu0 0.0
    %2718 = vmatprep.subr.mxu0 0.0
    %2719 = vmatpush1.msra.mxu0 0.0
    %2720 = vmatprep.subr.mxu0 0.0
    %2721 = vmatpush1.msra.mxu0 0.0
    %2722 = vmatprep.subr.mxu0 0.0
    %2723 = vmatpush1.msra.mxu0 0.0
    %2724 = vmatprep.subr.mxu0 0.0
    %2725 = vmatpush1.msra.mxu0 0.0
    %2726 = vmatprep.subr.mxu0 0.0
    %2727 = vmatpush1.msra.mxu0 0.0
    %2728 = vmatprep.subr.mxu0 0.0
    %2729 = vmatpush1.msra.mxu0 0.0
    %2730 = vmatprep.subr.mxu0 0.0
    %2731 = vmatpush1.msra.mxu0 0.0
    %2732 = vmatprep.subr.mxu0 0.0
    %2733 = vmatpush1.msra.mxu0 0.0
    %2734 = vmatprep.subr.mxu0 0.0
    %2735 = vmatpush1.msra.mxu0 0.0
    %2736 = vmatprep.subr.mxu0 0.0
    %2737 = vmatpush1.msra.mxu0 0.0
    %2738 = vmatprep.subr.mxu0 0.0
    %2739 = vmatpush1.msra.mxu0 0.0
    %2740 = vmatprep.subr.mxu0 0.0
    %2741 = vmatpush1.msra.mxu0 0.0
    %2742 = vmatprep.subr.mxu0 0.0
    %2743 = vmatpush1.msra.mxu0 0.0
    %2744 = vmatprep.subr.mxu0 0.0
    %2745 = vmatpush1.msra.mxu0 0.0
    %2746 = vmatprep.subr.mxu0 0.0
    %2747 = vmatpush1.msra.mxu0 0.0
    %2748 = vmatprep.subr.mxu0 0.0
    %2749 = vmatpush1.msra.mxu0 0.0
    %2750 = vmatprep.subr.mxu0 0.0
    %2751 = vmatpush1.msra.mxu0 0.0
    %2752 = vmatprep.subr.mxu0 0.0
    %2753 = vmatpush1.msra.mxu0 0.0
    %2754 = vmatprep.subr.mxu0 0.0
    %2755 = vmatpush1.msra.mxu0 0.0
    %2756 = vmatprep.subr.mxu0 0.0
    %2757 = vmatpush1.msra.mxu0 0.0
    %2758 = vmatprep.subr.mxu0 0.0
    %2759 = vmatpush1.msra.mxu0 0.0
    %2760 = vmatprep.subr.mxu0 0.0
    %2761 = vmatpush1.msra.mxu0 0.0
    %2762 = vmatprep.subr.mxu0 0.0
    %2763 = vmatpush1.msra.mxu0 0.0
    %2764 = vmatprep.subr.mxu0 0.0
    %2765 = vmatpush1.msra.mxu0 0.0
    %2766 = vmatprep.subr.mxu0 0.0
    %2767 = vmatpush1.msra.mxu0 0.0
    %2768 = vmatprep.mubr.f32.mxu0 0.0
    %2769 = vmatmul.mubr.f32.gmra.mrb[0].mxu0 %v2696
    %v2770 = vpop.f32.mrb[0].mxu0
    %v2771 = vadd.f32 %v2694, %v2770
    %v2772 = vpop.f32.mrb[0].mxu0
    %2773 = vmatprep.mubr.f32.mxu0 0.0
    %2774 = vmatmul.mubr.f32.gmra.mrb[0].mxu0 %v2699
    %v2775 = vpop.f32.mrb[0].mxu0
    %v2776 = vadd.f32 %v2694, %v2775
    %v2777 = vpop.f32.mrb[0].mxu0
    %2778 = vmatprep.mubr.f32.mxu0 0.0
    %2779 = vmatmul.mubr.f32.gmra.mrb[0].mxu0 %v2702
    %v2780 = vpop.f32.mrb[0].mxu0
    %v2781 = vadd.f32 %v2694, %v2780
    %v2782 = vpop.f32.mrb[0].mxu0
    %2783 = vdwg.mxu0
    %v2784 = vadd.f32 %v1628, %v2771
    %v2785 = vadd.f32 %v1629, %v2776
    %v2786 = vadd.f32 %v1630, %v2781
    %v2787 = vsel %vm78, %v2784, 0.0
    %2788 = vadd.xlane.f32.xlu0 %v2787
    %v2789 = vpop.xlane.xlu0 %2788
    %v2790 = vsel %vm78, %v2785, 0.0
    %2791 = vadd.xlane.f32.xlu0 %v2790
    %v2792 = vpop.xlane.xlu0 %2791
    %v2793 = vsel %vm78, %v2786, 0.0
    %2794 = vadd.xlane.f32.xlu0 %v2793
    %v2795 = vpop.xlane.xlu0 %2794
    %v2796 = vmul.f32 %v2789, %v1341
    %v2797 = vmul.f32 %v2792, %v1341
    %v2798 = vmul.f32 %v2795, %v1341
    %v2799 = vsub.f32 %v2784, %v2796
    %v2800 = vsub.f32 %v2785, %v2797
    %v2801 = vsub.f32 %v2786, %v2798
    %v2802 = vmul.f32 %v2799, %v2799
    %v2803 = vmul.f32 %v2800, %v2800
    %v2804 = vmul.f32 %v2801, %v2801
    %v2805 = vsel %vm78, %v2802, 0.0
    %2806 = vadd.xlane.f32.xlu0 %v2805
    %v2807 = vpop.xlane.xlu0 %2806
    %v2808 = vsel %vm78, %v2803, 0.0
    %2809 = vadd.xlane.f32.xlu0 %v2808
    %v2810 = vpop.xlane.xlu0 %2809
    %v2811 = vsel %vm78, %v2804, 0.0
    %2812 = vadd.xlane.f32.xlu0 %v2811
    %v2813 = vpop.xlane.xlu0 %2812
    %v2814 = vmul.f32 %v2807, %v1341
    %v2815 = vmul.f32 %v2810, %v1341
    %v2816 = vmul.f32 %v2813, %v1341
    %v2817 = vadd.f32 %v2814, 1e-05
    %v2818 = vadd.f32 %v2815, 1e-05
    %v2819 = vadd.f32 %v2816, 1e-05
    %v2820 = vrsqrt.pop %v2817
    %v2821 = vrsqrt.pop %v2818
    %v2822 = vrsqrt.pop %v2819
    %v2823 = vmul.f32 %v2799, %v2820
    %v2824 = vmul.f32 %v2800, %v2821
    %v2825 = vmul.f32 %v2801, %v2822
    %v2826 = vlaneseq
    %v2827 = vshrl.u32 %v2826, 7
    %v2828 = vsub.s32 0, %v2827
    %v2829 = vrot.slane %v1664, %v2828
    %v2830 = vmul.f32 %v2823, %v2829
    %v2831 = vmul.f32 %v2824, %v2829
    %v2832 = vmul.f32 %v2825, %v2829
    %v2833 = vlaneseq
    %v2834 = vshrl.u32 %v2833, 7
    %v2835 = vsub.s32 0, %v2834
    %v2836 = vrot.slane %v1665, %v2835
    %v2837 = vadd.f32 %v2830, %v2836
    %v2838 = vadd.f32 %v2831, %v2836
    %v2839 = vadd.f32 %v2832, %v2836
    %v2840 = vlaneseq
    %v2841 = vshrl.u32 %v2840, 7
    %v2842 = vsub.s32 0, %v2841
    %v2843 = vrot.slane %v1666, %v2842
    %v2845 = vsel %vm78, %v2837, 0
    %v2848 = vsel %vm78, %v2838, 0
    %v2851 = vsel %vm78, %v2839, 0
    %2853 = vmatprep.subr.mxu0 0.0
    %2854 = vmatpush1.msra.mxu0 %v1647
    %2855 = vmatprep.subr.mxu0 0.0
    %2856 = vmatpush1.msra.mxu0 %v1648
    %2857 = vmatprep.subr.mxu0 0.0
    %2858 = vmatpush1.msra.mxu0 %v1649
    %2859 = vmatprep.subr.mxu0 0.0
    %2860 = vmatpush1.msra.mxu0 %v1650
    %2861 = vmatprep.subr.mxu0 0.0
    %2862 = vmatpush1.msra.mxu0 0.0
    %2863 = vmatprep.subr.mxu0 0.0
    %2864 = vmatpush1.msra.mxu0 0.0
    %2865 = vmatprep.subr.mxu0 0.0
    %2866 = vmatpush1.msra.mxu0 0.0
    %2867 = vmatprep.subr.mxu0 0.0
    %2868 = vmatpush1.msra.mxu0 0.0
    %2869 = vmatprep.subr.mxu0 0.0
    %2870 = vmatpush1.msra.mxu0 0.0
    %2871 = vmatprep.subr.mxu0 0.0
    %2872 = vmatpush1.msra.mxu0 0.0
    %2873 = vmatprep.subr.mxu0 0.0
    %2874 = vmatpush1.msra.mxu0 0.0
    %2875 = vmatprep.subr.mxu0 0.0
    %2876 = vmatpush1.msra.mxu0 0.0
    %2877 = vmatprep.subr.mxu0 0.0
    %2878 = vmatpush1.msra.mxu0 0.0
    %2879 = vmatprep.subr.mxu0 0.0
    %2880 = vmatpush1.msra.mxu0 0.0
    %2881 = vmatprep.subr.mxu0 0.0
    %2882 = vmatpush1.msra.mxu0 0.0
    %2883 = vmatprep.subr.mxu0 0.0
    %2884 = vmatpush1.msra.mxu0 0.0
    %2885 = vmatprep.subr.mxu0 0.0
    %2886 = vmatpush1.msra.mxu0 0.0
    %2887 = vmatprep.subr.mxu0 0.0
    %2888 = vmatpush1.msra.mxu0 0.0
    %2889 = vmatprep.subr.mxu0 0.0
    %2890 = vmatpush1.msra.mxu0 0.0
    %2891 = vmatprep.subr.mxu0 0.0
    %2892 = vmatpush1.msra.mxu0 0.0
    %2893 = vmatprep.subr.mxu0 0.0
    %2894 = vmatpush1.msra.mxu0 0.0
    %2895 = vmatprep.subr.mxu0 0.0
    %2896 = vmatpush1.msra.mxu0 0.0
    %2897 = vmatprep.subr.mxu0 0.0
    %2898 = vmatpush1.msra.mxu0 0.0
    %2899 = vmatprep.subr.mxu0 0.0
    %2900 = vmatpush1.msra.mxu0 0.0
    %2901 = vmatprep.subr.mxu0 0.0
    %2902 = vmatpush1.msra.mxu0 0.0
    %2903 = vmatprep.subr.mxu0 0.0
    %2904 = vmatpush1.msra.mxu0 0.0
    %2905 = vmatprep.subr.mxu0 0.0
    %2906 = vmatpush1.msra.mxu0 0.0
    %2907 = vmatprep.subr.mxu0 0.0
    %2908 = vmatpush1.msra.mxu0 0.0
    %2909 = vmatprep.subr.mxu0 0.0
    %2910 = vmatpush1.msra.mxu0 0.0
    %2911 = vmatprep.subr.mxu0 0.0
    %2912 = vmatpush1.msra.mxu0 0.0
    %2913 = vmatprep.subr.mxu0 0.0
    %2914 = vmatpush1.msra.mxu0 0.0
    %2915 = vmatprep.subr.mxu0 0.0
    %2916 = vmatpush1.msra.mxu0 0.0
    %2917 = vmatprep.mubr.f32.mxu0 0.0
    %2918 = vmatmul.mubr.f32.gmra.mrb[0].mxu0 %v2845
    %v2919 = vpop.f32.mrb[0].mxu0
    %v2920 = vadd.f32 %v2843, %v2919
    %v2921 = vpop.f32.mrb[0].mxu0
    %2922 = vmatprep.mubr.f32.mxu0 0.0
    %2923 = vmatmul.mubr.f32.gmra.mrb[0].mxu0 %v2848
    %v2924 = vpop.f32.mrb[0].mxu0
    %v2925 = vadd.f32 %v2843, %v2924
    %v2926 = vpop.f32.mrb[0].mxu0
    %2927 = vmatprep.mubr.f32.mxu0 0.0
    %2928 = vmatmul.mubr.f32.gmra.mrb[0].mxu0 %v2851
    %v2929 = vpop.f32.mrb[0].mxu0
    %v2930 = vadd.f32 %v2843, %v2929
    %v2931 = vpop.f32.mrb[0].mxu0
    %2932 = vdwg.mxu0
    %v2933 = vmax.f32 %v2920, 0.0
    %v2934 = vmax.f32 %v2925, 0.0
    %v2935 = vmax.f32 %v2930, 0.0
    %v2936 = vlaneseq
    %v2937 = vshrl.u32 %v2936, 7
    %v2938 = vsub.s32 0, %v2937
    %v2939 = vrot.slane %v1667, %v2938
    %v2941 = vsel %vm674, %v2933, 0
    %v2944 = vsel %vm674, %v2934, 0
    %v2947 = vsel %vm674, %v2935, 0
    %2949 = vmatprep.subr.mxu0 0.0
    %2950 = vmatpush1.msra.mxu0 %v1652
    %2951 = vmatprep.subr.mxu0 0.0
    %2952 = vmatpush1.msra.mxu0 %v1653
    %2953 = vmatprep.subr.mxu0 0.0
    %2954 = vmatpush1.msra.mxu0 %v1654
    %2955 = vmatprep.subr.mxu0 0.0
    %2956 = vmatpush1.msra.mxu0 %v1655
    %2957 = vmatprep.subr.mxu0 0.0
    %2958 = vmatpush1.msra.mxu0 %v1656
    %2959 = vmatprep.subr.mxu0 0.0
    %2960 = vmatpush1.msra.mxu0 %v1657
    %2961 = vmatprep.subr.mxu0 0.0
    %2962 = vmatpush1.msra.mxu0 %v1658
    %2963 = vmatprep.subr.mxu0 0.0
    %2964 = vmatpush1.msra.mxu0 %v1659
    %2965 = vmatprep.subr.mxu0 0.0
    %2966 = vmatpush1.msra.mxu0 0.0
    %2967 = vmatprep.subr.mxu0 0.0
    %2968 = vmatpush1.msra.mxu0 0.0
    %2969 = vmatprep.subr.mxu0 0.0
    %2970 = vmatpush1.msra.mxu0 0.0
    %2971 = vmatprep.subr.mxu0 0.0
    %2972 = vmatpush1.msra.mxu0 0.0
    %2973 = vmatprep.subr.mxu0 0.0
    %2974 = vmatpush1.msra.mxu0 0.0
    %2975 = vmatprep.subr.mxu0 0.0
    %2976 = vmatpush1.msra.mxu0 0.0
    %2977 = vmatprep.subr.mxu0 0.0
    %2978 = vmatpush1.msra.mxu0 0.0
    %2979 = vmatprep.subr.mxu0 0.0
    %2980 = vmatpush1.msra.mxu0 0.0
    %2981 = vmatprep.subr.mxu0 0.0
    %2982 = vmatpush1.msra.mxu0 0.0
    %2983 = vmatprep.subr.mxu0 0.0
    %2984 = vmatpush1.msra.mxu0 0.0
    %2985 = vmatprep.subr.mxu0 0.0
    %2986 = vmatpush1.msra.mxu0 0.0
    %2987 = vmatprep.subr.mxu0 0.0
    %2988 = vmatpush1.msra.mxu0 0.0
    %2989 = vmatprep.subr.mxu0 0.0
    %2990 = vmatpush1.msra.mxu0 0.0
    %2991 = vmatprep.subr.mxu0 0.0
    %2992 = vmatpush1.msra.mxu0 0.0
    %2993 = vmatprep.subr.mxu0 0.0
    %2994 = vmatpush1.msra.mxu0 0.0
    %2995 = vmatprep.subr.mxu0 0.0
    %2996 = vmatpush1.msra.mxu0 0.0
    %2997 = vmatprep.subr.mxu0 0.0
    %2998 = vmatpush1.msra.mxu0 0.0
    %2999 = vmatprep.subr.mxu0 0.0
    %3000 = vmatpush1.msra.mxu0 0.0
    %3001 = vmatprep.subr.mxu0 0.0
    %3002 = vmatpush1.msra.mxu0 0.0
    %3003 = vmatprep.subr.mxu0 0.0
    %3004 = vmatpush1.msra.mxu0 0.0
    %3005 = vmatprep.subr.mxu0 0.0
    %3006 = vmatpush1.msra.mxu0 0.0
    %3007 = vmatprep.subr.mxu0 0.0
    %3008 = vmatpush1.msra.mxu0 0.0
    %3009 = vmatprep.subr.mxu0 0.0
    %3010 = vmatpush1.msra.mxu0 0.0
    %3011 = vmatprep.subr.mxu0 0.0
    %3012 = vmatpush1.msra.mxu0 0.0
    %3013 = vmatprep.mubr.f32.mxu0 0.0
    %3014 = vmatmul.mubr.f32.gmra.mrb[0].mxu0 %v2941
    %v3015 = vpop.f32.mrb[0].mxu0
    %v3016 = vadd.f32 %v2939, %v3015
    %v3017 = vpop.f32.mrb[0].mxu0
    %3018 = vmatprep.mubr.f32.mxu0 0.0
    %3019 = vmatmul.mubr.f32.gmra.mrb[0].mxu0 %v2944
    %v3020 = vpop.f32.mrb[0].mxu0
    %v3021 = vadd.f32 %v2939, %v3020
    %v3022 = vpop.f32.mrb[0].mxu0
    %3023 = vmatprep.mubr.f32.mxu0 0.0
    %3024 = vmatmul.mubr.f32.gmra.mrb[0].mxu0 %v2947
    %v3025 = vpop.f32.mrb[0].mxu0
    %v3026 = vadd.f32 %v2939, %v3025
    %v3027 = vpop.f32.mrb[0].mxu0
    %3028 = vdwg.mxu0
    %v3029 = vadd.f32 %v2837, %v3016
    %v3030 = vadd.f32 %v2838, %v3021
    %v3031 = vadd.f32 %v2839, %v3026
    %v3032 = vsel %vm78, %v3029, 0.0
    %3033 = vadd.xlane.f32.xlu0 %v3032
    %v3034 = vpop.xlane.xlu0 %3033
    %v3035 = vsel %vm78, %v3030, 0.0
    %3036 = vadd.xlane.f32.xlu0 %v3035
    %v3037 = vpop.xlane.xlu0 %3036
    %v3038 = vsel %vm78, %v3031, 0.0
    %3039 = vadd.xlane.f32.xlu0 %v3038
    %v3040 = vpop.xlane.xlu0 %3039
    %v3041 = vmul.f32 %v3034, %v1341
    %v3042 = vmul.f32 %v3037, %v1341
    %v3043 = vmul.f32 %v3040, %v1341
    %v3044 = vsub.f32 %v3029, %v3041
    %v3045 = vsub.f32 %v3030, %v3042
    %v3046 = vsub.f32 %v3031, %v3043
    %v3047 = vmul.f32 %v3044, %v3044
    %v3048 = vmul.f32 %v3045, %v3045
    %v3049 = vmul.f32 %v3046, %v3046
    %v3050 = vsel %vm78, %v3047, 0.0
    %3051 = vadd.xlane.f32.xlu0 %v3050
    %v3052 = vpop.xlane.xlu0 %3051
    %v3053 = vsel %vm78, %v3048, 0.0
    %3054 = vadd.xlane.f32.xlu0 %v3053
    %v3055 = vpop.xlane.xlu0 %3054
    %v3056 = vsel %vm78, %v3049, 0.0
    %3057 = vadd.xlane.f32.xlu0 %v3056
    %v3058 = vpop.xlane.xlu0 %3057
    %v3059 = vmul.f32 %v3052, %v1341
    %v3060 = vmul.f32 %v3055, %v1341
    %v3061 = vmul.f32 %v3058, %v1341
    %v3062 = vadd.f32 %v3059, 1e-05
    %v3063 = vadd.f32 %v3060, 1e-05
    %v3064 = vadd.f32 %v3061, 1e-05
    %v3065 = vrsqrt.pop %v3062
    %v3066 = vrsqrt.pop %v3063
    %v3067 = vrsqrt.pop %v3064
    %v3068 = vmul.f32 %v3044, %v3065
    %v3069 = vmul.f32 %v3045, %v3066
    %v3070 = vmul.f32 %v3046, %v3067
    %v3071 = vlaneseq
    %v3072 = vshrl.u32 %v3071, 7
    %v3073 = vsub.s32 0, %v3072
    %v3074 = vrot.slane %v1668, %v3073
    %v3075 = vmul.f32 %v3068, %v3074
    %v3076 = vmul.f32 %v3069, %v3074
    %v3077 = vmul.f32 %v3070, %v3074
    %v3078 = vlaneseq
    %v3079 = vshrl.u32 %v3078, 7
    %v3080 = vsub.s32 0, %v3079
    %v3081 = vrot.slane %v1669, %v3080
    %v3082 = vadd.f32 %v3075, %v3081
    %v3083 = vadd.f32 %v3076, %v3081
    %v3084 = vadd.f32 %v3077, %v3081
    %3085 = vst.msk [vmem:[#allocation2] sm:$0xff] %vm78, %v3082
    %3086 = vst.msk [vmem:[#allocation2 + $0x8] sm:$0xff] %vm78, %v3083
    %3087 = vst.msk [vmem:[#allocation2 + $0x10] sm:$0xff] %vm78, %v3084
    // Predicated region
    $region34: #{tpu_custom_call.1} parent=1 // pred_check
      _
    $region35: #{tpu_custom_call.1} parent=1 // pred_check_branch
      %3089 = sbr.rel (0) target = $region37
    $region36: #{tpu_custom_call.1} parent=1 // pred_region
      %s3091 = ssub.s32 384, 384
      %3092 = vsyncadd [#allocation3], %s3091
      %s3093 = sshll.u32 [#allocation2], 4
      %s3094 = int_to_ptr.vmem [resolvable:$true] %s3093
      %3099 = dma.vmem_to_hbm [thread:$0]  %s3094, 384, %s8, [#allocation3], 128, 128, 8
    $region37: #{tpu_custom_call.1} parent=1 // pred_fallthru
      _
    // Predicated region
    $region38: #{tpu_custom_call.1} parent=1 // pred_check
      _
    $region39: #{tpu_custom_call.1} parent=1 // pred_check_branch
      %3101 = sbr.rel (0) target = $region41
    $region40: #{tpu_custom_call.1} parent=1 // pred_region
      %3102 = dma.done [#allocation3], 384
    $region41: #{tpu_custom_call.1} parent=1 // pred_fallthru
      _
    %3103 = vsyncpa [#allocation3], 1

</llo_original>
